<compile_context>
chip_gen: v7x
topology: tpu7x:2x2x1
jax: 0.10.0
libtpu: 0.0.40
codegen_flags: <defaults>
</compile_context>

<pallas_src>
import functools
import math

import numpy as np
import jax
import jax.numpy as jnp
from jax import lax
from jax.experimental import pallas as pl
from jax.experimental.pallas import tpu as pltpu

# ----- small, TPU-friendly config (same structure as ElegantConfig) -----------------
EMBED_DIM  = 256                      # ElegantConfig.embed_dim   (768 -> 256, small)
EXPAND     = 1.5                      # ElegantConfig.expand_factor
D_INNER    = int(EMBED_DIM * EXPAND)  # 384
NUM_LAYERS = 2                        # ElegantConfig.num_layers  (4 -> 2, small)
VOCAB_SIZE = 1000                     # hard-coded in TrueBaselineE768H768SingleStep
MAX_POS    = 64                       # pos_encoding length (2048 -> 64, small)
LN_EPS     = 1e-5
DUR_PAD    = 128                      # lane-dense slab for the scalar duration output

# Lane-alignment invariants: xp[:, :di]/[:, di:] and the fused head-slab slices must
# stay lane-aligned (multiples of 128) or they materialize copies.
assert EMBED_DIM % 128 == 0, "EMBED_DIM must be a multiple of 128"
assert D_INNER % 128 == 0, "D_INNER (= embed_dim * expand_factor) must be a multiple of 128"


# ----- activations ------------------------------------------------------------------
def _softplus(x):
    # matches torch.nn.functional.softplus (beta=1, threshold=20) within tolerance;
    # for very negative x the result underflows to 0 slightly earlier than log1p,
    # which is < 2e-9 absolute and irrelevant at the 2e-2 test tolerance.
    return jnp.where(x > 20.0, x, jnp.log(1.0 + jnp.exp(jnp.minimum(x, 20.0))))


def _erf_approx(x):
    # Abramowitz & Stegun 7.1.26 rational approximation, |err| <= 1.5e-7 (plus the
    # ~2^-12 relative error of the EUP approx reciprocal).  Kernel-only.
    a1, a2, a3, a4, a5 = 0.254829592, -0.284496736, 1.421413741, -1.453152027, 1.061405429
    p = 0.3275911
    ax = jnp.abs(x)
    t = pl.reciprocal(1.0 + p * ax, approx=True)          # divide rides the EUP slot
    poly = ((((a5 * t + a4) * t + a3) * t + a2) * t + a1) * t
    y = 1.0 - poly * jnp.exp(-ax * ax)
    return jnp.where(x >= 0.0, y, -y)


def _gelu_kernel(x):
    # exact (erf) GELU, matching torch.nn.GELU() default, via the A&S approximation
    return 0.5 * x * (1.0 + _erf_approx(x * (1.0 / math.sqrt(2.0))))


def _gelu_ref(x):
    return 0.5 * x * (1.0 + lax.erf(x * (1.0 / math.sqrt(2.0))))


def _sigmoid_ref(x):
    return 1.0 / (1.0 + jnp.exp(-x))


# ====================================================================================
# Fused kernel: grid=(NUM_LAYERS,) UnifiedMambaBlock steps + (last step) final LN,
# pooling, duration_regulator and text_proj.
# ====================================================================================
def _fused_forward_kernel(
    x_ref,                 # (B*L, D)     f32  embedded tokens + pos enc (flattened)
    lng_ref, lnb_ref,      # (1, D)       f32  this layer's LayerNorm gamma / beta
    win_ref,               # (D, 2*di)    bf16 in_proj
    wconv_ref,             # (3, di)      f32  depthwise conv taps (prev, center, next)
    wdt_ref,               # (di, di)     bf16 dt_proj
    bdt_ref,               # (1, di)      f32  dt_proj bias
    wout_ref,              # (di, D)      bf16 out_proj
    scale_ref,             # (1, D)       f32  layer_scale
    fng_ref, fnb_ref,      # (1, D)       f32  encoder final LayerNorm
    hw_ref,                # (D, D+D//2)  bf16 fused [text_proj | duration hidden] weight
    hb_ref,                # (1, D+D//2)  f32  fused [text_proj | duration hidden] bias
    dw2_ref, db2_ref,      # (1, D//2) f32, (1, 1) f32   duration Linear 2
    pg_ref, pbeta_ref,     # (1, D)       f32  text_proj LayerNorm
    tf_ref,                # out (B*L, D)     f32  text_features (flattened)
    dur_ref,               # out (B, DUR_PAD) f32  durations broadcast across lanes
    ctx_ref,               # out (B, D)       f32  text_context
    x_scr,                 # scratch (B*L, D) f32  resident activation across layers
    *, batch, seq_len):

    BL = x_ref.shape[0]
    D = x_ref.shape[1]
    di = wdt_ref.shape[-1]
    l = pl.program_id(0)

    def _sig(v):
        # 1 / (1 + exp(-v)): exp + approx reciprocal both ride the EUP slot.
        return pl.reciprocal(1.0 + jnp.exp(-v), approx=True)

    def _ln(v, g, b):
        mu = jnp.mean(v, axis=-1, keepdims=True)
        vc = v - mu
        var = jnp.mean(vc * vc, axis=-1, keepdims=True)
        return vc * lax.rsqrt(var + LN_EPS) * g + b

    # ---- load the input once, keep activation resident in VMEM scratch -------------
    @pl.when(l == 0)
    def _():
        x_scr[...] = x_ref[...]

    # ---- (BL, 1) boundary masks for the depthwise conv -----------------------------
    # Zero the rolled-in row at sequence starts (for x_prev) / ends (for x_next).
    row = lax.broadcasted_iota(jnp.int32, (BL, 1), 0)
    pos = row % seq_len
    not_start = jnp.where(pos != 0, 1.0, 0.0)
    not_end = jnp.where(pos != seq_len - 1, 1.0, 0.0)

    # ---- one UnifiedMambaBlock layer (this grid step) -------------------------------
    x = x_scr[...]                                            # (BL, D) f32
    xn = _ln(x, lng_ref[...], lnb_ref[...])
    xp = jnp.dot(xn.astype(jnp.bfloat16), win_ref[...],
                 preferred_element_type=jnp.float32)          # (BL, 2*di)
    x1 = xp[:, :di]
    x2 = xp[:, di:]
    # depthwise Conv1d, kernel=3, padding=1: XLU rolls + boundary masks (no MXU)
    wc = wconv_ref[...]                                       # (3, di)
    x_prev = pltpu.roll(x1, shift=1, axis=0) * not_start      # x1[m-1] within sequence
    x_next = pltpu.roll(x1, shift=BL - 1, axis=0) * not_end   # x1[m+1] within sequence
    x1c = x_prev * wc[0:1, :] + x1 * wc[1:2, :] + x_next * wc[2:3, :]
    # SiLU
    x1s = x1c * _sig(x1c)
    # dt_proj (+bias) -> softplus -> sigmoid gate, then gate by sigmoid(x2)
    dt = jnp.dot(x1s.astype(jnp.bfloat16), wdt_ref[...],
                 preferred_element_type=jnp.float32) + bdt_ref[...]
    dt = _softplus(dt)
    x_g = (x1s * _sig(dt)) * _sig(x2)
    # out_proj, layer scale, residual (dropout = identity in eval)
    out = jnp.dot(x_g.astype(jnp.bfloat16), wout_ref[...],
                  preferred_element_type=jnp.float32)
    x_scr[...] = out * scale_ref[...] + x

    # ---- last layer: final LN -> pooling -> duration & text_proj heads --------------
    @pl.when(l == pl.num_programs(0) - 1)
    def _():
        tf = _ln(x_scr[...], fng_ref[...], fnb_ref[...])      # (BL, D)
        tf_ref[...] = tf
        # per-sequence mean pooling: free leading-dim reshape + sublane reduction
        pooled = jnp.mean(tf.reshape(batch, seq_len, D), axis=1)     # (B, D)
        # fused pooled heads: [ text_proj (D cols) | duration hidden (D//2 cols) ]
        hp = jnp.dot(pooled.astype(jnp.bfloat16), hw_ref[...],
                     preferred_element_type=jnp.float32) + hb_ref[...]
        p = hp[:, :D]                                         # text_proj pre-LN
        h = _gelu_kernel(hp[:, D:])                           # duration hidden
        d = jnp.sum(h * dw2_ref[...], axis=-1, keepdims=True) + db2_ref[...]   # (B, 1)
        dur_ref[...] = jnp.broadcast_to(_softplus(d), (batch, DUR_PAD))  # lane-dense
        ctx_ref[...] = _gelu_kernel(_ln(p, pg_ref[...], pbeta_ref[...]))


# ====================================================================================
# Forward wrapper (matches SmartRefinementModel.forward(text_tokens, None))
# ====================================================================================
def smart_refinement_forward(params, text_tokens):
    B, L = text_tokens.shape
    D, di = EMBED_DIM, D_INNER
    # E768H768TextEncoder: embedding + positional encoding (fused by XLA inside jit)
    x = params["emb"][text_tokens] + params["pos"][:, :L, :]          # (B, L, D)
    x2d = x.reshape(B * L, D)

    # Fuse the two pooled heads (text_proj + duration hidden) into one bf16 matmul.
    head_w = jnp.concatenate([params["proj_w"], params["dur_w1"]], axis=1)  # (D, D+D//2)
    head_b = jnp.concatenate([params["proj_b"], params["dur_b1"]], axis=1)  # (1, D+D//2)

    kernel = functools.partial(_fused_forward_kernel, batch=B, seq_len=L)

    def layer_spec(shape):     # per-layer params: (NL, *shape), leading axis squeezed
        return pl.BlockSpec((None,) + shape, lambda l: (l,) + (0,) * len(shape))

    def const_spec(shape):     # layer-invariant params / outputs: resident in VMEM
        return pl.BlockSpec(shape, lambda l: (0,) * len(shape))

    grid_spec = pltpu.PrefetchScalarGridSpec(
        num_scalar_prefetch=0,
        grid=(NUM_LAYERS,),
        in_specs=[
            const_spec((B * L, D)),            # x (loaded once)
            layer_spec((1, D)),                # ln_g
            layer_spec((1, D)),                # ln_b
            layer_spec((D, 2 * di)),           # w_in
            layer_spec((3, di)),               # w_conv
            layer_spec((di, di)),              # w_dt
            layer_spec((1, di)),               # b_dt
            layer_spec((di, D)),               # w_out
            layer_spec((1, D)),                # scale
            const_spec((1, D)),                # fn_g
            const_spec((1, D)),                # fn_b
            const_spec((D, D + D // 2)),       # head_w (fused proj_w | dur_w1)
            const_spec((1, D + D // 2)),       # head_b (fused proj_b | dur_b1)
            const_spec((1, D // 2)),           # dur_w2
            const_spec((1, 1)),                # dur_b2
            const_spec((1, D)),                # proj_g
            const_spec((1, D)),                # proj_beta
        ],
        out_specs=[
            const_spec((B * L, D)),            # text_features (flat)
            const_spec((B, DUR_PAD)),          # durations (lane slab)
            const_spec((B, D)),                # text_context
        ],
        scratch_shapes=[pltpu.VMEM((B * L, D), jnp.float32)],
    )

    # Advisory cost estimate (flops / weight+activation bytes / EUP ops).
    flops = (NUM_LAYERS * 2 * B * L * (D * 2 * di + di * di + di * D)
             + 2 * B * D * (D + D // 2))
    bytes_accessed = (NUM_LAYERS * 2 * (D * 2 * di + di * di + di * D)   # bf16 weights
                      + 2 * (D * (D + D // 2))                           # head weights
                      + 2 * B * L * D * 4)                               # x in + tf out
    transcendentals = NUM_LAYERS * 4 * B * L * di + 4 * B * D

    tf2d, dur_pad, ctx = pl.pallas_call(
        kernel,
        grid_spec=grid_spec,
        out_shape=(
            jax.ShapeDtypeStruct((B * L, D), jnp.float32),     # text_features (flat)
            jax.ShapeDtypeStruct((B, DUR_PAD), jnp.float32),   # durations (lane slab)
            jax.ShapeDtypeStruct((B, D), jnp.float32),         # text_context
        ),
        compiler_params=pltpu.CompilerParams(
            dimension_semantics=("arbitrary",),      # layer axis carries the activation
            vmem_limit_bytes=32 * 1024 * 1024),
        cost_estimate=pl.CostEstimate(
            flops=flops, transcendentals=transcendentals,
            bytes_accessed=bytes_accessed),
    )(x2d,
      params["ln_g"], params["ln_b"], params["w_in"], params["w_conv"],
      params["w_dt"], params["b_dt"], params["w_out"], params["scale"],
      params["fn_g"], params["fn_b"],
      head_w, head_b, params["dur_w2"], params["dur_b2"],
      params["proj_g"], params["proj_beta"])

    # target_tokens is None -> audio_processor skipped -> logits is None, and the
    # adaptive refinement branch is skipped (exactly as in the PyTorch reference).
    return {
        "logits": None,
        "predicted_durations": dur_pad[:, :1],
        "text_features": tf2d.reshape(B, L, D),
    }, ctx


# ====================================================================================
# Deterministic parameter init (synthetic; shapes follow the module's __init__)
# ====================================================================================
def _uniform(key, shape, fan_in):
    bound = 1.0 / math.sqrt(fan_in)
    return jax.random.uniform(key, shape, jnp.float32, -bound, bound)


def init_params(key):
    D, di, NL = EMBED_DIM, D_INNER, NUM_LAYERS
    ks = jax.random.split(key, 13)
    return {
        "emb":    jax.random.normal(ks[0], (VOCAB_SIZE, D), jnp.float32),
        "pos":    0.02 * jax.random.normal(ks[1], (1, MAX_POS, D), jnp.float32),
        # per-layer params stacked on a leading NUM_LAYERS axis
        "ln_g":   jnp.ones((NL, 1, D), jnp.float32),
        "ln_b":   jnp.zeros((NL, 1, D), jnp.float32),
        "w_in":   _uniform(ks[2], (NL, D, 2 * di), D).astype(jnp.bfloat16),
        "w_conv": _uniform(ks[3], (NL, 3, di), 3),          # (layer, tap, channel)
        "w_dt":   _uniform(ks[4], (NL, di, di), di).astype(jnp.bfloat16),
        "b_dt":   _uniform(ks[5], (NL, 1, di), di),
        "w_out":  _uniform(ks[6], (NL, di, D), di).astype(jnp.bfloat16),
        "scale":  0.1 * jnp.ones((NL, 1, D), jnp.float32),
        # heads
        "fn_g":      jnp.ones((1, D), jnp.float32),
        "fn_b":      jnp.zeros((1, D), jnp.float32),
        "dur_w1":    _uniform(ks[7], (D, D // 2), D).astype(jnp.bfloat16),
        "dur_b1":    _uniform(ks[8], (1, D // 2), D),
        "dur_w2":    _uniform(ks[9], (1, D // 2), D // 2),
        "dur_b2":    _uniform(ks[10], (1, 1), D // 2),
        "proj_w":    _uniform(ks[11], (D, D), D).astype(jnp.bfloat16),
        "proj_b":    _uniform(ks[12], (1, D), D),
        "proj_g":    jnp.ones((1, D), jnp.float32),
        "proj_beta": jnp.zeros((1, D), jnp.float32),
    }


# ====================================================================================
# Pure-JAX reference (f32, HIGHEST precision) for the correctness check
# ====================================================================================
def _ref_layernorm(x, g, b):
    mu = jnp.mean(x, axis=-1, keepdims=True)
    xc = x - mu
    var = jnp.mean(xc * xc, axis=-1, keepdims=True)
    return xc * lax.rsqrt(var + LN_EPS) * g + b


def ref_forward(params, text_tokens):
    hp = lax.Precision.HIGHEST
    B, L = text_tokens.shape
    x = params["emb"][text_tokens] + params["pos"][:, :L, :]
    for l in range(NUM_LAYERS):
        res = x
        xn = _ref_layernorm(x, params["ln_g"][l, 0], params["ln_b"][l, 0])
        xp = jnp.matmul(xn, params["w_in"][l].astype(jnp.float32), precision=hp)
        x1, x2 = xp[..., :D_INNER], xp[..., D_INNER:]
        zeros = jnp.zeros_like(x1[:, :1, :])
        x_prev = jnp.concatenate([zeros, x1[:, :-1, :]], axis=1)
        x_next = jnp.concatenate([x1[:, 1:, :], zeros], axis=1)
        wc = params["w_conv"][l]
        x1c = x_prev * wc[0] + x1 * wc[1] + x_next * wc[2]
        x1s = x1c * _sigmoid_ref(x1c)
        dt = _softplus(jnp.matmul(x1s, params["w_dt"][l].astype(jnp.float32),
                                  precision=hp) + params["b_dt"][l, 0])
        x_g = (x1s * _sigmoid_ref(dt)) * _sigmoid_ref(x2)
        out = (jnp.matmul(x_g, params["w_out"][l].astype(jnp.float32), precision=hp)
               * params["scale"][l, 0])
        x = out + res
    tf = _ref_layernorm(x, params["fn_g"][0], params["fn_b"][0])
    pooled = jnp.mean(tf, axis=1)
    h = _gelu_ref(jnp.matmul(pooled, params["dur_w1"].astype(jnp.float32),
                             precision=hp) + params["dur_b1"][0])
    dur = _softplus(jnp.sum(h * params["dur_w2"], axis=-1, keepdims=True)
                    + params["dur_b2"][0])
    p = jnp.matmul(pooled, params["proj_w"].astype(jnp.float32),
                   precision=hp) + params["proj_b"][0]
    ctx = _gelu_ref(_ref_layernorm(p, params["proj_g"][0], params["proj_beta"][0]))
    return {"logits": None, "predicted_durations": dur, "text_features": tf}, ctx


if __name__ == "__main__":
    key = jax.random.PRNGKey(0)
    kp, kt = jax.random.split(key)
    params = init_params(kp)
    text_tokens = jax.random.randint(kt, (2, 16), 0, VOCAB_SIZE)   # B=2, L=16

    fwd = jax.jit(smart_refinement_forward)
    out, text_context = fwd(params, text_tokens)
    jax.block_until_ready((out["predicted_durations"], out["text_features"],
                           text_context))

    ref_out, ref_ctx = ref_forward(params, text_tokens)
    # bf16 weights / activations on the MXU vs f32 HIGHEST reference -> loose tol
    np.testing.assert_allclose(np.asarray(out["text_features"]),
                               np.asarray(ref_out["text_features"]),
                               rtol=2e-2, atol=2e-2)
    np.testing.assert_allclose(np.asarray(out["predicted_durations"]),
                               np.asarray(ref_out["predicted_durations"]),
                               rtol=2e-2, atol=2e-2)
    np.testing.assert_allclose(np.asarray(text_context), np.asarray(ref_ctx),
                               rtol=2e-2, atol=2e-2)
    assert out["logits"] is None
    print("KERNEL_OK")
</pallas_src>

<mosaic_0001>
module attributes {stable_mosaic.version = 11 : i64} {
  func.func @_fused_forward_kernel(%arg0: i32, %arg1: memref<32x256xf32, #tpu.memory_space<vmem>>, %arg2: memref<1x1x256xf32, #tpu.memory_space<vmem>>, %arg3: memref<1x1x256xf32, #tpu.memory_space<vmem>>, %arg4: memref<1x256x768xbf16, #tpu.memory_space<vmem>>, %arg5: memref<1x3x384xf32, #tpu.memory_space<vmem>>, %arg6: memref<1x384x384xbf16, #tpu.memory_space<vmem>>, %arg7: memref<1x1x384xf32, #tpu.memory_space<vmem>>, %arg8: memref<1x384x256xbf16, #tpu.memory_space<vmem>>, %arg9: memref<1x1x256xf32, #tpu.memory_space<vmem>>, %arg10: memref<1x256xf32, #tpu.memory_space<vmem>>, %arg11: memref<1x256xf32, #tpu.memory_space<vmem>>, %arg12: memref<256x384xbf16, #tpu.memory_space<vmem>>, %arg13: memref<1x384xf32, #tpu.memory_space<vmem>>, %arg14: memref<1x128xf32, #tpu.memory_space<vmem>>, %arg15: memref<1x1xf32, #tpu.memory_space<vmem>>, %arg16: memref<1x256xf32, #tpu.memory_space<vmem>>, %arg17: memref<1x256xf32, #tpu.memory_space<vmem>>, %arg18: memref<32x256xf32, #tpu.memory_space<vmem>>, %arg19: memref<2x128xf32, #tpu.memory_space<vmem>>, %arg20: memref<2x256xf32, #tpu.memory_space<vmem>>, %arg21: memref<32x256xf32, #tpu.memory_space<vmem>>) attributes {dimension_semantics = [#tpu.dimension_semantics<arbitrary>], iteration_bounds = array<i64: 2>, scalar_prefetch = 0 : i64, scratch_operands = 1 : i64, tpu.core_type = #tpu.core_type<tc>, window_params = [{pipeline_mode = #tpu.pipeline_mode<synchronous>, transform_indices = @transform_0, window_bounds = array<i64: 32, 256>}, {transform_indices = @transform_1, window_bounds = array<i64: 1, 1, 256>}, {transform_indices = @transform_2, window_bounds = array<i64: 1, 1, 256>}, {transform_indices = @transform_3, window_bounds = array<i64: 1, 256, 768>}, {transform_indices = @transform_4, window_bounds = array<i64: 1, 3, 384>}, {transform_indices = @transform_5, window_bounds = array<i64: 1, 384, 384>}, {transform_indices = @transform_6, window_bounds = array<i64: 1, 1, 384>}, {transform_indices = @transform_7, window_bounds = array<i64: 1, 384, 256>}, {transform_indices = @transform_8, window_bounds = array<i64: 1, 1, 256>}, {pipeline_mode = #tpu.pipeline_mode<synchronous>, transform_indices = @transform_9, window_bounds = array<i64: 1, 256>}, {pipeline_mode = #tpu.pipeline_mode<synchronous>, transform_indices = @transform_10, window_bounds = array<i64: 1, 256>}, {pipeline_mode = #tpu.pipeline_mode<synchronous>, transform_indices = @transform_11, window_bounds = array<i64: 256, 384>}, {pipeline_mode = #tpu.pipeline_mode<synchronous>, transform_indices = @transform_12, window_bounds = array<i64: 1, 384>}, {pipeline_mode = #tpu.pipeline_mode<synchronous>, transform_indices = @transform_13, window_bounds = array<i64: 1, 128>}, {pipeline_mode = #tpu.pipeline_mode<synchronous>, transform_indices = @transform_14, window_bounds = array<i64: 1, 1>}, {pipeline_mode = #tpu.pipeline_mode<synchronous>, transform_indices = @transform_15, window_bounds = array<i64: 1, 256>}, {pipeline_mode = #tpu.pipeline_mode<synchronous>, transform_indices = @transform_16, window_bounds = array<i64: 1, 256>}, {pipeline_mode = #tpu.pipeline_mode<synchronous>, transform_indices = @transform_17, window_bounds = array<i64: 32, 256>}, {pipeline_mode = #tpu.pipeline_mode<synchronous>, transform_indices = @transform_18, window_bounds = array<i64: 2, 128>}, {pipeline_mode = #tpu.pipeline_mode<synchronous>, transform_indices = @transform_19, window_bounds = array<i64: 2, 256>}]} {
    %c0_i32 = arith.constant 0 : i32
    %0 = arith.cmpi eq, %arg0, %c0_i32 : i32
    %1 = arith.extui %0 : i1 to i32
    %c0_i32_0 = arith.constant 0 : i32
    %2 = arith.cmpi ne, %1, %c0_i32_0 : i32
    scf.if %2 {
      %c0_56 = arith.constant 0 : index
      %c0_57 = arith.constant 0 : index
      %131 = vector.load %arg1[%c0_56, %c0_57] : memref<32x256xf32, #tpu.memory_space<vmem>>, vector<32x256xf32>
      %c0_58 = arith.constant 0 : index
      %c0_59 = arith.constant 0 : index
      %132 = vector.load %arg21[%c0_58, %c0_59] : memref<32x256xf32, #tpu.memory_space<vmem>>, vector<32x256xf32>
      tpu.vector_store %arg21[%c0_58, %c0_59], %131 {strides = array<i32>} : memref<32x256xf32, #tpu.memory_space<vmem>>, vector<32x256xf32>,
    } else {
    }
    %3 = tpu.iota {dimensions = array<i32: 0>} : vector<32x1xi32>
    %c16_i32 = arith.constant 16 : i32
    %c0_i32_1 = arith.constant 0 : i32
    %4 = arith.cmpi eq, %c16_i32, %c0_i32_1 : i32
    %c1_i32 = arith.constant 1 : i32
    %5 = arith.select %4, %c1_i32, %c16_i32 : i32
    %6 = vector.broadcast %5 : i32 to vector<32x1xi32>
    %7 = arith.remsi %3, %6 : vector<32x1xi32>
    %c0_i32_2 = arith.constant 0 : i32
    %8 = vector.broadcast %c0_i32_2 : i32 to vector<32x1xi32>
    %9 = arith.cmpi ne, %7, %8 : vector<32x1xi32>
    %c0_i32_3 = arith.constant 0 : i32
    %10 = vector.broadcast %c0_i32_3 : i32 to vector<32x1xi32>
    %11 = arith.cmpi slt, %7, %10 : vector<32x1xi32>
    %c0_i32_4 = arith.constant 0 : i32
    %12 = arith.cmpi slt, %5, %c0_i32_4 : i32
    %13 = vector.broadcast %12 : i1 to vector<32x1xi1>
    %14 = vector.broadcast %13 : vector<32x1xi1> to vector<32x1xi1>
    %15 = arith.xori %11, %14 : vector<32x1xi1>
    %16 = arith.andi %15, %9 : vector<32x1xi1>
    %17 = vector.broadcast %5 : i32 to vector<32x1xi32>
    %18 = arith.addi %7, %17 : vector<32x1xi32>
    %19 = arith.select %16, %18, %7 : vector<32x1xi1>, vector<32x1xi32>
    %c0_i32_5 = arith.constant 0 : i32
    %20 = vector.broadcast %c0_i32_5 : i32 to vector<32x1xi32>
    %21 = arith.cmpi ne, %19, %20 : vector<32x1xi32>
    %cst = arith.constant 1.000000e+00 : f32
    %cst_6 = arith.constant 0.000000e+00 : f32
    %22 = vector.broadcast %cst : f32 to vector<32x1xf32>
    %23 = vector.broadcast %cst_6 : f32 to vector<32x1xf32>
    %24 = arith.select %21, %22, %23 : vector<32x1xi1>, vector<32x1xf32>
    %c15_i32 = arith.constant 15 : i32
    %25 = vector.broadcast %c15_i32 : i32 to vector<32x1xi32>
    %26 = arith.cmpi ne, %19, %25 : vector<32x1xi32>
    %cst_7 = arith.constant 1.000000e+00 : f32
    %cst_8 = arith.constant 0.000000e+00 : f32
    %27 = vector.broadcast %cst_7 : f32 to vector<32x1xf32>
    %28 = vector.broadcast %cst_8 : f32 to vector<32x1xf32>
    %29 = arith.select %26, %27, %28 : vector<32x1xi1>, vector<32x1xf32>
    %c0 = arith.constant 0 : index
    %c0_9 = arith.constant 0 : index
    %30 = vector.load %arg21[%c0, %c0_9] : memref<32x256xf32, #tpu.memory_space<vmem>>, vector<32x256xf32>
    %c0_10 = arith.constant 0 : index
    %c0_11 = arith.constant 0 : index
    %c0_12 = arith.constant 0 : index
    %31 = vector.load %arg2[%c0_10, %c0_11, %c0_12] : memref<1x1x256xf32, #tpu.memory_space<vmem>>, vector<1x1x256xf32>
    %32 = vector.shape_cast %31 : vector<1x1x256xf32> to vector<1x256xf32>
    %c0_13 = arith.constant 0 : index
    %c0_14 = arith.constant 0 : index
    %c0_15 = arith.constant 0 : index
    %33 = vector.load %arg3[%c0_13, %c0_14, %c0_15] : memref<1x1x256xf32, #tpu.memory_space<vmem>>, vector<1x1x256xf32>
    %34 = vector.shape_cast %33 : vector<1x1x256xf32> to vector<1x256xf32>
    %cst_16 = arith.constant dense<0.000000e+00> : vector<32xf32>
    %35 = vector.multi_reduction <add>, %30, %cst_16 [1] : vector<32x256xf32> to vector<32xf32>
    %36 = vector.shape_cast %35 : vector<32xf32> to vector<32x1xf32>
    %cst_17 = arith.constant 2.560000e+02 : f32
    %37 = vector.broadcast %cst_17 : f32 to vector<32x1xf32>
    %38 = arith.divf %36, %37 : vector<32x1xf32>
    %39 = vector.broadcast %38 : vector<32x1xf32> to vector<32x256xf32>
    %40 = arith.subf %30, %39 : vector<32x256xf32>
    %41 = arith.mulf %40, %40 : vector<32x256xf32>
    %cst_18 = arith.constant dense<0.000000e+00> : vector<32xf32>
    %42 = vector.multi_reduction <add>, %41, %cst_18 [1] : vector<32x256xf32> to vector<32xf32>
    %43 = vector.shape_cast %42 : vector<32xf32> to vector<32x1xf32>
    %cst_19 = arith.constant 2.560000e+02 : f32
    %44 = vector.broadcast %cst_19 : f32 to vector<32x1xf32>
    %45 = arith.divf %43, %44 : vector<32x1xf32>
    %cst_20 = arith.constant 9.99999974E-6 : f32
    %46 = vector.broadcast %cst_20 : f32 to vector<32x1xf32>
    %47 = arith.addf %45, %46 : vector<32x1xf32>
    %48 = math.rsqrt %47 : vector<32x1xf32>
    %49 = vector.broadcast %48 : vector<32x1xf32> to vector<32x256xf32>
    %50 = arith.mulf %40, %49 : vector<32x256xf32>
    %51 = vector.broadcast %32 : vector<1x256xf32> to vector<32x256xf32>
    %52 = arith.mulf %50, %51 : vector<32x256xf32>
    %53 = vector.broadcast %34 : vector<1x256xf32> to vector<32x256xf32>
    %54 = arith.addf %52, %53 : vector<32x256xf32>
    %55 = arith.truncf %54 : vector<32x256xf32> to vector<32x256xbf16>
    %c0_21 = arith.constant 0 : index
    %c0_22 = arith.constant 0 : index
    %c0_23 = arith.constant 0 : index
    %56 = vector.load %arg4[%c0_21, %c0_22, %c0_23] : memref<1x256x768xbf16, #tpu.memory_space<vmem>>, vector<1x256x768xbf16>
    %57 = vector.shape_cast %56 : vector<1x256x768xbf16> to vector<256x768xbf16>
    %cst_24 = arith.constant dense<0.000000e+00> : vector<32x768xf32>
    %58 = tpu.matmul %55, %57, %cst_24 {dimension_numbers = #tpu.dot_dimension_numbers<[1], [0], [0], [1], [0, 0, 1, 1], [], []>} : vector<32x256xbf16>, vector<256x768xbf16>, vector<32x768xf32> -> vector<32x768xf32>
    %59 = vector.extract_strided_slice %58 {offsets = [0, 0], sizes = [32, 384], strides = [1, 1]} : vector<32x768xf32> to vector<32x384xf32>
    %60 = vector.extract_strided_slice %58 {offsets = [0, 384], sizes = [32, 384], strides = [1, 1]} : vector<32x768xf32> to vector<32x384xf32>
    %c0_25 = arith.constant 0 : index
    %c0_26 = arith.constant 0 : index
    %c0_27 = arith.constant 0 : index
    %61 = vector.load %arg5[%c0_25, %c0_26, %c0_27] : memref<1x3x384xf32, #tpu.memory_space<vmem>>, vector<1x3x384xf32>
    %62 = vector.shape_cast %61 : vector<1x3x384xf32> to vector<3x384xf32>
    %c1_i32_28 = arith.constant 1 : i32
    %63 = tpu.dynamic_rotate %59 by %c1_i32_28 dim 0 : vector<32x384xf32>, i32 -> vector<32x384xf32>
    %64 = vector.broadcast %24 : vector<32x1xf32> to vector<32x384xf32>
    %65 = arith.mulf %63, %64 : vector<32x384xf32>
    %c31_i32 = arith.constant 31 : i32
    %66 = tpu.dynamic_rotate %59 by %c31_i32 dim 0 : vector<32x384xf32>, i32 -> vector<32x384xf32>
    %67 = vector.broadcast %29 : vector<32x1xf32> to vector<32x384xf32>
    %68 = arith.mulf %66, %67 : vector<32x384xf32>
    %69 = vector.extract_strided_slice %62 {offsets = [0, 0], sizes = [1, 384], strides = [1, 1]} : vector<3x384xf32> to vector<1x384xf32>
    %70 = vector.broadcast %69 : vector<1x384xf32> to vector<32x384xf32>
    %71 = arith.mulf %65, %70 : vector<32x384xf32>
    %72 = vector.extract_strided_slice %62 {offsets = [1, 0], sizes = [1, 384], strides = [1, 1]} : vector<3x384xf32> to vector<1x384xf32>
    %73 = vector.broadcast %72 : vector<1x384xf32> to vector<32x384xf32>
    %74 = arith.mulf %59, %73 : vector<32x384xf32>
    %75 = arith.addf %71, %74 : vector<32x384xf32>
    %76 = vector.extract_strided_slice %62 {offsets = [2, 0], sizes = [1, 384], strides = [1, 1]} : vector<3x384xf32> to vector<1x384xf32>
    %77 = vector.broadcast %76 : vector<1x384xf32> to vector<32x384xf32>
    %78 = arith.mulf %68, %77 : vector<32x384xf32>
    %79 = arith.addf %75, %78 : vector<32x384xf32>
    %cst_29 = arith.constant 0.000000e+00 : f32
    %80 = vector.broadcast %cst_29 : f32 to vector<32x384xf32>
    %81 = arith.subf %80, %79 : vector<32x384xf32>
    %82 = math.exp %81 : vector<32x384xf32>
    %cst_30 = arith.constant 1.000000e+00 : f32
    %83 = vector.broadcast %cst_30 : f32 to vector<32x384xf32>
    %84 = arith.addf %83, %82 : vector<32x384xf32>
    %85 = tpu.reciprocal %84 {approx = true} : vector<32x384xf32> -> vector<32x384xf32>
    %86 = arith.mulf %79, %85 : vector<32x384xf32>
    %87 = arith.truncf %86 : vector<32x384xf32> to vector<32x384xbf16>
    %c0_31 = arith.constant 0 : index
    %c0_32 = arith.constant 0 : index
    %c0_33 = arith.constant 0 : index
    %88 = vector.load %arg6[%c0_31, %c0_32, %c0_33] : memref<1x384x384xbf16, #tpu.memory_space<vmem>>, vector<1x384x384xbf16>
    %89 = vector.shape_cast %88 : vector<1x384x384xbf16> to vector<384x384xbf16>
    %cst_34 = arith.constant dense<0.000000e+00> : vector<32x384xf32>
    %90 = tpu.matmul %87, %89, %cst_34 {dimension_numbers = #tpu.dot_dimension_numbers<[1], [0], [0], [1], [0, 0, 1, 1], [], []>} : vector<32x384xbf16>, vector<384x384xbf16>, vector<32x384xf32> -> vector<32x384xf32>
    %c0_35 = arith.constant 0 : index
    %c0_36 = arith.constant 0 : index
    %c0_37 = arith.constant 0 : index
    %91 = vector.load %arg7[%c0_35, %c0_36, %c0_37] : memref<1x1x384xf32, #tpu.memory_space<vmem>>, vector<1x1x384xf32>
    %92 = vector.shape_cast %91 : vector<1x1x384xf32> to vector<1x384xf32>
    %93 = vector.broadcast %92 : vector<1x384xf32> to vector<32x384xf32>
    %94 = arith.addf %90, %93 : vector<32x384xf32>
    %cst_38 = arith.constant 2.000000e+01 : f32
    %95 = vector.broadcast %cst_38 : f32 to vector<32x384xf32>
    %96 = arith.cmpf ogt, %94, %95 : vector<32x384xf32>
    %cst_39 = arith.constant 2.000000e+01 : f32
    %97 = vector.broadcast %cst_39 : f32 to vector<32x384xf32>
    %98 = arith.minimumf %94, %97 : vector<32x384xf32>
    %99 = math.exp %98 : vector<32x384xf32>
    %cst_40 = arith.constant 1.000000e+00 : f32
    %100 = vector.broadcast %cst_40 : f32 to vector<32x384xf32>
    %101 = arith.addf %100, %99 : vector<32x384xf32>
    %102 = math.log %101 : vector<32x384xf32>
    %103 = arith.select %96, %94, %102 : vector<32x384xi1>, vector<32x384xf32>
    %cst_41 = arith.constant 0.000000e+00 : f32
    %104 = vector.broadcast %cst_41 : f32 to vector<32x384xf32>
    %105 = arith.subf %104, %103 : vector<32x384xf32>
    %106 = math.exp %105 : vector<32x384xf32>
    %cst_42 = arith.constant 1.000000e+00 : f32
    %107 = vector.broadcast %cst_42 : f32 to vector<32x384xf32>
    %108 = arith.addf %107, %106 : vector<32x384xf32>
    %109 = tpu.reciprocal %108 {approx = true} : vector<32x384xf32> -> vector<32x384xf32>
    %110 = arith.mulf %86, %109 : vector<32x384xf32>
    %cst_43 = arith.constant 0.000000e+00 : f32
    %111 = vector.broadcast %cst_43 : f32 to vector<32x384xf32>
    %112 = arith.subf %111, %60 : vector<32x384xf32>
    %113 = math.exp %112 : vector<32x384xf32>
    %cst_44 = arith.constant 1.000000e+00 : f32
    %114 = vector.broadcast %cst_44 : f32 to vector<32x384xf32>
    %115 = arith.addf %114, %113 : vector<32x384xf32>
    %116 = tpu.reciprocal %115 {approx = true} : vector<32x384xf32> -> vector<32x384xf32>
    %117 = arith.mulf %110, %116 : vector<32x384xf32>
    %118 = arith.truncf %117 : vector<32x384xf32> to vector<32x384xbf16>
    %c0_45 = arith.constant 0 : index
    %c0_46 = arith.constant 0 : index
    %c0_47 = arith.constant 0 : index
    %119 = vector.load %arg8[%c0_45, %c0_46, %c0_47] : memref<1x384x256xbf16, #tpu.memory_space<vmem>>, vector<1x384x256xbf16>
    %120 = vector.shape_cast %119 : vector<1x384x256xbf16> to vector<384x256xbf16>
    %cst_48 = arith.constant dense<0.000000e+00> : vector<32x256xf32>
    %121 = tpu.matmul %118, %120, %cst_48 {dimension_numbers = #tpu.dot_dimension_numbers<[1], [0], [0], [1], [0, 0, 1, 1], [], []>} : vector<32x384xbf16>, vector<384x256xbf16>, vector<32x256xf32> -> vector<32x256xf32>
    %c0_49 = arith.constant 0 : index
    %c0_50 = arith.constant 0 : index
    %c0_51 = arith.constant 0 : index
    %122 = vector.load %arg9[%c0_49, %c0_50, %c0_51] : memref<1x1x256xf32, #tpu.memory_space<vmem>>, vector<1x1x256xf32>
    %123 = vector.shape_cast %122 : vector<1x1x256xf32> to vector<1x256xf32>
    %124 = vector.broadcast %123 : vector<1x256xf32> to vector<32x256xf32>
    %125 = arith.mulf %121, %124 : vector<32x256xf32>
    %126 = arith.addf %125, %30 : vector<32x256xf32>
    %c0_52 = arith.constant 0 : index
    %c0_53 = arith.constant 0 : index
    %127 = vector.load %arg21[%c0_52, %c0_53] : memref<32x256xf32, #tpu.memory_space<vmem>>, vector<32x256xf32>
    tpu.vector_store %arg21[%c0_52, %c0_53], %126 {strides = array<i32>} : memref<32x256xf32, #tpu.memory_space<vmem>>, vector<32x256xf32>,
    %c1_i32_54 = arith.constant 1 : i32
    %128 = arith.cmpi eq, %arg0, %c1_i32_54 : i32
    %129 = arith.extui %128 : i1 to i32
    %c0_i32_55 = arith.constant 0 : i32
    %130 = arith.cmpi ne, %129, %c0_i32_55 : i32
    scf.if %130 {
      %c0_56 = arith.constant 0 : index
      %c0_57 = arith.constant 0 : index
      %131 = vector.load %arg21[%c0_56, %c0_57] : memref<32x256xf32, #tpu.memory_space<vmem>>, vector<32x256xf32>
      %c0_58 = arith.constant 0 : index
      %c0_59 = arith.constant 0 : index
      %132 = vector.load %arg10[%c0_58, %c0_59] : memref<1x256xf32, #tpu.memory_space<vmem>>, vector<1x256xf32>
      %c0_60 = arith.constant 0 : index
      %c0_61 = arith.constant 0 : index
      %133 = vector.load %arg11[%c0_60, %c0_61] : memref<1x256xf32, #tpu.memory_space<vmem>>, vector<1x256xf32>
      %cst_62 = arith.constant dense<0.000000e+00> : vector<32xf32>
      %134 = vector.multi_reduction <add>, %131, %cst_62 [1] : vector<32x256xf32> to vector<32xf32>
      %135 = vector.shape_cast %134 : vector<32xf32> to vector<32x1xf32>
      %cst_63 = arith.constant 2.560000e+02 : f32
      %136 = vector.broadcast %cst_63 : f32 to vector<32x1xf32>
      %137 = arith.divf %135, %136 : vector<32x1xf32>
      %138 = vector.broadcast %137 : vector<32x1xf32> to vector<32x256xf32>
      %139 = arith.subf %131, %138 : vector<32x256xf32>
      %140 = arith.mulf %139, %139 : vector<32x256xf32>
      %cst_64 = arith.constant dense<0.000000e+00> : vector<32xf32>
      %141 = vector.multi_reduction <add>, %140, %cst_64 [1] : vector<32x256xf32> to vector<32xf32>
      %142 = vector.shape_cast %141 : vector<32xf32> to vector<32x1xf32>
      %cst_65 = arith.constant 2.560000e+02 : f32
      %143 = vector.broadcast %cst_65 : f32 to vector<32x1xf32>
      %144 = arith.divf %142, %143 : vector<32x1xf32>
      %cst_66 = arith.constant 9.99999974E-6 : f32
      %145 = vector.broadcast %cst_66 : f32 to vector<32x1xf32>
      %146 = arith.addf %144, %145 : vector<32x1xf32>
      %147 = math.rsqrt %146 : vector<32x1xf32>
      %148 = vector.broadcast %147 : vector<32x1xf32> to vector<32x256xf32>
      %149 = arith.mulf %139, %148 : vector<32x256xf32>
      %150 = vector.broadcast %132 : vector<1x256xf32> to vector<32x256xf32>
      %151 = arith.mulf %149, %150 : vector<32x256xf32>
      %152 = vector.broadcast %133 : vector<1x256xf32> to vector<32x256xf32>
      %153 = arith.addf %151, %152 : vector<32x256xf32>
      %c0_67 = arith.constant 0 : index
      %c0_68 = arith.constant 0 : index
      %154 = vector.load %arg18[%c0_67, %c0_68] : memref<32x256xf32, #tpu.memory_space<vmem>>, vector<32x256xf32>
      tpu.vector_store %arg18[%c0_67, %c0_68], %153 {strides = array<i32>} : memref<32x256xf32, #tpu.memory_space<vmem>>, vector<32x256xf32>,
      %155 = vector.shape_cast %153 : vector<32x256xf32> to vector<2x16x256xf32>
      %cst_69 = arith.constant dense<0.000000e+00> : vector<2x256xf32>
      %156 = vector.multi_reduction <add>, %155, %cst_69 [1] : vector<2x16x256xf32> to vector<2x256xf32>
      %cst_70 = arith.constant 1.600000e+01 : f32
      %157 = vector.broadcast %cst_70 : f32 to vector<2x256xf32>
      %158 = arith.divf %156, %157 : vector<2x256xf32>
      %159 = arith.truncf %158 : vector<2x256xf32> to vector<2x256xbf16>
      %c0_71 = arith.constant 0 : index
      %c0_72 = arith.constant 0 : index
      %160 = vector.load %arg12[%c0_71, %c0_72] : memref<256x384xbf16, #tpu.memory_space<vmem>>, vector<256x384xbf16>
      %cst_73 = arith.constant dense<0.000000e+00> : vector<2x384xf32>
      %161 = tpu.matmul %159, %160, %cst_73 {dimension_numbers = #tpu.dot_dimension_numbers<[1], [0], [0], [1], [0, 0, 1, 1], [], []>} : vector<2x256xbf16>, vector<256x384xbf16>, vector<2x384xf32> -> vector<2x384xf32>
      %c0_74 = arith.constant 0 : index
      %c0_75 = arith.constant 0 : index
      %162 = vector.load %arg13[%c0_74, %c0_75] : memref<1x384xf32, #tpu.memory_space<vmem>>, vector<1x384xf32>
      %163 = vector.broadcast %162 : vector<1x384xf32> to vector<2x384xf32>
      %164 = arith.addf %161, %163 : vector<2x384xf32>
      %165 = vector.extract_strided_slice %164 {offsets = [0, 0], sizes = [2, 256], strides = [1, 1]} : vector<2x384xf32> to vector<2x256xf32>
      %166 = vector.extract_strided_slice %164 {offsets = [0, 256], sizes = [2, 128], strides = [1, 1]} : vector<2x384xf32> to vector<2x128xf32>
      %cst_76 = arith.constant 5.000000e-01 : f32
      %167 = vector.broadcast %cst_76 : f32 to vector<2x128xf32>
      %168 = arith.mulf %167, %166 : vector<2x128xf32>
      %cst_77 = arith.constant 0.707106769 : f32
      %169 = vector.broadcast %cst_77 : f32 to vector<2x128xf32>
      %170 = arith.mulf %166, %169 : vector<2x128xf32>
      %171 = math.absf %170 : vector<2x128xf32>
      %cst_78 = arith.constant 0.327591091 : f32
      %172 = vector.broadcast %cst_78 : f32 to vector<2x128xf32>
      %173 = arith.mulf %172, %171 : vector<2x128xf32>
      %cst_79 = arith.constant 1.000000e+00 : f32
      %174 = vector.broadcast %cst_79 : f32 to vector<2x128xf32>
      %175 = arith.addf %174, %173 : vector<2x128xf32>
      %176 = tpu.reciprocal %175 {approx = true} : vector<2x128xf32> -> vector<2x128xf32>
      %cst_80 = arith.constant 1.06140542 : f32
      %177 = vector.broadcast %cst_80 : f32 to vector<2x128xf32>
      %178 = arith.mulf %177, %176 : vector<2x128xf32>
      %cst_81 = arith.constant -1.45315206 : f32
      %179 = vector.broadcast %cst_81 : f32 to vector<2x128xf32>
      %180 = arith.addf %178, %179 : vector<2x128xf32>
      %181 = arith.mulf %180, %176 : vector<2x128xf32>
      %cst_82 = arith.constant 1.42141378 : f32
      %182 = vector.broadcast %cst_82 : f32 to vector<2x128xf32>
      %183 = arith.addf %181, %182 : vector<2x128xf32>
      %184 = arith.mulf %183, %176 : vector<2x128xf32>
      %cst_83 = arith.constant -0.284496725 : f32
      %185 = vector.broadcast %cst_83 : f32 to vector<2x128xf32>
      %186 = arith.addf %184, %185 : vector<2x128xf32>
      %187 = arith.mulf %186, %176 : vector<2x128xf32>
      %cst_84 = arith.constant 0.254829586 : f32
      %188 = vector.broadcast %cst_84 : f32 to vector<2x128xf32>
      %189 = arith.addf %187, %188 : vector<2x128xf32>
      %190 = arith.mulf %189, %176 : vector<2x128xf32>
      %cst_85 = arith.constant 0.000000e+00 : f32
      %191 = vector.broadcast %cst_85 : f32 to vector<2x128xf32>
      %192 = arith.subf %191, %171 : vector<2x128xf32>
      %193 = arith.mulf %192, %171 : vector<2x128xf32>
      %194 = math.exp %193 : vector<2x128xf32>
      %195 = arith.mulf %190, %194 : vector<2x128xf32>
      %cst_86 = arith.constant 1.000000e+00 : f32
      %196 = vector.broadcast %cst_86 : f32 to vector<2x128xf32>
      %197 = arith.subf %196, %195 : vector<2x128xf32>
      %cst_87 = arith.constant 0.000000e+00 : f32
      %198 = vector.broadcast %cst_87 : f32 to vector<2x128xf32>
      %199 = arith.cmpf oge, %170, %198 : vector<2x128xf32>
      %cst_88 = arith.constant 0.000000e+00 : f32
      %200 = vector.broadcast %cst_88 : f32 to vector<2x128xf32>
      %201 = arith.subf %200, %197 : vector<2x128xf32>
      %202 = arith.select %199, %197, %201 : vector<2x128xi1>, vector<2x128xf32>
      %cst_89 = arith.constant 1.000000e+00 : f32
      %203 = vector.broadcast %cst_89 : f32 to vector<2x128xf32>
      %204 = arith.addf %203, %202 : vector<2x128xf32>
      %205 = arith.mulf %168, %204 : vector<2x128xf32>
      %c0_90 = arith.constant 0 : index
      %c0_91 = arith.constant 0 : index
      %206 = vector.load %arg14[%c0_90, %c0_91] : memref<1x128xf32, #tpu.memory_space<vmem>>, vector<1x128xf32>
      %207 = vector.broadcast %206 : vector<1x128xf32> to vector<2x128xf32>
      %208 = arith.mulf %205, %207 : vector<2x128xf32>
      %cst_92 = arith.constant dense<0.000000e+00> : vector<2xf32>
      %209 = vector.multi_reduction <add>, %208, %cst_92 [1] : vector<2x128xf32> to vector<2xf32>
      %210 = vector.shape_cast %209 : vector<2xf32> to vector<2x1xf32>
      %c0_93 = arith.constant 0 : index
      %c0_94 = arith.constant 0 : index
      %211 = vector.load %arg15[%c0_93, %c0_94] : memref<1x1xf32, #tpu.memory_space<vmem>>, vector<1x1xf32>
      %212 = vector.broadcast %211 : vector<1x1xf32> to vector<2x1xf32>
      %213 = arith.addf %210, %212 : vector<2x1xf32>
      %cst_95 = arith.constant 2.000000e+01 : f32
      %214 = vector.broadcast %cst_95 : f32 to vector<2x1xf32>
      %215 = arith.cmpf ogt, %213, %214 : vector<2x1xf32>
      %cst_96 = arith.constant 2.000000e+01 : f32
      %216 = vector.broadcast %cst_96 : f32 to vector<2x1xf32>
      %217 = arith.minimumf %213, %216 : vector<2x1xf32>
      %218 = math.exp %217 : vector<2x1xf32>
      %cst_97 = arith.constant 1.000000e+00 : f32
      %219 = vector.broadcast %cst_97 : f32 to vector<2x1xf32>
      %220 = arith.addf %219, %218 : vector<2x1xf32>
      %221 = math.log %220 : vector<2x1xf32>
      %222 = arith.select %215, %213, %221 : vector<2x1xi1>, vector<2x1xf32>
      %223 = vector.shape_cast %222 : vector<2x1xf32> to vector<2x1xf32>
      %224 = vector.broadcast %223 : vector<2x1xf32> to vector<2x128xf32>
      %c0_98 = arith.constant 0 : index
      %c0_99 = arith.constant 0 : index
      %225 = vector.load %arg19[%c0_98, %c0_99] : memref<2x128xf32, #tpu.memory_space<vmem>>, vector<2x128xf32>
      tpu.vector_store %arg19[%c0_98, %c0_99], %224 {strides = array<i32>} : memref<2x128xf32, #tpu.memory_space<vmem>>, vector<2x128xf32>,
      %c0_100 = arith.constant 0 : index
      %c0_101 = arith.constant 0 : index
      %226 = vector.load %arg16[%c0_100, %c0_101] : memref<1x256xf32, #tpu.memory_space<vmem>>, vector<1x256xf32>
      %c0_102 = arith.constant 0 : index
      %c0_103 = arith.constant 0 : index
      %227 = vector.load %arg17[%c0_102, %c0_103] : memref<1x256xf32, #tpu.memory_space<vmem>>, vector<1x256xf32>
      %cst_104 = arith.constant dense<0.000000e+00> : vector<2xf32>
      %228 = vector.multi_reduction <add>, %165, %cst_104 [1] : vector<2x256xf32> to vector<2xf32>
      %229 = vector.shape_cast %228 : vector<2xf32> to vector<2x1xf32>
      %cst_105 = arith.constant 2.560000e+02 : f32
      %230 = vector.broadcast %cst_105 : f32 to vector<2x1xf32>
      %231 = arith.divf %229, %230 : vector<2x1xf32>
      %232 = vector.broadcast %231 : vector<2x1xf32> to vector<2x256xf32>
      %233 = arith.subf %165, %232 : vector<2x256xf32>
      %234 = arith.mulf %233, %233 : vector<2x256xf32>
      %cst_106 = arith.constant dense<0.000000e+00> : vector<2xf32>
      %235 = vector.multi_reduction <add>, %234, %cst_106 [1] : vector<2x256xf32> to vector<2xf32>
      %236 = vector.shape_cast %235 : vector<2xf32> to vector<2x1xf32>
      %cst_107 = arith.constant 2.560000e+02 : f32
      %237 = vector.broadcast %cst_107 : f32 to vector<2x1xf32>
      %238 = arith.divf %236, %237 : vector<2x1xf32>
      %cst_108 = arith.constant 9.99999974E-6 : f32
      %239 = vector.broadcast %cst_108 : f32 to vector<2x1xf32>
      %240 = arith.addf %238, %239 : vector<2x1xf32>
      %241 = math.rsqrt %240 : vector<2x1xf32>
      %242 = vector.broadcast %241 : vector<2x1xf32> to vector<2x256xf32>
      %243 = arith.mulf %233, %242 : vector<2x256xf32>
      %244 = vector.broadcast %226 : vector<1x256xf32> to vector<2x256xf32>
      %245 = arith.mulf %243, %244 : vector<2x256xf32>
      %246 = vector.broadcast %227 : vector<1x256xf32> to vector<2x256xf32>
      %247 = arith.addf %245, %246 : vector<2x256xf32>
      %cst_109 = arith.constant 5.000000e-01 : f32
      %248 = vector.broadcast %cst_109 : f32 to vector<2x256xf32>
      %249 = arith.mulf %248, %247 : vector<2x256xf32>
      %cst_110 = arith.constant 0.707106769 : f32
      %250 = vector.broadcast %cst_110 : f32 to vector<2x256xf32>
      %251 = arith.mulf %247, %250 : vector<2x256xf32>
      %252 = math.absf %251 : vector<2x256xf32>
      %cst_111 = arith.constant 0.327591091 : f32
      %253 = vector.broadcast %cst_111 : f32 to vector<2x256xf32>
      %254 = arith.mulf %253, %252 : vector<2x256xf32>
      %cst_112 = arith.constant 1.000000e+00 : f32
      %255 = vector.broadcast %cst_112 : f32 to vector<2x256xf32>
      %256 = arith.addf %255, %254 : vector<2x256xf32>
      %257 = tpu.reciprocal %256 {approx = true} : vector<2x256xf32> -> vector<2x256xf32>
      %cst_113 = arith.constant 1.06140542 : f32
      %258 = vector.broadcast %cst_113 : f32 to vector<2x256xf32>
      %259 = arith.mulf %258, %257 : vector<2x256xf32>
      %cst_114 = arith.constant -1.45315206 : f32
      %260 = vector.broadcast %cst_114 : f32 to vector<2x256xf32>
      %261 = arith.addf %259, %260 : vector<2x256xf32>
      %262 = arith.mulf %261, %257 : vector<2x256xf32>
      %cst_115 = arith.constant 1.42141378 : f32
      %263 = vector.broadcast %cst_115 : f32 to vector<2x256xf32>
      %264 = arith.addf %262, %263 : vector<2x256xf32>
      %265 = arith.mulf %264, %257 : vector<2x256xf32>
      %cst_116 = arith.constant -0.284496725 : f32
      %266 = vector.broadcast %cst_116 : f32 to vector<2x256xf32>
      %267 = arith.addf %265, %266 : vector<2x256xf32>
      %268 = arith.mulf %267, %257 : vector<2x256xf32>
      %cst_117 = arith.constant 0.254829586 : f32
      %269 = vector.broadcast %cst_117 : f32 to vector<2x256xf32>
      %270 = arith.addf %268, %269 : vector<2x256xf32>
      %271 = arith.mulf %270, %257 : vector<2x256xf32>
      %cst_118 = arith.constant 0.000000e+00 : f32
      %272 = vector.broadcast %cst_118 : f32 to vector<2x256xf32>
      %273 = arith.subf %272, %252 : vector<2x256xf32>
      %274 = arith.mulf %273, %252 : vector<2x256xf32>
      %275 = math.exp %274 : vector<2x256xf32>
      %276 = arith.mulf %271, %275 : vector<2x256xf32>
      %cst_119 = arith.constant 1.000000e+00 : f32
      %277 = vector.broadcast %cst_119 : f32 to vector<2x256xf32>
      %278 = arith.subf %277, %276 : vector<2x256xf32>
      %cst_120 = arith.constant 0.000000e+00 : f32
      %279 = vector.broadcast %cst_120 : f32 to vector<2x256xf32>
      %280 = arith.cmpf oge, %251, %279 : vector<2x256xf32>
      %cst_121 = arith.constant 0.000000e+00 : f32
      %281 = vector.broadcast %cst_121 : f32 to vector<2x256xf32>
      %282 = arith.subf %281, %278 : vector<2x256xf32>
      %283 = arith.select %280, %278, %282 : vector<2x256xi1>, vector<2x256xf32>
      %cst_122 = arith.constant 1.000000e+00 : f32
      %284 = vector.broadcast %cst_122 : f32 to vector<2x256xf32>
      %285 = arith.addf %284, %283 : vector<2x256xf32>
      %286 = arith.mulf %249, %285 : vector<2x256xf32>
      %c0_123 = arith.constant 0 : index
      %c0_124 = arith.constant 0 : index
      %287 = vector.load %arg20[%c0_123, %c0_124] : memref<2x256xf32, #tpu.memory_space<vmem>>, vector<2x256xf32>
      tpu.vector_store %arg20[%c0_123, %c0_124], %286 {strides = array<i32>} : memref<2x256xf32, #tpu.memory_space<vmem>>, vector<2x256xf32>,
    } else {
    }
    return
  }
  func.func @transform_0(%arg0: i32) -> (i32, i32) {
    %c0_i32 = arith.constant 0 : i32
    %c0_i32_0 = arith.constant 0 : i32
    %c0_i32_1 = arith.constant 0 : i32
    return %c0_i32, %c0_i32_0 : i32, i32
  }
  func.func @transform_1(%arg0: i32) -> (i32, i32, i32) {
    %c0_i32 = arith.constant 0 : i32
    %c0_i32_0 = arith.constant 0 : i32
    %c0_i32_1 = arith.constant 0 : i32
    return %arg0, %c0_i32, %c0_i32_0 : i32, i32, i32
  }
  func.func @transform_2(%arg0: i32) -> (i32, i32, i32) {
    %c0_i32 = arith.constant 0 : i32
    %c0_i32_0 = arith.constant 0 : i32
    %c0_i32_1 = arith.constant 0 : i32
    return %arg0, %c0_i32, %c0_i32_0 : i32, i32, i32
  }
  func.func @transform_3(%arg0: i32) -> (i32, i32, i32) {
    %c0_i32 = arith.constant 0 : i32
    %c0_i32_0 = arith.constant 0 : i32
    %c0_i32_1 = arith.constant 0 : i32
    return %arg0, %c0_i32, %c0_i32_0 : i32, i32, i32
  }
  func.func @transform_4(%arg0: i32) -> (i32, i32, i32) {
    %c0_i32 = arith.constant 0 : i32
    %c0_i32_0 = arith.constant 0 : i32
    %c0_i32_1 = arith.constant 0 : i32
    return %arg0, %c0_i32, %c0_i32_0 : i32, i32, i32
  }
  func.func @transform_5(%arg0: i32) -> (i32, i32, i32) {
    %c0_i32 = arith.constant 0 : i32
    %c0_i32_0 = arith.constant 0 : i32
    %c0_i32_1 = arith.constant 0 : i32
    return %arg0, %c0_i32, %c0_i32_0 : i32, i32, i32
  }
  func.func @transform_6(%arg0: i32) -> (i32, i32, i32) {
    %c0_i32 = arith.constant 0 : i32
    %c0_i32_0 = arith.constant 0 : i32
    %c0_i32_1 = arith.constant 0 : i32
    return %arg0, %c0_i32, %c0_i32_0 : i32, i32, i32
  }
  func.func @transform_7(%arg0: i32) -> (i32, i32, i32) {
    %c0_i32 = arith.constant 0 : i32
    %c0_i32_0 = arith.constant 0 : i32
    %c0_i32_1 = arith.constant 0 : i32
    return %arg0, %c0_i32, %c0_i32_0 : i32, i32, i32
  }
  func.func @transform_8(%arg0: i32) -> (i32, i32, i32) {
    %c0_i32 = arith.constant 0 : i32
    %c0_i32_0 = arith.constant 0 : i32
    %c0_i32_1 = arith.constant 0 : i32
    return %arg0, %c0_i32, %c0_i32_0 : i32, i32, i32
  }
  func.func @transform_9(%arg0: i32) -> (i32, i32) {
    %c0_i32 = arith.constant 0 : i32
    %c0_i32_0 = arith.constant 0 : i32
    %c0_i32_1 = arith.constant 0 : i32
    return %c0_i32, %c0_i32_0 : i32, i32
  }
  func.func @transform_10(%arg0: i32) -> (i32, i32) {
    %c0_i32 = arith.constant 0 : i32
    %c0_i32_0 = arith.constant 0 : i32
    %c0_i32_1 = arith.constant 0 : i32
    return %c0_i32, %c0_i32_0 : i32, i32
  }
  func.func @transform_11(%arg0: i32) -> (i32, i32) {
    %c0_i32 = arith.constant 0 : i32
    %c0_i32_0 = arith.constant 0 : i32
    %c0_i32_1 = arith.constant 0 : i32
    return %c0_i32, %c0_i32_0 : i32, i32
  }
  func.func @transform_12(%arg0: i32) -> (i32, i32) {
    %c0_i32 = arith.constant 0 : i32
    %c0_i32_0 = arith.constant 0 : i32
    %c0_i32_1 = arith.constant 0 : i32
    return %c0_i32, %c0_i32_0 : i32, i32
  }
  func.func @transform_13(%arg0: i32) -> (i32, i32) {
    %c0_i32 = arith.constant 0 : i32
    %c0_i32_0 = arith.constant 0 : i32
    %c0_i32_1 = arith.constant 0 : i32
    return %c0_i32, %c0_i32_0 : i32, i32
  }
  func.func @transform_14(%arg0: i32) -> (i32, i32) {
    %c0_i32 = arith.constant 0 : i32
    %c0_i32_0 = arith.constant 0 : i32
    %c0_i32_1 = arith.constant 0 : i32
    return %c0_i32, %c0_i32_0 : i32, i32
  }
  func.func @transform_15(%arg0: i32) -> (i32, i32) {
    %c0_i32 = arith.constant 0 : i32
    %c0_i32_0 = arith.constant 0 : i32
    %c0_i32_1 = arith.constant 0 : i32
    return %c0_i32, %c0_i32_0 : i32, i32
  }
  func.func @transform_16(%arg0: i32) -> (i32, i32) {
    %c0_i32 = arith.constant 0 : i32
    %c0_i32_0 = arith.constant 0 : i32
    %c0_i32_1 = arith.constant 0 : i32
    return %c0_i32, %c0_i32_0 : i32, i32
  }
  func.func @transform_17(%arg0: i32) -> (i32, i32) {
    %c0_i32 = arith.constant 0 : i32
    %c0_i32_0 = arith.constant 0 : i32
    %c0_i32_1 = arith.constant 0 : i32
    return %c0_i32, %c0_i32_0 : i32, i32
  }
  func.func @transform_18(%arg0: i32) -> (i32, i32) {
    %c0_i32 = arith.constant 0 : i32
    %c0_i32_0 = arith.constant 0 : i32
    %c0_i32_1 = arith.constant 0 : i32
    return %c0_i32, %c0_i32_0 : i32, i32
  }
  func.func @transform_19(%arg0: i32) -> (i32, i32) {
    %c0_i32 = arith.constant 0 : i32
    %c0_i32_0 = arith.constant 0 : i32
    %c0_i32_1 = arith.constant 0 : i32
    return %c0_i32, %c0_i32_0 : i32, i32
  }
}

</mosaic_0001>

<llo_original>
// kernel: smart_refinement_forward.1
$region0: #{smart_refinement_forward.1}
  #allocation0 [shape = 'u32[]', space=smem, size = 0x4, offset = 0x4, fixed_abs, tag = 'smem constant byte address 0x4 - core index']
  #allocation1 [shape = 'u32[144,128]{1,0:T(1,128)}', space=vmem, size = 0x12000, scoped, tag = 'internal scratch']
  #allocation2 [shape = 'f32[32,256]{1,0:T(8,128)}', space=vmem, size = 0x8000, scoped, tag = 'scratch operand']
  #allocation3 [shape = 'f32[1,1]{1,0:T(1,128)S(1)}', space=vmem, size = 0x200, scoped, tag = 'scoped memory for smart_refinement_forward.1']
  %s0 = inlined_call_operand.vmem [shape: f32[32,256], index: 0, kind: input, shape index: {}]
  %s1 = inlined_call_operand.vmem [shape: f32[2,1,256], index: 1, kind: input, shape index: {}]
  %s2 = inlined_call_operand.vmem [shape: f32[2,1,256], index: 2, kind: input, shape index: {}]
  %s3 = inlined_call_operand.vmem [shape: bf16[2,256,768], index: 3, kind: input, shape index: {}]
  %s4 = inlined_call_operand.vmem [shape: f32[2,3,384], index: 4, kind: input, shape index: {}]
  %s5 = inlined_call_operand.hbm [shape: bf16[2,384,384], index: 5, kind: input, shape index: {}]
  %s6 = inlined_call_operand.vmem [shape: f32[2,1,384], index: 6, kind: input, shape index: {}]
  %s7 = inlined_call_operand.hbm [shape: bf16[2,384,256], index: 7, kind: input, shape index: {}]
  %s8 = inlined_call_operand.vmem [shape: f32[2,1,256], index: 8, kind: input, shape index: {}]
  %s9 = inlined_call_operand.vmem [shape: f32[1,256], index: 9, kind: input, shape index: {}]
  %s10 = inlined_call_operand.vmem [shape: f32[1,256], index: 10, kind: input, shape index: {}]
  %s11 = inlined_call_operand.vmem [shape: bf16[256,384], index: 11, kind: input, shape index: {}]
  %s12 = inlined_call_operand.vmem [shape: f32[1,384], index: 12, kind: input, shape index: {}]
  %s13 = inlined_call_operand.vmem [shape: f32[1,128], index: 13, kind: input, shape index: {}]
  %s14 = inlined_call_operand.<no memory space> [shape: f32[1,1], index: 14, kind: input, shape index: {}]
  %s15 = inlined_call_operand.vmem [shape: f32[1,256], index: 15, kind: input, shape index: {}]
  %s16 = inlined_call_operand.vmem [shape: f32[1,256], index: 16, kind: input, shape index: {}]
  %s17 = inlined_call_operand.hbm [shape: f32[32,256], index: 17, kind: output, shape index: {0}]
  %s18 = inlined_call_operand.vmem [shape: f32[2,128], index: 18, kind: output, shape index: {1}]
  %s19 = inlined_call_operand.hbm [shape: f32[2,256], index: 19, kind: output, shape index: {2}]
  %20 = xla_tuple %s17, %s18, %s19
  %s21 = sld [smem:[#allocation0]]
  $region133: #{smart_refinement_forward.1} parent=0
    _
  %s23 = ssub.s32 1, %s21
  %s24 = scalar_select 0, %s23, %s21
  %v25 = vstv %s14
  %26 = vst [vmem:[#allocation3] sm:$0x1] %v25
  $region1: #{smart_refinement_forward.1} parent=0
    #allocation4 [shape = 'u8[589824]{0}', space=vmem, size = 0x90000, scoped, tag = 'input window, operand 5']
    #allocation5 [shape = 's32[2]{0}', space=sflag, size = 0x8, scoped, tag = 'scoped memory for smart_refinement_forward.1']
    #allocation6 [shape = 's32[2]{0}', space=sflag, size = 0x8, scoped, tag = 'scoped memory for smart_refinement_forward.1']
    #allocation7 [shape = 'u8[393216]{0}', space=vmem, size = 0x60000, scoped, tag = 'input window, operand 7']
    #allocation8 [shape = 's32[2]{0}', space=sflag, size = 0x8, scoped, tag = 'scoped memory for smart_refinement_forward.1']
    #allocation9 [shape = 'u8[32768]{0}', space=vmem, size = 0x8000, scoped, tag = 'output window, operand 0, single buffered']
    #allocation10 [shape = 'u8[2048]{0}', space=vmem, size = 0x800, scoped, tag = 'output window, operand 2, single buffered']
    #allocation11 [shape = 's32[1]{0}', space=sflag, size = 0x4, scoped, tag = 'scoped memory for smart_refinement_forward.1']
    %27 = vsyncpa [#allocation5], 0
    %s28 = scalar_lea.sflag [#allocation5], 1
    %29 = vsyncpa %s28, 0
    %30 = vsyncpa [#allocation8], 0
    %s31 = scalar_lea.sflag [#allocation8], 1
    %32 = vsyncpa %s31, 0
    %33 = vsyncpa [#allocation6], 0
    %34 = vsyncpa [#allocation11], 0
    loop: start=0, step=1, limit=4
    $region2: #{smart_refinement_forward.1} parent=1 // loop_pre_header
      _
    $region3: #{smart_refinement_forward.1} parent=1 // loop_header
      %s36 = sphi 0, %s40
      %p37 = scmp.ge.s32.totalorder %s36, 4
      %s44 = sphi 0, %s44
      %s46 = sphi 0, %s44
      %s47 = sphi 0, %s46
      %s61 = sphi 0, %s47
      %s67 = sphi 0, %s69
      %s70 = sphi 0, %s67
      %s71 = sphi 0, %s70
      %s87 = sphi 0, %s71
      %s93 = sphi 0, %s95
      %s96 = sphi 0, %s93
      %s97 = sphi 0, %s96
      %s113 = sphi 0, %s97
      %s119 = sphi 0, %s121
      %s122 = sphi 0, %s119
      %s123 = sphi 0, %s122
      %s139 = sphi 0, %s123
      %s145 = sphi 0, %s147
      %s148 = sphi 0, %s145
      %s149 = sphi 0, %s148
      %s165 = sphi 0, %s149
      %s171 = sphi 0, %s173
      %s174 = sphi 0, %s171
      %s175 = sphi 0, %s174
      %s191 = sphi 0, %s175
      %s197 = sphi 0, %s199
      %s200 = sphi 0, %s197
      %s201 = sphi 0, %s200
      %s217 = sphi 0, %s201
      %s223 = sphi 0, %s225
      %s226 = sphi 0, %s223
      %s227 = sphi 0, %s226
      %s243 = sphi 0, %s227
      %s249 = sphi 0, %s251
      %s252 = sphi 0, %s249
      %s253 = sphi 0, %s252
      %s269 = sphi 0, %s253
      %s273 = sphi 0, %s273
      %s275 = sphi 0, %s273
      %s276 = sphi 0, %s275
      %s290 = sphi 0, %s276
      %s294 = sphi 0, %s294
      %s296 = sphi 0, %s294
      %s297 = sphi 0, %s296
      %s311 = sphi 0, %s297
      %s315 = sphi 0, %s315
      %s317 = sphi 0, %s315
      %s318 = sphi 0, %s317
      %s332 = sphi 0, %s318
      %s336 = sphi 0, %s336
      %s338 = sphi 0, %s336
      %s339 = sphi 0, %s338
      %s353 = sphi 0, %s339
      %s357 = sphi 0, %s357
      %s359 = sphi 0, %s357
      %s360 = sphi 0, %s359
      %s374 = sphi 0, %s360
      %s378 = sphi 0, %s378
      %s380 = sphi 0, %s378
      %s381 = sphi 0, %s380
      %s395 = sphi 0, %s381
      %s399 = sphi 0, %s399
      %s401 = sphi 0, %s399
      %s402 = sphi 0, %s401
      %s416 = sphi 0, %s402
      %s420 = sphi 0, %s420
      %s422 = sphi 0, %s420
      %s423 = sphi 0, %s422
      %s437 = sphi 0, %s423
      %s441 = sphi 0, %s441
      %s443 = sphi 0, %s441
      %s444 = sphi 0, %s443
      %s458 = sphi 0, %s444
      %s462 = sphi 0, %s462
      %s464 = sphi 0, %s462
      %s465 = sphi 0, %s464
      %s479 = sphi 0, %s465
      %s483 = sphi 0, %s483
      %s485 = sphi 0, %s483
      %s486 = sphi 0, %s485
      %s500 = sphi 0, %s486
    $region4: #{smart_refinement_forward.1} parent=1 // loop_header_branch
      %39 = sbr.rel (%p37) target = $region8
    $region5: #{smart_refinement_forward.1} parent=1 // loop_body
      %s41 = ssub.s32 %s36, 1
      %s42 = ssub.s32 %s36, 2
      %s43 = sadd.s32 %s36, 1
      %s45 = sadd.s32 %s44, 1
      %p48 = scmp.eq.s32.totalorder %s36, 1
      %p49 = scmp.ne.s32.totalorder %s44, %s46
      %p50 = scmp.eq.s32.totalorder %s36, 0
      %p51 = por %p49, %p50
      %p52 = scmp.ne.s32.totalorder %s44, %s46
      %p53 = scmp.eq.s32.totalorder %s41, 1
      %p54 = por %p52, %p53
      %p55 = scmp.ne.s32.totalorder %s46, %s47
      %p56 = scmp.eq.s32.totalorder %s41, 0
      %p57 = por %p55, %p56
      %p58 = scmp.ne.s32.totalorder %s46, %s47
      %p59 = scmp.eq.s32.totalorder %s42, 1
      %p60 = por %p58, %p59
      %p62 = scmp.ne.s32.totalorder %s47, %s61
      %p63 = scmp.eq.s32.totalorder %s42, 0
      %p64 = por %p62, %p63
      %s65 = ssub.s32 %s36, %s43
      %p66 = scmp.eq.s32.totalorder %s65, 0
      %s68 = sadd.s32 %s67, 1
      %s69 = scalar_select %p66, %s67, %s68
      %p72 = pneg %p66
      %p73 = scmp.eq.s32.totalorder %s36, 1
      %p74 = por %p72, %p73
      %p75 = scmp.ne.s32.totalorder %s67, %s70
      %p76 = scmp.eq.s32.totalorder %s36, 0
      %p77 = por %p75, %p76
      %p78 = scmp.ne.s32.totalorder %s67, %s70
      %p79 = scmp.eq.s32.totalorder %s41, 1
      %p80 = por %p78, %p79
      %p81 = scmp.ne.s32.totalorder %s70, %s71
      %p82 = scmp.eq.s32.totalorder %s41, 0
      %p83 = por %p81, %p82
      %p84 = scmp.ne.s32.totalorder %s70, %s71
      %p85 = scmp.eq.s32.totalorder %s42, 1
      %p86 = por %p84, %p85
      %p88 = scmp.ne.s32.totalorder %s71, %s87
      %p89 = scmp.eq.s32.totalorder %s42, 0
      %p90 = por %p88, %p89
      %s91 = ssub.s32 %s36, %s43
      %p92 = scmp.eq.s32.totalorder %s91, 0
      %s94 = sadd.s32 %s93, 1
      %s95 = scalar_select %p92, %s93, %s94
      %p98 = pneg %p92
      %p99 = scmp.eq.s32.totalorder %s36, 1
      %p100 = por %p98, %p99
      %p101 = scmp.ne.s32.totalorder %s93, %s96
      %p102 = scmp.eq.s32.totalorder %s36, 0
      %p103 = por %p101, %p102
      %p104 = scmp.ne.s32.totalorder %s93, %s96
      %p105 = scmp.eq.s32.totalorder %s41, 1
      %p106 = por %p104, %p105
      %p107 = scmp.ne.s32.totalorder %s96, %s97
      %p108 = scmp.eq.s32.totalorder %s41, 0
      %p109 = por %p107, %p108
      %p110 = scmp.ne.s32.totalorder %s96, %s97
      %p111 = scmp.eq.s32.totalorder %s42, 1
      %p112 = por %p110, %p111
      %p114 = scmp.ne.s32.totalorder %s97, %s113
      %p115 = scmp.eq.s32.totalorder %s42, 0
      %p116 = por %p114, %p115
      %s117 = ssub.s32 %s36, %s43
      %p118 = scmp.eq.s32.totalorder %s117, 0
      %s120 = sadd.s32 %s119, 1
      %s121 = scalar_select %p118, %s119, %s120
      %p124 = pneg %p118
      %p125 = scmp.eq.s32.totalorder %s36, 1
      %p126 = por %p124, %p125
      %p127 = scmp.ne.s32.totalorder %s119, %s122
      %p128 = scmp.eq.s32.totalorder %s36, 0
      %p129 = por %p127, %p128
      %p130 = scmp.ne.s32.totalorder %s119, %s122
      %p131 = scmp.eq.s32.totalorder %s41, 1
      %p132 = por %p130, %p131
      %p133 = scmp.ne.s32.totalorder %s122, %s123
      %p134 = scmp.eq.s32.totalorder %s41, 0
      %p135 = por %p133, %p134
      %p136 = scmp.ne.s32.totalorder %s122, %s123
      %p137 = scmp.eq.s32.totalorder %s42, 1
      %p138 = por %p136, %p137
      %p140 = scmp.ne.s32.totalorder %s123, %s139
      %p141 = scmp.eq.s32.totalorder %s42, 0
      %p142 = por %p140, %p141
      %s143 = ssub.s32 %s36, %s43
      %p144 = scmp.eq.s32.totalorder %s143, 0
      %s146 = sadd.s32 %s145, 1
      %s147 = scalar_select %p144, %s145, %s146
      %p150 = pneg %p144
      %p151 = scmp.eq.s32.totalorder %s36, 1
      %p152 = por %p150, %p151
      %p153 = scmp.ne.s32.totalorder %s145, %s148
      %p154 = scmp.eq.s32.totalorder %s36, 0
      %p155 = por %p153, %p154
      %p156 = scmp.ne.s32.totalorder %s145, %s148
      %p157 = scmp.eq.s32.totalorder %s41, 1
      %p158 = por %p156, %p157
      %p159 = scmp.ne.s32.totalorder %s148, %s149
      %p160 = scmp.eq.s32.totalorder %s41, 0
      %p161 = por %p159, %p160
      %p162 = scmp.ne.s32.totalorder %s148, %s149
      %p163 = scmp.eq.s32.totalorder %s42, 1
      %p164 = por %p162, %p163
      %p166 = scmp.ne.s32.totalorder %s149, %s165
      %p167 = scmp.eq.s32.totalorder %s42, 0
      %p168 = por %p166, %p167
      %s169 = ssub.s32 %s36, %s43
      %p170 = scmp.eq.s32.totalorder %s169, 0
      %s172 = sadd.s32 %s171, 1
      %s173 = scalar_select %p170, %s171, %s172
      %p176 = pneg %p170
      %p177 = scmp.eq.s32.totalorder %s36, 1
      %p178 = por %p176, %p177
      %p179 = scmp.ne.s32.totalorder %s171, %s174
      %p180 = scmp.eq.s32.totalorder %s36, 0
      %p181 = por %p179, %p180
      %p182 = scmp.ne.s32.totalorder %s171, %s174
      %p183 = scmp.eq.s32.totalorder %s41, 1
      %p184 = por %p182, %p183
      %p185 = scmp.ne.s32.totalorder %s174, %s175
      %p186 = scmp.eq.s32.totalorder %s41, 0
      %p187 = por %p185, %p186
      %p188 = scmp.ne.s32.totalorder %s174, %s175
      %p189 = scmp.eq.s32.totalorder %s42, 1
      %p190 = por %p188, %p189
      %p192 = scmp.ne.s32.totalorder %s175, %s191
      %p193 = scmp.eq.s32.totalorder %s42, 0
      %p194 = por %p192, %p193
      %s195 = ssub.s32 %s36, %s43
      %p196 = scmp.eq.s32.totalorder %s195, 0
      %s198 = sadd.s32 %s197, 1
      %s199 = scalar_select %p196, %s197, %s198
      %p202 = pneg %p196
      %p203 = scmp.eq.s32.totalorder %s36, 1
      %p204 = por %p202, %p203
      %p205 = scmp.ne.s32.totalorder %s197, %s200
      %p206 = scmp.eq.s32.totalorder %s36, 0
      %p207 = por %p205, %p206
      %p208 = scmp.ne.s32.totalorder %s197, %s200
      %p209 = scmp.eq.s32.totalorder %s41, 1
      %p210 = por %p208, %p209
      %p211 = scmp.ne.s32.totalorder %s200, %s201
      %p212 = scmp.eq.s32.totalorder %s41, 0
      %p213 = por %p211, %p212
      %p214 = scmp.ne.s32.totalorder %s200, %s201
      %p215 = scmp.eq.s32.totalorder %s42, 1
      %p216 = por %p214, %p215
      %p218 = scmp.ne.s32.totalorder %s201, %s217
      %p219 = scmp.eq.s32.totalorder %s42, 0
      %p220 = por %p218, %p219
      %s221 = ssub.s32 %s36, %s43
      %p222 = scmp.eq.s32.totalorder %s221, 0
      %s224 = sadd.s32 %s223, 1
      %s225 = scalar_select %p222, %s223, %s224
      %p228 = pneg %p222
      %p229 = scmp.eq.s32.totalorder %s36, 1
      %p230 = por %p228, %p229
      %p231 = scmp.ne.s32.totalorder %s223, %s226
      %p232 = scmp.eq.s32.totalorder %s36, 0
      %p233 = por %p231, %p232
      %p234 = scmp.ne.s32.totalorder %s223, %s226
      %p235 = scmp.eq.s32.totalorder %s41, 1
      %p236 = por %p234, %p235
      %p237 = scmp.ne.s32.totalorder %s226, %s227
      %p238 = scmp.eq.s32.totalorder %s41, 0
      %p239 = por %p237, %p238
      %p240 = scmp.ne.s32.totalorder %s226, %s227
      %p241 = scmp.eq.s32.totalorder %s42, 1
      %p242 = por %p240, %p241
      %p244 = scmp.ne.s32.totalorder %s227, %s243
      %p245 = scmp.eq.s32.totalorder %s42, 0
      %p246 = por %p244, %p245
      %s247 = ssub.s32 %s36, %s43
      %p248 = scmp.eq.s32.totalorder %s247, 0
      %s250 = sadd.s32 %s249, 1
      %s251 = scalar_select %p248, %s249, %s250
      %p254 = pneg %p248
      %p255 = scmp.eq.s32.totalorder %s36, 1
      %p256 = por %p254, %p255
      %p257 = scmp.ne.s32.totalorder %s249, %s252
      %p258 = scmp.eq.s32.totalorder %s36, 0
      %p259 = por %p257, %p258
      %p260 = scmp.ne.s32.totalorder %s249, %s252
      %p261 = scmp.eq.s32.totalorder %s41, 1
      %p262 = por %p260, %p261
      %p263 = scmp.ne.s32.totalorder %s252, %s253
      %p264 = scmp.eq.s32.totalorder %s41, 0
      %p265 = por %p263, %p264
      %p266 = scmp.ne.s32.totalorder %s252, %s253
      %p267 = scmp.eq.s32.totalorder %s42, 1
      %p268 = por %p266, %p267
      %p270 = scmp.ne.s32.totalorder %s253, %s269
      %p271 = scmp.eq.s32.totalorder %s42, 0
      %p272 = por %p270, %p271
      %s274 = sadd.s32 %s273, 1
      %p277 = scmp.eq.s32.totalorder %s36, 1
      %p278 = scmp.ne.s32.totalorder %s273, %s275
      %p279 = scmp.eq.s32.totalorder %s36, 0
      %p280 = por %p278, %p279
      %p281 = scmp.ne.s32.totalorder %s273, %s275
      %p282 = scmp.eq.s32.totalorder %s41, 1
      %p283 = por %p281, %p282
      %p284 = scmp.ne.s32.totalorder %s275, %s276
      %p285 = scmp.eq.s32.totalorder %s41, 0
      %p286 = por %p284, %p285
      %p287 = scmp.ne.s32.totalorder %s275, %s276
      %p288 = scmp.eq.s32.totalorder %s42, 1
      %p289 = por %p287, %p288
      %p291 = scmp.ne.s32.totalorder %s276, %s290
      %p292 = scmp.eq.s32.totalorder %s42, 0
      %p293 = por %p291, %p292
      %s295 = sadd.s32 %s294, 1
      %p298 = scmp.eq.s32.totalorder %s36, 1
      %p299 = scmp.ne.s32.totalorder %s294, %s296
      %p300 = scmp.eq.s32.totalorder %s36, 0
      %p301 = por %p299, %p300
      %p302 = scmp.ne.s32.totalorder %s294, %s296
      %p303 = scmp.eq.s32.totalorder %s41, 1
      %p304 = por %p302, %p303
      %p305 = scmp.ne.s32.totalorder %s296, %s297
      %p306 = scmp.eq.s32.totalorder %s41, 0
      %p307 = por %p305, %p306
      %p308 = scmp.ne.s32.totalorder %s296, %s297
      %p309 = scmp.eq.s32.totalorder %s42, 1
      %p310 = por %p308, %p309
      %p312 = scmp.ne.s32.totalorder %s297, %s311
      %p313 = scmp.eq.s32.totalorder %s42, 0
      %p314 = por %p312, %p313
      %s316 = sadd.s32 %s315, 1
      %p319 = scmp.eq.s32.totalorder %s36, 1
      %p320 = scmp.ne.s32.totalorder %s315, %s317
      %p321 = scmp.eq.s32.totalorder %s36, 0
      %p322 = por %p320, %p321
      %p323 = scmp.ne.s32.totalorder %s315, %s317
      %p324 = scmp.eq.s32.totalorder %s41, 1
      %p325 = por %p323, %p324
      %p326 = scmp.ne.s32.totalorder %s317, %s318
      %p327 = scmp.eq.s32.totalorder %s41, 0
      %p328 = por %p326, %p327
      %p329 = scmp.ne.s32.totalorder %s317, %s318
      %p330 = scmp.eq.s32.totalorder %s42, 1
      %p331 = por %p329, %p330
      %p333 = scmp.ne.s32.totalorder %s318, %s332
      %p334 = scmp.eq.s32.totalorder %s42, 0
      %p335 = por %p333, %p334
      %s337 = sadd.s32 %s336, 1
      %p340 = scmp.eq.s32.totalorder %s36, 1
      %p341 = scmp.ne.s32.totalorder %s336, %s338
      %p342 = scmp.eq.s32.totalorder %s36, 0
      %p343 = por %p341, %p342
      %p344 = scmp.ne.s32.totalorder %s336, %s338
      %p345 = scmp.eq.s32.totalorder %s41, 1
      %p346 = por %p344, %p345
      %p347 = scmp.ne.s32.totalorder %s338, %s339
      %p348 = scmp.eq.s32.totalorder %s41, 0
      %p349 = por %p347, %p348
      %p350 = scmp.ne.s32.totalorder %s338, %s339
      %p351 = scmp.eq.s32.totalorder %s42, 1
      %p352 = por %p350, %p351
      %p354 = scmp.ne.s32.totalorder %s339, %s353
      %p355 = scmp.eq.s32.totalorder %s42, 0
      %p356 = por %p354, %p355
      %s358 = sadd.s32 %s357, 1
      %p361 = scmp.eq.s32.totalorder %s36, 1
      %p362 = scmp.ne.s32.totalorder %s357, %s359
      %p363 = scmp.eq.s32.totalorder %s36, 0
      %p364 = por %p362, %p363
      %p365 = scmp.ne.s32.totalorder %s357, %s359
      %p366 = scmp.eq.s32.totalorder %s41, 1
      %p367 = por %p365, %p366
      %p368 = scmp.ne.s32.totalorder %s359, %s360
      %p369 = scmp.eq.s32.totalorder %s41, 0
      %p370 = por %p368, %p369
      %p371 = scmp.ne.s32.totalorder %s359, %s360
      %p372 = scmp.eq.s32.totalorder %s42, 1
      %p373 = por %p371, %p372
      %p375 = scmp.ne.s32.totalorder %s360, %s374
      %p376 = scmp.eq.s32.totalorder %s42, 0
      %p377 = por %p375, %p376
      %s379 = sadd.s32 %s378, 1
      %p382 = scmp.eq.s32.totalorder %s36, 1
      %p383 = scmp.ne.s32.totalorder %s378, %s380
      %p384 = scmp.eq.s32.totalorder %s36, 0
      %p385 = por %p383, %p384
      %p386 = scmp.ne.s32.totalorder %s378, %s380
      %p387 = scmp.eq.s32.totalorder %s41, 1
      %p388 = por %p386, %p387
      %p389 = scmp.ne.s32.totalorder %s380, %s381
      %p390 = scmp.eq.s32.totalorder %s41, 0
      %p391 = por %p389, %p390
      %p392 = scmp.ne.s32.totalorder %s380, %s381
      %p393 = scmp.eq.s32.totalorder %s42, 1
      %p394 = por %p392, %p393
      %p396 = scmp.ne.s32.totalorder %s381, %s395
      %p397 = scmp.eq.s32.totalorder %s42, 0
      %p398 = por %p396, %p397
      %s400 = sadd.s32 %s399, 1
      %p403 = scmp.eq.s32.totalorder %s36, 1
      %p404 = scmp.ne.s32.totalorder %s399, %s401
      %p405 = scmp.eq.s32.totalorder %s36, 0
      %p406 = por %p404, %p405
      %p407 = scmp.ne.s32.totalorder %s399, %s401
      %p408 = scmp.eq.s32.totalorder %s41, 1
      %p409 = por %p407, %p408
      %p410 = scmp.ne.s32.totalorder %s401, %s402
      %p411 = scmp.eq.s32.totalorder %s41, 0
      %p412 = por %p410, %p411
      %p413 = scmp.ne.s32.totalorder %s401, %s402
      %p414 = scmp.eq.s32.totalorder %s42, 1
      %p415 = por %p413, %p414
      %p417 = scmp.ne.s32.totalorder %s402, %s416
      %p418 = scmp.eq.s32.totalorder %s42, 0
      %p419 = por %p417, %p418
      %s421 = sadd.s32 %s420, 1
      %p424 = scmp.eq.s32.totalorder %s36, 1
      %p425 = scmp.ne.s32.totalorder %s420, %s422
      %p426 = scmp.eq.s32.totalorder %s36, 0
      %p427 = por %p425, %p426
      %p428 = scmp.ne.s32.totalorder %s420, %s422
      %p429 = scmp.eq.s32.totalorder %s41, 1
      %p430 = por %p428, %p429
      %p431 = scmp.ne.s32.totalorder %s422, %s423
      %p432 = scmp.eq.s32.totalorder %s41, 0
      %p433 = por %p431, %p432
      %p434 = scmp.ne.s32.totalorder %s422, %s423
      %p435 = scmp.eq.s32.totalorder %s42, 1
      %p436 = por %p434, %p435
      %p438 = scmp.ne.s32.totalorder %s423, %s437
      %p439 = scmp.eq.s32.totalorder %s42, 0
      %p440 = por %p438, %p439
      %s442 = sadd.s32 %s441, 1
      %p445 = scmp.eq.s32.totalorder %s36, 1
      %p446 = scmp.ne.s32.totalorder %s441, %s443
      %p447 = scmp.eq.s32.totalorder %s36, 0
      %p448 = por %p446, %p447
      %p449 = scmp.ne.s32.totalorder %s441, %s443
      %p450 = scmp.eq.s32.totalorder %s41, 1
      %p451 = por %p449, %p450
      %p452 = scmp.ne.s32.totalorder %s443, %s444
      %p453 = scmp.eq.s32.totalorder %s41, 0
      %p454 = por %p452, %p453
      %p455 = scmp.ne.s32.totalorder %s443, %s444
      %p456 = scmp.eq.s32.totalorder %s42, 1
      %p457 = por %p455, %p456
      %p459 = scmp.ne.s32.totalorder %s444, %s458
      %p460 = scmp.eq.s32.totalorder %s42, 0
      %p461 = por %p459, %p460
      %s463 = sadd.s32 %s462, 1
      %p466 = scmp.eq.s32.totalorder %s36, 1
      %p467 = scmp.ne.s32.totalorder %s462, %s464
      %p468 = scmp.eq.s32.totalorder %s36, 0
      %p469 = por %p467, %p468
      %p470 = scmp.ne.s32.totalorder %s462, %s464
      %p471 = scmp.eq.s32.totalorder %s41, 1
      %p472 = por %p470, %p471
      %p473 = scmp.ne.s32.totalorder %s464, %s465
      %p474 = scmp.eq.s32.totalorder %s41, 0
      %p475 = por %p473, %p474
      %p476 = scmp.ne.s32.totalorder %s464, %s465
      %p477 = scmp.eq.s32.totalorder %s42, 1
      %p478 = por %p476, %p477
      %p480 = scmp.ne.s32.totalorder %s465, %s479
      %p481 = scmp.eq.s32.totalorder %s42, 0
      %p482 = por %p480, %p481
      %s484 = sadd.s32 %s483, 1
      %p487 = scmp.eq.s32.totalorder %s36, 1
      %p488 = scmp.ne.s32.totalorder %s483, %s485
      %p489 = scmp.eq.s32.totalorder %s36, 0
      %p490 = por %p488, %p489
      %p491 = scmp.ne.s32.totalorder %s483, %s485
      %p492 = scmp.eq.s32.totalorder %s41, 1
      %p493 = por %p491, %p492
      %p494 = scmp.ne.s32.totalorder %s485, %s486
      %p495 = scmp.eq.s32.totalorder %s41, 0
      %p496 = por %p494, %p495
      %p497 = scmp.ne.s32.totalorder %s485, %s486
      %p498 = scmp.eq.s32.totalorder %s42, 1
      %p499 = por %p497, %p498
      %p501 = scmp.ne.s32.totalorder %s486, %s500
      %p502 = scmp.eq.s32.totalorder %s42, 0
      %p503 = por %p501, %p502
      %p504 = scmp.le.s32.totalorder 1, %s36
      %p505 = scmp.lt.s32.totalorder %s36, 3
      %p506 = pnand %p504, %p505
      %p507 = pneg %p506
      // Predicated region
      $region9: #{smart_refinement_forward.1} parent=5 // pred_check
        _
      $region10: #{smart_refinement_forward.1} parent=5 // pred_check_branch
        %509 = sbr.rel (%p506) target = $region12
      $region11: #{smart_refinement_forward.1} parent=5 // pred_region
        %s510 = ssub.s32 %s36, 1
        // Predicated region
        $region13: #{smart_refinement_forward.1} parent=11 // pred_check
          %p511 = pneg %p57
        $region14: #{smart_refinement_forward.1} parent=11 // pred_check_branch
          %513 = sbr.rel (%p511) target = $region16
        $region15: #{smart_refinement_forward.1} parent=11 // pred_region
          _
        $region16: #{smart_refinement_forward.1} parent=11 // pred_fallthru
          _
        // Predicated region
        $region17: #{smart_refinement_forward.1} parent=11 // pred_check
          %p514 = pneg %p286
        $region18: #{smart_refinement_forward.1} parent=11 // pred_check_branch
          %516 = sbr.rel (%p514) target = $region20
        $region19: #{smart_refinement_forward.1} parent=11 // pred_region
          _
        $region20: #{smart_refinement_forward.1} parent=11 // pred_fallthru
          _
        // Predicated region
        $region21: #{smart_refinement_forward.1} parent=11 // pred_check
          %p517 = pneg %p307
        $region22: #{smart_refinement_forward.1} parent=11 // pred_check_branch
          %519 = sbr.rel (%p517) target = $region24
        $region23: #{smart_refinement_forward.1} parent=11 // pred_region
          _
        $region24: #{smart_refinement_forward.1} parent=11 // pred_fallthru
          _
        // Predicated region
        $region25: #{smart_refinement_forward.1} parent=11 // pred_check
          %p520 = pneg %p328
        $region26: #{smart_refinement_forward.1} parent=11 // pred_check_branch
          %522 = sbr.rel (%p520) target = $region28
        $region27: #{smart_refinement_forward.1} parent=11 // pred_region
          _
        $region28: #{smart_refinement_forward.1} parent=11 // pred_fallthru
          _
        // Predicated region
        $region29: #{smart_refinement_forward.1} parent=11 // pred_check
          %p523 = pneg %p349
        $region30: #{smart_refinement_forward.1} parent=11 // pred_check_branch
          %525 = sbr.rel (%p523) target = $region32
        $region31: #{smart_refinement_forward.1} parent=11 // pred_region
          _
        $region32: #{smart_refinement_forward.1} parent=11 // pred_fallthru
          _
        // Predicated region
        $region33: #{smart_refinement_forward.1} parent=11 // pred_check
          %p526 = pneg %p370
        $region34: #{smart_refinement_forward.1} parent=11 // pred_check_branch
          %528 = sbr.rel (%p526) target = $region36
        $region35: #{smart_refinement_forward.1} parent=11 // pred_region
          _
        $region36: #{smart_refinement_forward.1} parent=11 // pred_fallthru
          _
        // Predicated region
        $region37: #{smart_refinement_forward.1} parent=11 // pred_check
          %p529 = pneg %p391
        $region38: #{smart_refinement_forward.1} parent=11 // pred_check_branch
          %531 = sbr.rel (%p529) target = $region40
        $region39: #{smart_refinement_forward.1} parent=11 // pred_region
          _
        $region40: #{smart_refinement_forward.1} parent=11 // pred_fallthru
          _
        // Predicated region
        $region41: #{smart_refinement_forward.1} parent=11 // pred_check
          %p532 = pneg %p412
        $region42: #{smart_refinement_forward.1} parent=11 // pred_check_branch
          %534 = sbr.rel (%p532) target = $region44
        $region43: #{smart_refinement_forward.1} parent=11 // pred_region
          _
        $region44: #{smart_refinement_forward.1} parent=11 // pred_fallthru
          _
        // Predicated region
        $region45: #{smart_refinement_forward.1} parent=11 // pred_check
          %p535 = pneg %p433
        $region46: #{smart_refinement_forward.1} parent=11 // pred_check_branch
          %537 = sbr.rel (%p535) target = $region48
        $region47: #{smart_refinement_forward.1} parent=11 // pred_region
          _
        $region48: #{smart_refinement_forward.1} parent=11 // pred_fallthru
          _
      $region12: #{smart_refinement_forward.1} parent=5 // pred_fallthru
        _
      %p538 = scmp.lt.s32.totalorder %s36, 2
      // Predicated region
      $region49: #{smart_refinement_forward.1} parent=5 // pred_check
        %p539 = pneg %p538
      $region50: #{smart_refinement_forward.1} parent=5 // pred_check_branch
        %541 = sbr.rel (%p539) target = $region52
      $region51: #{smart_refinement_forward.1} parent=5 // pred_region
        // Predicated region
        $region53: #{smart_refinement_forward.1} parent=51 // pred_check
          %p542 = pneg %p77
        $region54: #{smart_refinement_forward.1} parent=51 // pred_check_branch
          %544 = sbr.rel (%p542) target = $region56
        $region55: #{smart_refinement_forward.1} parent=51 // pred_region
          %p545 = scmp.lt.s32.totalorder %s36, 1
          %s546 = scalar_select %p545, %s36, 1
          %s547 = smul.addr %s546, 2
          %s548 = scalar_lea.vmem %s1, %s547
        $region56: #{smart_refinement_forward.1} parent=51 // pred_fallthru
          _
        // Predicated region
        $region57: #{smart_refinement_forward.1} parent=51 // pred_check
          %p549 = pneg %p103
        $region58: #{smart_refinement_forward.1} parent=51 // pred_check_branch
          %551 = sbr.rel (%p549) target = $region60
        $region59: #{smart_refinement_forward.1} parent=51 // pred_region
          %p552 = scmp.lt.s32.totalorder %s36, 1
          %s553 = scalar_select %p552, %s36, 1
          %s554 = smul.addr %s553, 2
          %s555 = scalar_lea.vmem %s2, %s554
        $region60: #{smart_refinement_forward.1} parent=51 // pred_fallthru
          _
        // Predicated region
        $region61: #{smart_refinement_forward.1} parent=51 // pred_check
          %p556 = pneg %p129
        $region62: #{smart_refinement_forward.1} parent=51 // pred_check_branch
          %558 = sbr.rel (%p556) target = $region64
        $region63: #{smart_refinement_forward.1} parent=51 // pred_region
          %p559 = scmp.lt.s32.totalorder %s36, 1
          %s560 = scalar_select %p559, %s36, 1
          %s561 = smul.addr %s560, 192
          %s562 = smul.addr %s561, 4
          %s563 = scalar_lea.vmem %s3, %s562
        $region64: #{smart_refinement_forward.1} parent=51 // pred_fallthru
          _
        // Predicated region
        $region65: #{smart_refinement_forward.1} parent=51 // pred_check
          %p564 = pneg %p155
        $region66: #{smart_refinement_forward.1} parent=51 // pred_check_branch
          %566 = sbr.rel (%p564) target = $region68
        $region67: #{smart_refinement_forward.1} parent=51 // pred_region
          %p567 = scmp.lt.s32.totalorder %s36, 1
          %s568 = scalar_select %p567, %s36, 1
          %s569 = smul.addr %s568, 3
          %s570 = smul.addr %s569, 4
          %s571 = scalar_lea.vmem %s4, %s570
        $region68: #{smart_refinement_forward.1} parent=51 // pred_fallthru
          _
        // Predicated region
        $region69: #{smart_refinement_forward.1} parent=51 // pred_check
          %p572 = pneg %p181
        $region70: #{smart_refinement_forward.1} parent=51 // pred_check_branch
          %574 = sbr.rel (%p572) target = $region72
        $region71: #{smart_refinement_forward.1} parent=51 // pred_region
          %s575 = sand.u32 %s171, 1
          %s576 = scalar_lea.sflag [#allocation5], %s575
          %s577 = sand.u32 %s171, 1
          %s578 = smul.addr %s577, 576
          %s579 = scalar_lea.vmem [#allocation4], %s578
          %s581 = ssub.s32 9216, 9216
          %582 = vsyncadd %s576, %s581
          %s583 = smul.addr %s36, 144
          %s584 = smul.addr %s583, 64
          %s585 = scalar_lea.hbm %s5, %s584
          %s586 = sshll.u32 %s579, 4
          %s587 = int_to_ptr.vmem [resolvable:$true] %s586
          %592 = dma.hbm_to_vmem [thread:$0]  %s585, 9216, %s587, %s576, 192, 192, 12
        $region72: #{smart_refinement_forward.1} parent=51 // pred_fallthru
          _
        // Predicated region
        $region73: #{smart_refinement_forward.1} parent=51 // pred_check
          %p593 = pneg %p207
        $region74: #{smart_refinement_forward.1} parent=51 // pred_check_branch
          %595 = sbr.rel (%p593) target = $region76
        $region75: #{smart_refinement_forward.1} parent=51 // pred_region
          %p596 = scmp.lt.s32.totalorder %s36, 1
          %s597 = scalar_select %p596, %s36, 1
          %s598 = smul.addr %s597, 3
          %s599 = scalar_lea.vmem %s6, %s598
        $region76: #{smart_refinement_forward.1} parent=51 // pred_fallthru
          _
        // Predicated region
        $region77: #{smart_refinement_forward.1} parent=51 // pred_check
          %p600 = pneg %p233
        $region78: #{smart_refinement_forward.1} parent=51 // pred_check_branch
          %602 = sbr.rel (%p600) target = $region80
        $region79: #{smart_refinement_forward.1} parent=51 // pred_region
          %s603 = sand.u32 %s223, 1
          %s604 = scalar_lea.sflag [#allocation8], %s603
          %s605 = sand.u32 %s223, 1
          %s606 = smul.addr %s605, 384
          %s607 = scalar_lea.vmem [#allocation7], %s606
          %s609 = ssub.s32 6144, 6144
          %610 = vsyncadd %s604, %s609
          %s611 = smul.addr %s36, 96
          %s612 = smul.addr %s611, 64
          %s613 = scalar_lea.hbm %s7, %s612
          %s614 = sshll.u32 %s607, 4
          %s615 = int_to_ptr.vmem [resolvable:$true] %s614
          %620 = dma.hbm_to_vmem [thread:$0]  %s613, 6144, %s615, %s604, 128, 128, 8
        $region80: #{smart_refinement_forward.1} parent=51 // pred_fallthru
          _
        // Predicated region
        $region81: #{smart_refinement_forward.1} parent=51 // pred_check
          %p621 = pneg %p259
        $region82: #{smart_refinement_forward.1} parent=51 // pred_check_branch
          %623 = sbr.rel (%p621) target = $region84
        $region83: #{smart_refinement_forward.1} parent=51 // pred_region
          %p624 = scmp.lt.s32.totalorder %s36, 1
          %s625 = scalar_select %p624, %s36, 1
          %s626 = smul.addr %s625, 2
          %s627 = scalar_lea.vmem %s8, %s626
        $region84: #{smart_refinement_forward.1} parent=51 // pred_fallthru
          _
      $region52: #{smart_refinement_forward.1} parent=5 // pred_fallthru
        _
      %p628 = scmp.le.s32.totalorder 1, %s36
      %p629 = scmp.lt.s32.totalorder %s36, 3
      %p630 = pnand %p628, %p629
      %p631 = pneg %p630
      // Predicated region
      $region85: #{smart_refinement_forward.1} parent=5 // pred_check
        _
      $region86: #{smart_refinement_forward.1} parent=5 // pred_check_branch
        %633 = sbr.rel (%p630) target = $region88
      $region87: #{smart_refinement_forward.1} parent=5 // pred_region
        %s634 = ssub.s32 %s36, 1
        %s635 = sand.u32 %s174, 1
        %s636 = scalar_lea.sflag [#allocation5], %s635
        %s637 = sand.u32 %s174, 1
        %s638 = smul.addr %s637, 576
        %s639 = scalar_lea.vmem [#allocation4], %s638
        // Predicated region
        $region89: #{smart_refinement_forward.1} parent=87 // pred_check
          %p640 = pneg %p187
        $region90: #{smart_refinement_forward.1} parent=87 // pred_check_branch
          %642 = sbr.rel (%p640) target = $region92
        $region91: #{smart_refinement_forward.1} parent=87 // pred_region
          %643 = dma.done %s636, 9216
        $region92: #{smart_refinement_forward.1} parent=87 // pred_fallthru
          _
        %s644 = sand.u32 %s226, 1
        %s645 = scalar_lea.sflag [#allocation8], %s644
        %s646 = sand.u32 %s226, 1
        %s647 = smul.addr %s646, 384
        %s648 = scalar_lea.vmem [#allocation7], %s647
        // Predicated region
        $region93: #{smart_refinement_forward.1} parent=87 // pred_check
          %p649 = pneg %p239
        $region94: #{smart_refinement_forward.1} parent=87 // pred_check_branch
          %651 = sbr.rel (%p649) target = $region96
        $region95: #{smart_refinement_forward.1} parent=87 // pred_region
          %652 = dma.done %s645, 6144
        $region96: #{smart_refinement_forward.1} parent=87 // pred_fallthru
          _
        %p653 = pneg %p57
        %p654 = pneg %p54
        %p655 = scmp.lt.s32.totalorder %s41, 1
        %s656 = scalar_select %p655, %s41, 1
        %s657 = smul.addr %s656, 2
        %s658 = scalar_lea.vmem %s1, %s657
        %p659 = pneg %p83
        %p660 = pneg %p80
        %p661 = scmp.lt.s32.totalorder %s41, 1
        %s662 = scalar_select %p661, %s41, 1
        %s663 = smul.addr %s662, 2
        %s664 = scalar_lea.vmem %s2, %s663
        %p665 = pneg %p109
        %p666 = pneg %p106
        %p667 = scmp.lt.s32.totalorder %s41, 1
        %s668 = scalar_select %p667, %s41, 1
        %s669 = smul.addr %s668, 192
        %s670 = smul.addr %s669, 4
        %s671 = scalar_lea.vmem %s3, %s670
        %p672 = pneg %p135
        %p673 = pneg %p132
        %p674 = scmp.lt.s32.totalorder %s41, 1
        %s675 = scalar_select %p674, %s41, 1
        %s676 = smul.addr %s675, 3
        %s677 = smul.addr %s676, 4
        %s678 = scalar_lea.vmem %s4, %s677
        %p679 = pneg %p161
        %p680 = pneg %p158
        %s681 = sand.u32 %s174, 1
        %s682 = scalar_lea.sflag [#allocation5], %s681
        %s683 = sand.u32 %s174, 1
        %s684 = smul.addr %s683, 576
        %s685 = scalar_lea.vmem [#allocation4], %s684
        %p686 = pneg %p187
        %p687 = pneg %p184
        %p688 = scmp.lt.s32.totalorder %s41, 1
        %s689 = scalar_select %p688, %s41, 1
        %s690 = smul.addr %s689, 3
        %s691 = scalar_lea.vmem %s6, %s690
        %p692 = pneg %p213
        %p693 = pneg %p210
        %s694 = sand.u32 %s226, 1
        %s695 = scalar_lea.sflag [#allocation8], %s694
        %s696 = sand.u32 %s226, 1
        %s697 = smul.addr %s696, 384
        %s698 = scalar_lea.vmem [#allocation7], %s697
        %p699 = pneg %p239
        %p700 = pneg %p236
        %p701 = scmp.lt.s32.totalorder %s41, 1
        %s702 = scalar_select %p701, %s41, 1
        %s703 = smul.addr %s702, 2
        %s704 = scalar_lea.vmem %s8, %s703
        %p705 = pneg %p265
        %p706 = pneg %p262
        %p707 = pneg %p286
        %p708 = pneg %p283
        %p709 = pneg %p307
        %p710 = pneg %p304
        %p711 = pneg %p328
        %p712 = pneg %p325
        %p713 = pneg %p349
        %p714 = pneg %p346
        %p715 = pneg %p370
        %p716 = pneg %p367
        %p717 = pneg %p391
        %p718 = pneg %p388
        %p719 = pneg %p412
        %p720 = pneg %p409
        %p721 = pneg %p433
        %p722 = pneg %p430
        %p723 = pneg %p454
        %p724 = pneg %p451
        %p725 = pneg %p475
        %p726 = pneg %p472
        %p727 = pneg %p496
        %p728 = pneg %p493
        %p729 = scmp.lt.s32.totalorder %s41, 1
        %s730 = scalar_select %p729, %s41, 1
        %s731 = smul.addr %s730, 2
        %s732 = scalar_lea.vmem %s1, %s731
        %p733 = scmp.lt.s32.totalorder %s41, 1
        %s734 = scalar_select %p733, %s41, 1
        %s735 = smul.addr %s734, 2
        %s736 = scalar_lea.vmem %s2, %s735
        %p737 = scmp.lt.s32.totalorder %s41, 1
        %s738 = scalar_select %p737, %s41, 1
        %s739 = smul.addr %s738, 192
        %s740 = smul.addr %s739, 4
        %s741 = scalar_lea.vmem %s3, %s740
        %p742 = scmp.lt.s32.totalorder %s41, 1
        %s743 = scalar_select %p742, %s41, 1
        %s744 = smul.addr %s743, 3
        %s745 = smul.addr %s744, 4
        %s746 = scalar_lea.vmem %s4, %s745
        %p747 = scmp.lt.s32.totalorder %s41, 1
        %s748 = scalar_select %p747, %s41, 1
        %s749 = smul.addr %s748, 3
        %s750 = scalar_lea.vmem %s6, %s749
        %p751 = scmp.lt.s32.totalorder %s41, 1
        %s752 = scalar_select %p751, %s41, 1
        %s753 = smul.addr %s752, 2
        %s754 = scalar_lea.vmem %s8, %s753
        %p756 = scmp.eq.s32.totalorder %s41, 0
        // Predicated region
        $region97: #{smart_refinement_forward.1} parent=87 // pred_check
          %p757 = pneg %p756
        $region98: #{smart_refinement_forward.1} parent=87 // pred_check_branch
          %759 = sbr.rel (%p757) target = $region100
        $region99: #{smart_refinement_forward.1} parent=87 // pred_region
          %v760 = vld [vmem:[%s0] sm:$0xff]
          %v761 = vld [vmem:[%s0 + $0x8] sm:$0xff]
          %v762 = vld [vmem:[%s0 + $0x10] sm:$0xff]
          %v763 = vld [vmem:[%s0 + $0x18] sm:$0xff]
          %v764 = vld [vmem:[%s0 + $0x20] sm:$0xff]
          %v765 = vld [vmem:[%s0 + $0x28] sm:$0xff]
          %v766 = vld [vmem:[%s0 + $0x30] sm:$0xff]
          %v767 = vld [vmem:[%s0 + $0x38] sm:$0xff]
          %768 = vst [vmem:[#allocation2] sm:$0xff] %v760
          %769 = vst [vmem:[#allocation2 + $0x8] sm:$0xff] %v761
          %770 = vst [vmem:[#allocation2 + $0x10] sm:$0xff] %v762
          %771 = vst [vmem:[#allocation2 + $0x18] sm:$0xff] %v763
          %772 = vst [vmem:[#allocation2 + $0x20] sm:$0xff] %v764
          %773 = vst [vmem:[#allocation2 + $0x28] sm:$0xff] %v765
          %774 = vst [vmem:[#allocation2 + $0x30] sm:$0xff] %v766
          %775 = vst [vmem:[#allocation2 + $0x38] sm:$0xff] %v767
        $region100: #{smart_refinement_forward.1} parent=87 // pred_fallthru
          _
        %v776 = vlaneseq
        %v777 = vshrl.u32 %v776, 7
        %v778 = vadd.s32 %v777, 8
        %v779 = vadd.s32 %v777, 16
        %v780 = vadd.s32 %v777, 24
        %vm781 = vcmp.lt.s32.totalorder %v777, 0
        %v782 = vsub.s32 0, %v777
        %v783 = vsel %vm781, %v782, %v777
        %v784 = vshrl.u32 %v783, 4
        %v785 = vand.u32 %v783, 15
        %v786 = vsub.s32 0, %v785
        %v787 = vsel %vm781, %v786, %v785
        %vm788 = vcmp.lt.s32.totalorder %v778, 0
        %v789 = vsub.s32 0, %v778
        %v790 = vsel %vm788, %v789, %v778
        %v791 = vshrl.u32 %v790, 4
        %v792 = vand.u32 %v790, 15
        %v793 = vsub.s32 0, %v792
        %v794 = vsel %vm788, %v793, %v792
        %vm795 = vcmp.lt.s32.totalorder %v779, 0
        %v796 = vsub.s32 0, %v779
        %v797 = vsel %vm795, %v796, %v779
        %v798 = vshrl.u32 %v797, 4
        %v799 = vand.u32 %v797, 15
        %v800 = vsub.s32 0, %v799
        %v801 = vsel %vm795, %v800, %v799
        %vm802 = vcmp.lt.s32.totalorder %v780, 0
        %v803 = vsub.s32 0, %v780
        %v804 = vsel %vm802, %v803, %v780
        %v805 = vshrl.u32 %v804, 4
        %v806 = vand.u32 %v804, 15
        %v807 = vsub.s32 0, %v806
        %v808 = vsel %vm802, %v807, %v806
        %vm809 = vcmp.ne.s32.totalorder %v787, 0
        %vm810 = vcmp.ne.s32.totalorder %v794, 0
        %vm811 = vcmp.ne.s32.totalorder %v801, 0
        %vm812 = vcmp.ne.s32.totalorder %v808, 0
        %vm813 = vcmp.lt.s32.totalorder %v787, 0
        %vm814 = vcmp.lt.s32.totalorder %v794, 0
        %vm815 = vcmp.lt.s32.totalorder %v801, 0
        %vm816 = vcmp.lt.s32.totalorder %v808, 0
        %vm817 = vmand %vm813, %vm809
        %vm818 = vmand %vm814, %vm810
        %vm819 = vmand %vm815, %vm811
        %vm820 = vmand %vm816, %vm812
        %v821 = vadd.s32 %v787, 16
        %v822 = vadd.s32 %v794, 16
        %v823 = vadd.s32 %v801, 16
        %v824 = vadd.s32 %v808, 16
        %v825 = vsel %vm817, %v821, %v787
        %v826 = vsel %vm818, %v822, %v794
        %v827 = vsel %vm819, %v823, %v801
        %v828 = vsel %vm820, %v824, %v808
        %vm829 = vcmp.ne.s32.totalorder %v825, 0
        %vm830 = vcmp.ne.s32.totalorder %v826, 0
        %vm831 = vcmp.ne.s32.totalorder %v827, 0
        %vm832 = vcmp.ne.s32.totalorder %v828, 0
        %v833 = vsel %vm829, 1.0, 0.0
        %v834 = vsel %vm830, 1.0, 0.0
        %v835 = vsel %vm831, 1.0, 0.0
        %v836 = vsel %vm832, 1.0, 0.0
        %vm837 = vcmp.ne.s32.totalorder %v825, 15
        %vm838 = vcmp.ne.s32.totalorder %v826, 15
        %vm839 = vcmp.ne.s32.totalorder %v827, 15
        %vm840 = vcmp.ne.s32.totalorder %v828, 15
        %v841 = vsel %vm837, 1.0, 0.0
        %v842 = vsel %vm838, 1.0, 0.0
        %v843 = vsel %vm839, 1.0, 0.0
        %v844 = vsel %vm840, 1.0, 0.0
        %v845 = vld [vmem:[#allocation2] sm:$0xff]
        %v846 = vld [vmem:[#allocation2 + $0x8] sm:$0xff]
        %v847 = vld [vmem:[#allocation2 + $0x10] sm:$0xff]
        %v848 = vld [vmem:[#allocation2 + $0x18] sm:$0xff]
        %v849 = vld [vmem:[#allocation2 + $0x20] sm:$0xff]
        %v850 = vld [vmem:[#allocation2 + $0x28] sm:$0xff]
        %v851 = vld [vmem:[#allocation2 + $0x30] sm:$0xff]
        %v852 = vld [vmem:[#allocation2 + $0x38] sm:$0xff]
        %v853 = vld [vmem:[%s732] sm:$0x3]
        %v854 = vld [vmem:[%s736] sm:$0x3]
        %v855 = vadd.f32 %v845, %v846
        %856 = vadd.xlane.f32.xlu0 %v855
        %v857 = vpop.xlane.xlu0 %856
        %v858 = vadd.f32 %v847, %v848
        %859 = vadd.xlane.f32.xlu0 %v858
        %v860 = vpop.xlane.xlu0 %859
        %v861 = vadd.f32 %v849, %v850
        %862 = vadd.xlane.f32.xlu0 %v861
        %v863 = vpop.xlane.xlu0 %862
        %v864 = vadd.f32 %v851, %v852
        %865 = vadd.xlane.f32.xlu0 %v864
        %v866 = vpop.xlane.xlu0 %865
        %v867 = vrcp.pop 256.0
        %v868 = vmul.f32 %v857, %v867
        %v869 = vmul.f32 %v860, %v867
        %v870 = vmul.f32 %v863, %v867
        %v871 = vmul.f32 %v866, %v867
        %v872 = vsub.f32 %v845, %v868
        %v873 = vsub.f32 %v846, %v868
        %v874 = vsub.f32 %v847, %v869
        %v875 = vsub.f32 %v848, %v869
        %v876 = vsub.f32 %v849, %v870
        %v877 = vsub.f32 %v850, %v870
        %v878 = vsub.f32 %v851, %v871
        %v879 = vsub.f32 %v852, %v871
        %v880 = vmul.f32 %v872, %v872
        %v881 = vmul.f32 %v873, %v873
        %v882 = vmul.f32 %v874, %v874
        %v883 = vmul.f32 %v875, %v875
        %v884 = vmul.f32 %v876, %v876
        %v885 = vmul.f32 %v877, %v877
        %v886 = vmul.f32 %v878, %v878
        %v887 = vmul.f32 %v879, %v879
        %v888 = vadd.f32 %v880, %v881
        %889 = vadd.xlane.f32.xlu0 %v888
        %v890 = vpop.xlane.xlu0 %889
        %v891 = vadd.f32 %v882, %v883
        %892 = vadd.xlane.f32.xlu0 %v891
        %v893 = vpop.xlane.xlu0 %892
        %v894 = vadd.f32 %v884, %v885
        %895 = vadd.xlane.f32.xlu0 %v894
        %v896 = vpop.xlane.xlu0 %895
        %v897 = vadd.f32 %v886, %v887
        %898 = vadd.xlane.f32.xlu0 %v897
        %v899 = vpop.xlane.xlu0 %898
        %v900 = vmul.f32 %v890, %v867
        %v901 = vmul.f32 %v893, %v867
        %v902 = vmul.f32 %v896, %v867
        %v903 = vmul.f32 %v899, %v867
        %v904 = vadd.f32 %v900, 1e-05
        %v905 = vadd.f32 %v901, 1e-05
        %v906 = vadd.f32 %v902, 1e-05
        %v907 = vadd.f32 %v903, 1e-05
        %v908 = vrsqrt.pop %v904
        %v909 = vrsqrt.pop %v905
        %v910 = vrsqrt.pop %v906
        %v911 = vrsqrt.pop %v907
        %v912 = vmul.f32 %v872, %v908
        %v913 = vmul.f32 %v873, %v908
        %v914 = vmul.f32 %v874, %v909
        %v915 = vmul.f32 %v875, %v909
        %v916 = vmul.f32 %v876, %v910
        %v917 = vmul.f32 %v877, %v910
        %v918 = vmul.f32 %v878, %v911
        %v919 = vmul.f32 %v879, %v911
        %v921 = vlaneseq
        %v922 = vshrl.u32 %v921, 7
        %v923 = vsub.s32 0, %v922
        %v924 = vrot.slane %v853, %v923
        %v925 = vlaneseq
        %v926 = vshrl.u32 %v925, 7
        %v927 = vsub.s32 1, %v926
        %v928 = vrot.slane %v853, %v927
        %v931 = vmul.f32 %v912, %v924
        %v932 = vmul.f32 %v913, %v928
        %v933 = vmul.f32 %v914, %v924
        %v934 = vmul.f32 %v915, %v928
        %v935 = vmul.f32 %v916, %v924
        %v936 = vmul.f32 %v917, %v928
        %v937 = vmul.f32 %v918, %v924
        %v938 = vmul.f32 %v919, %v928
        %v940 = vlaneseq
        %v941 = vshrl.u32 %v940, 7
        %v942 = vsub.s32 0, %v941
        %v943 = vrot.slane %v854, %v942
        %v944 = vlaneseq
        %v945 = vshrl.u32 %v944, 7
        %v946 = vsub.s32 1, %v945
        %v947 = vrot.slane %v854, %v946
        %v950 = vadd.f32 %v931, %v943
        %v951 = vadd.f32 %v932, %v947
        %v952 = vadd.f32 %v933, %v943
        %v953 = vadd.f32 %v934, %v947
        %v954 = vadd.f32 %v935, %v943
        %v955 = vadd.f32 %v936, %v947
        %v956 = vadd.f32 %v937, %v943
        %v957 = vadd.f32 %v938, %v947
        %v958 = vpack.c.bf16 %v952, %v950
        %v959 = vpack.c.bf16 %v953, %v951
        %v960 = vpack.c.bf16 %v956, %v954
        %v961 = vpack.c.bf16 %v957, %v955
        %v962 = vld [vmem:[%s741] sm:$0xff]
        %v963 = vld [vmem:[%s741 + $0x8] sm:$0xff]
        %v964 = vld [vmem:[%s741 + $0x10] sm:$0xff]
        %v965 = vld [vmem:[%s741 + $0x18] sm:$0xff]
        %v966 = vld [vmem:[%s741 + $0x20] sm:$0xff]
        %v967 = vld [vmem:[%s741 + $0x28] sm:$0xff]
        %v968 = vld [vmem:[%s741 + $0x30] sm:$0xff]
        %v969 = vld [vmem:[%s741 + $0x38] sm:$0xff]
        %v970 = vld [vmem:[%s741 + $0x40] sm:$0xff]
        %v971 = vld [vmem:[%s741 + $0x48] sm:$0xff]
        %v972 = vld [vmem:[%s741 + $0x50] sm:$0xff]
        %v973 = vld [vmem:[%s741 + $0x58] sm:$0xff]
        %v974 = vld [vmem:[%s741 + $0x60] sm:$0xff]
        %v975 = vld [vmem:[%s741 + $0x68] sm:$0xff]
        %v976 = vld [vmem:[%s741 + $0x70] sm:$0xff]
        %v977 = vld [vmem:[%s741 + $0x78] sm:$0xff]
        %v978 = vld [vmem:[%s741 + $0x80] sm:$0xff]
        %v979 = vld [vmem:[%s741 + $0x88] sm:$0xff]
        %v980 = vld [vmem:[%s741 + $0x90] sm:$0xff]
        %v981 = vld [vmem:[%s741 + $0x98] sm:$0xff]
        %v982 = vld [vmem:[%s741 + $0xa0] sm:$0xff]
        %v983 = vld [vmem:[%s741 + $0xa8] sm:$0xff]
        %v984 = vld [vmem:[%s741 + $0xb0] sm:$0xff]
        %v985 = vld [vmem:[%s741 + $0xb8] sm:$0xff]
        %v986 = vld [vmem:[%s741 + $0xc0] sm:$0xff]
        %v987 = vld [vmem:[%s741 + $0xc8] sm:$0xff]
        %v988 = vld [vmem:[%s741 + $0xd0] sm:$0xff]
        %v989 = vld [vmem:[%s741 + $0xd8] sm:$0xff]
        %v990 = vld [vmem:[%s741 + $0xe0] sm:$0xff]
        %v991 = vld [vmem:[%s741 + $0xe8] sm:$0xff]
        %v992 = vld [vmem:[%s741 + $0xf0] sm:$0xff]
        %v993 = vld [vmem:[%s741 + $0xf8] sm:$0xff]
        %v994 = vld [vmem:[%s741 + $0x100] sm:$0xff]
        %v995 = vld [vmem:[%s741 + $0x108] sm:$0xff]
        %v996 = vld [vmem:[%s741 + $0x110] sm:$0xff]
        %v997 = vld [vmem:[%s741 + $0x118] sm:$0xff]
        %v998 = vld [vmem:[%s741 + $0x120] sm:$0xff]
        %v999 = vld [vmem:[%s741 + $0x128] sm:$0xff]
        %v1000 = vld [vmem:[%s741 + $0x130] sm:$0xff]
        %v1001 = vld [vmem:[%s741 + $0x138] sm:$0xff]
        %v1002 = vld [vmem:[%s741 + $0x140] sm:$0xff]
        %v1003 = vld [vmem:[%s741 + $0x148] sm:$0xff]
        %v1004 = vld [vmem:[%s741 + $0x150] sm:$0xff]
        %v1005 = vld [vmem:[%s741 + $0x158] sm:$0xff]
        %v1006 = vld [vmem:[%s741 + $0x160] sm:$0xff]
        %v1007 = vld [vmem:[%s741 + $0x168] sm:$0xff]
        %v1008 = vld [vmem:[%s741 + $0x170] sm:$0xff]
        %v1009 = vld [vmem:[%s741 + $0x178] sm:$0xff]
        %v1010 = vld [vmem:[%s741 + $0x180] sm:$0xff]
        %v1011 = vld [vmem:[%s741 + $0x188] sm:$0xff]
        %v1012 = vld [vmem:[%s741 + $0x190] sm:$0xff]
        %v1013 = vld [vmem:[%s741 + $0x198] sm:$0xff]
        %v1014 = vld [vmem:[%s741 + $0x1a0] sm:$0xff]
        %v1015 = vld [vmem:[%s741 + $0x1a8] sm:$0xff]
        %v1016 = vld [vmem:[%s741 + $0x1b0] sm:$0xff]
        %v1017 = vld [vmem:[%s741 + $0x1b8] sm:$0xff]
        %v1018 = vld [vmem:[%s741 + $0x1c0] sm:$0xff]
        %v1019 = vld [vmem:[%s741 + $0x1c8] sm:$0xff]
        %v1020 = vld [vmem:[%s741 + $0x1d0] sm:$0xff]
        %v1021 = vld [vmem:[%s741 + $0x1d8] sm:$0xff]
        %v1022 = vld [vmem:[%s741 + $0x1e0] sm:$0xff]
        %v1023 = vld [vmem:[%s741 + $0x1e8] sm:$0xff]
        %v1024 = vld [vmem:[%s741 + $0x1f0] sm:$0xff]
        %v1025 = vld [vmem:[%s741 + $0x1f8] sm:$0xff]
        %v1026 = vld [vmem:[%s741 + $0x200] sm:$0xff]
        %v1027 = vld [vmem:[%s741 + $0x208] sm:$0xff]
        %v1028 = vld [vmem:[%s741 + $0x210] sm:$0xff]
        %v1029 = vld [vmem:[%s741 + $0x218] sm:$0xff]
        %v1030 = vld [vmem:[%s741 + $0x220] sm:$0xff]
        %v1031 = vld [vmem:[%s741 + $0x228] sm:$0xff]
        %v1032 = vld [vmem:[%s741 + $0x230] sm:$0xff]
        %v1033 = vld [vmem:[%s741 + $0x238] sm:$0xff]
        %v1034 = vld [vmem:[%s741 + $0x240] sm:$0xff]
        %v1035 = vld [vmem:[%s741 + $0x248] sm:$0xff]
        %v1036 = vld [vmem:[%s741 + $0x250] sm:$0xff]
        %v1037 = vld [vmem:[%s741 + $0x258] sm:$0xff]
        %v1038 = vld [vmem:[%s741 + $0x260] sm:$0xff]
        %v1039 = vld [vmem:[%s741 + $0x268] sm:$0xff]
        %v1040 = vld [vmem:[%s741 + $0x270] sm:$0xff]
        %v1041 = vld [vmem:[%s741 + $0x278] sm:$0xff]
        %v1042 = vld [vmem:[%s741 + $0x280] sm:$0xff]
        %v1043 = vld [vmem:[%s741 + $0x288] sm:$0xff]
        %v1044 = vld [vmem:[%s741 + $0x290] sm:$0xff]
        %v1045 = vld [vmem:[%s741 + $0x298] sm:$0xff]
        %v1046 = vld [vmem:[%s741 + $0x2a0] sm:$0xff]
        %v1047 = vld [vmem:[%s741 + $0x2a8] sm:$0xff]
        %v1048 = vld [vmem:[%s741 + $0x2b0] sm:$0xff]
        %v1049 = vld [vmem:[%s741 + $0x2b8] sm:$0xff]
        %v1050 = vld [vmem:[%s741 + $0x2c0] sm:$0xff]
        %v1051 = vld [vmem:[%s741 + $0x2c8] sm:$0xff]
        %v1052 = vld [vmem:[%s741 + $0x2d0] sm:$0xff]
        %v1053 = vld [vmem:[%s741 + $0x2d8] sm:$0xff]
        %v1054 = vld [vmem:[%s741 + $0x2e0] sm:$0xff]
        %v1055 = vld [vmem:[%s741 + $0x2e8] sm:$0xff]
        %v1056 = vld [vmem:[%s741 + $0x2f0] sm:$0xff]
        %v1057 = vld [vmem:[%s741 + $0x2f8] sm:$0xff]
        %v1154 = vunpack.c.l.b16 %v962
        %v1155 = vunpack.c.h.b16 %v962
        %v1156 = vunpack.c.l.b16 %v963
        %v1157 = vunpack.c.h.b16 %v963
        %v1158 = vunpack.c.l.b16 %v964
        %v1159 = vunpack.c.h.b16 %v964
        %v1160 = vunpack.c.l.b16 %v965
        %v1161 = vunpack.c.h.b16 %v965
        %v1162 = vunpack.c.l.b16 %v966
        %v1163 = vunpack.c.h.b16 %v966
        %v1164 = vunpack.c.l.b16 %v967
        %v1165 = vunpack.c.h.b16 %v967
        %v1166 = vunpack.c.l.b16 %v968
        %v1167 = vunpack.c.h.b16 %v968
        %v1168 = vunpack.c.l.b16 %v969
        %v1169 = vunpack.c.h.b16 %v969
        %v1170 = vunpack.c.l.b16 %v970
        %v1171 = vunpack.c.h.b16 %v970
        %v1172 = vunpack.c.l.b16 %v971
        %v1173 = vunpack.c.h.b16 %v971
        %v1174 = vunpack.c.l.b16 %v972
        %v1175 = vunpack.c.h.b16 %v972
        %v1176 = vunpack.c.l.b16 %v973
        %v1177 = vunpack.c.h.b16 %v973
        %v1178 = vunpack.c.l.b16 %v974
        %v1179 = vunpack.c.h.b16 %v974
        %v1180 = vunpack.c.l.b16 %v975
        %v1181 = vunpack.c.h.b16 %v975
        %v1182 = vunpack.c.l.b16 %v976
        %v1183 = vunpack.c.h.b16 %v976
        %v1184 = vunpack.c.l.b16 %v977
        %v1185 = vunpack.c.h.b16 %v977
        %v1186 = vunpack.c.l.b16 %v978
        %v1187 = vunpack.c.h.b16 %v978
        %v1188 = vunpack.c.l.b16 %v979
        %v1189 = vunpack.c.h.b16 %v979
        %v1190 = vunpack.c.l.b16 %v980
        %v1191 = vunpack.c.h.b16 %v980
        %v1192 = vunpack.c.l.b16 %v981
        %v1193 = vunpack.c.h.b16 %v981
        %v1194 = vunpack.c.l.b16 %v982
        %v1195 = vunpack.c.h.b16 %v982
        %v1196 = vunpack.c.l.b16 %v983
        %v1197 = vunpack.c.h.b16 %v983
        %v1198 = vunpack.c.l.b16 %v984
        %v1199 = vunpack.c.h.b16 %v984
        %v1200 = vunpack.c.l.b16 %v985
        %v1201 = vunpack.c.h.b16 %v985
        %v1202 = vunpack.c.l.b16 %v986
        %v1203 = vunpack.c.h.b16 %v986
        %v1204 = vunpack.c.l.b16 %v987
        %v1205 = vunpack.c.h.b16 %v987
        %v1206 = vunpack.c.l.b16 %v988
        %v1207 = vunpack.c.h.b16 %v988
        %v1208 = vunpack.c.l.b16 %v989
        %v1209 = vunpack.c.h.b16 %v989
        %v1210 = vunpack.c.l.b16 %v990
        %v1211 = vunpack.c.h.b16 %v990
        %v1212 = vunpack.c.l.b16 %v991
        %v1213 = vunpack.c.h.b16 %v991
        %v1214 = vunpack.c.l.b16 %v992
        %v1215 = vunpack.c.h.b16 %v992
        %v1216 = vunpack.c.l.b16 %v993
        %v1217 = vunpack.c.h.b16 %v993
        %v1218 = vunpack.c.l.b16 %v994
        %v1219 = vunpack.c.h.b16 %v994
        %v1220 = vunpack.c.l.b16 %v995
        %v1221 = vunpack.c.h.b16 %v995
        %v1222 = vunpack.c.l.b16 %v996
        %v1223 = vunpack.c.h.b16 %v996
        %v1224 = vunpack.c.l.b16 %v997
        %v1225 = vunpack.c.h.b16 %v997
        %v1226 = vunpack.c.l.b16 %v998
        %v1227 = vunpack.c.h.b16 %v998
        %v1228 = vunpack.c.l.b16 %v999
        %v1229 = vunpack.c.h.b16 %v999
        %v1230 = vunpack.c.l.b16 %v1000
        %v1231 = vunpack.c.h.b16 %v1000
        %v1232 = vunpack.c.l.b16 %v1001
        %v1233 = vunpack.c.h.b16 %v1001
        %v1234 = vunpack.c.l.b16 %v1002
        %v1235 = vunpack.c.h.b16 %v1002
        %v1236 = vunpack.c.l.b16 %v1003
        %v1237 = vunpack.c.h.b16 %v1003
        %v1238 = vunpack.c.l.b16 %v1004
        %v1239 = vunpack.c.h.b16 %v1004
        %v1240 = vunpack.c.l.b16 %v1005
        %v1241 = vunpack.c.h.b16 %v1005
        %v1242 = vunpack.c.l.b16 %v1006
        %v1243 = vunpack.c.h.b16 %v1006
        %v1244 = vunpack.c.l.b16 %v1007
        %v1245 = vunpack.c.h.b16 %v1007
        %v1246 = vunpack.c.l.b16 %v1008
        %v1247 = vunpack.c.h.b16 %v1008
        %v1248 = vunpack.c.l.b16 %v1009
        %v1249 = vunpack.c.h.b16 %v1009
        %v1250 = vunpack.c.l.b16 %v1010
        %v1251 = vunpack.c.h.b16 %v1010
        %v1252 = vunpack.c.l.b16 %v1011
        %v1253 = vunpack.c.h.b16 %v1011
        %v1254 = vunpack.c.l.b16 %v1012
        %v1255 = vunpack.c.h.b16 %v1012
        %v1256 = vunpack.c.l.b16 %v1013
        %v1257 = vunpack.c.h.b16 %v1013
        %v1258 = vunpack.c.l.b16 %v1014
        %v1259 = vunpack.c.h.b16 %v1014
        %v1260 = vunpack.c.l.b16 %v1015
        %v1261 = vunpack.c.h.b16 %v1015
        %v1262 = vunpack.c.l.b16 %v1016
        %v1263 = vunpack.c.h.b16 %v1016
        %v1264 = vunpack.c.l.b16 %v1017
        %v1265 = vunpack.c.h.b16 %v1017
        %v1266 = vunpack.c.l.b16 %v1018
        %v1267 = vunpack.c.h.b16 %v1018
        %v1268 = vunpack.c.l.b16 %v1019
        %v1269 = vunpack.c.h.b16 %v1019
        %v1270 = vunpack.c.l.b16 %v1020
        %v1271 = vunpack.c.h.b16 %v1020
        %v1272 = vunpack.c.l.b16 %v1021
        %v1273 = vunpack.c.h.b16 %v1021
        %v1274 = vunpack.c.l.b16 %v1022
        %v1275 = vunpack.c.h.b16 %v1022
        %v1276 = vunpack.c.l.b16 %v1023
        %v1277 = vunpack.c.h.b16 %v1023
        %v1278 = vunpack.c.l.b16 %v1024
        %v1279 = vunpack.c.h.b16 %v1024
        %v1280 = vunpack.c.l.b16 %v1025
        %v1281 = vunpack.c.h.b16 %v1025
        %v1282 = vunpack.c.l.b16 %v1026
        %v1283 = vunpack.c.h.b16 %v1026
        %v1284 = vunpack.c.l.b16 %v1027
        %v1285 = vunpack.c.h.b16 %v1027
        %v1286 = vunpack.c.l.b16 %v1028
        %v1287 = vunpack.c.h.b16 %v1028
        %v1288 = vunpack.c.l.b16 %v1029
        %v1289 = vunpack.c.h.b16 %v1029
        %v1290 = vunpack.c.l.b16 %v1030
        %v1291 = vunpack.c.h.b16 %v1030
        %v1292 = vunpack.c.l.b16 %v1031
        %v1293 = vunpack.c.h.b16 %v1031
        %v1294 = vunpack.c.l.b16 %v1032
        %v1295 = vunpack.c.h.b16 %v1032
        %v1296 = vunpack.c.l.b16 %v1033
        %v1297 = vunpack.c.h.b16 %v1033
        %v1298 = vunpack.c.l.b16 %v1034
        %v1299 = vunpack.c.h.b16 %v1034
        %v1300 = vunpack.c.l.b16 %v1035
        %v1301 = vunpack.c.h.b16 %v1035
        %v1302 = vunpack.c.l.b16 %v1036
        %v1303 = vunpack.c.h.b16 %v1036
        %v1304 = vunpack.c.l.b16 %v1037
        %v1305 = vunpack.c.h.b16 %v1037
        %v1306 = vunpack.c.l.b16 %v1038
        %v1307 = vunpack.c.h.b16 %v1038
        %v1308 = vunpack.c.l.b16 %v1039
        %v1309 = vunpack.c.h.b16 %v1039
        %v1310 = vunpack.c.l.b16 %v1040
        %v1311 = vunpack.c.h.b16 %v1040
        %v1312 = vunpack.c.l.b16 %v1041
        %v1313 = vunpack.c.h.b16 %v1041
        %v1314 = vunpack.c.l.b16 %v1042
        %v1315 = vunpack.c.h.b16 %v1042
        %v1316 = vunpack.c.l.b16 %v1043
        %v1317 = vunpack.c.h.b16 %v1043
        %v1318 = vunpack.c.l.b16 %v1044
        %v1319 = vunpack.c.h.b16 %v1044
        %v1320 = vunpack.c.l.b16 %v1045
        %v1321 = vunpack.c.h.b16 %v1045
        %v1322 = vunpack.c.l.b16 %v1046
        %v1323 = vunpack.c.h.b16 %v1046
        %v1324 = vunpack.c.l.b16 %v1047
        %v1325 = vunpack.c.h.b16 %v1047
        %v1326 = vunpack.c.l.b16 %v1048
        %v1327 = vunpack.c.h.b16 %v1048
        %v1328 = vunpack.c.l.b16 %v1049
        %v1329 = vunpack.c.h.b16 %v1049
        %v1330 = vunpack.c.l.b16 %v1050
        %v1331 = vunpack.c.h.b16 %v1050
        %v1332 = vunpack.c.l.b16 %v1051
        %v1333 = vunpack.c.h.b16 %v1051
        %v1334 = vunpack.c.l.b16 %v1052
        %v1335 = vunpack.c.h.b16 %v1052
        %v1336 = vunpack.c.l.b16 %v1053
        %v1337 = vunpack.c.h.b16 %v1053
        %v1338 = vunpack.c.l.b16 %v1054
        %v1339 = vunpack.c.h.b16 %v1054
        %v1340 = vunpack.c.l.b16 %v1055
        %v1341 = vunpack.c.h.b16 %v1055
        %v1342 = vunpack.c.l.b16 %v1056
        %v1343 = vunpack.c.h.b16 %v1056
        %v1344 = vunpack.c.l.b16 %v1057
        %v1345 = vunpack.c.h.b16 %v1057
        %v1346 = vpack.c.b16 %v1160, %v1154
        %v1347 = vpack.c.b16 %v1161, %v1155
        %v1348 = vpack.c.b16 %v1162, %v1156
        %v1349 = vpack.c.b16 %v1163, %v1157
        %v1350 = vpack.c.b16 %v1164, %v1158
        %v1351 = vpack.c.b16 %v1165, %v1159
        %v1352 = vpack.c.b16 %v1172, %v1166
        %v1353 = vpack.c.b16 %v1173, %v1167
        %v1354 = vpack.c.b16 %v1174, %v1168
        %v1355 = vpack.c.b16 %v1175, %v1169
        %v1356 = vpack.c.b16 %v1176, %v1170
        %v1357 = vpack.c.b16 %v1177, %v1171
        %v1358 = vpack.c.b16 %v1184, %v1178
        %v1359 = vpack.c.b16 %v1185, %v1179
        %v1360 = vpack.c.b16 %v1186, %v1180
        %v1361 = vpack.c.b16 %v1187, %v1181
        %v1362 = vpack.c.b16 %v1188, %v1182
        %v1363 = vpack.c.b16 %v1189, %v1183
        %v1364 = vpack.c.b16 %v1196, %v1190
        %v1365 = vpack.c.b16 %v1197, %v1191
        %v1366 = vpack.c.b16 %v1198, %v1192
        %v1367 = vpack.c.b16 %v1199, %v1193
        %v1368 = vpack.c.b16 %v1200, %v1194
        %v1369 = vpack.c.b16 %v1201, %v1195
        %v1370 = vpack.c.b16 %v1208, %v1202
        %v1371 = vpack.c.b16 %v1209, %v1203
        %v1372 = vpack.c.b16 %v1210, %v1204
        %v1373 = vpack.c.b16 %v1211, %v1205
        %v1374 = vpack.c.b16 %v1212, %v1206
        %v1375 = vpack.c.b16 %v1213, %v1207
        %v1376 = vpack.c.b16 %v1220, %v1214
        %v1377 = vpack.c.b16 %v1221, %v1215
        %v1378 = vpack.c.b16 %v1222, %v1216
        %v1379 = vpack.c.b16 %v1223, %v1217
        %v1380 = vpack.c.b16 %v1224, %v1218
        %v1381 = vpack.c.b16 %v1225, %v1219
        %v1382 = vpack.c.b16 %v1232, %v1226
        %v1383 = vpack.c.b16 %v1233, %v1227
        %v1384 = vpack.c.b16 %v1234, %v1228
        %v1385 = vpack.c.b16 %v1235, %v1229
        %v1386 = vpack.c.b16 %v1236, %v1230
        %v1387 = vpack.c.b16 %v1237, %v1231
        %v1388 = vpack.c.b16 %v1244, %v1238
        %v1389 = vpack.c.b16 %v1245, %v1239
        %v1390 = vpack.c.b16 %v1246, %v1240
        %v1391 = vpack.c.b16 %v1247, %v1241
        %v1392 = vpack.c.b16 %v1248, %v1242
        %v1393 = vpack.c.b16 %v1249, %v1243
        %v1394 = vpack.c.b16 %v1256, %v1250
        %v1395 = vpack.c.b16 %v1257, %v1251
        %v1396 = vpack.c.b16 %v1258, %v1252
        %v1397 = vpack.c.b16 %v1259, %v1253
        %v1398 = vpack.c.b16 %v1260, %v1254
        %v1399 = vpack.c.b16 %v1261, %v1255
        %v1400 = vpack.c.b16 %v1268, %v1262
        %v1401 = vpack.c.b16 %v1269, %v1263
        %v1402 = vpack.c.b16 %v1270, %v1264
        %v1403 = vpack.c.b16 %v1271, %v1265
        %v1404 = vpack.c.b16 %v1272, %v1266
        %v1405 = vpack.c.b16 %v1273, %v1267
        %v1406 = vpack.c.b16 %v1280, %v1274
        %v1407 = vpack.c.b16 %v1281, %v1275
        %v1408 = vpack.c.b16 %v1282, %v1276
        %v1409 = vpack.c.b16 %v1283, %v1277
        %v1410 = vpack.c.b16 %v1284, %v1278
        %v1411 = vpack.c.b16 %v1285, %v1279
        %v1412 = vpack.c.b16 %v1292, %v1286
        %v1413 = vpack.c.b16 %v1293, %v1287
        %v1414 = vpack.c.b16 %v1294, %v1288
        %v1415 = vpack.c.b16 %v1295, %v1289
        %v1416 = vpack.c.b16 %v1296, %v1290
        %v1417 = vpack.c.b16 %v1297, %v1291
        %v1418 = vpack.c.b16 %v1304, %v1298
        %v1419 = vpack.c.b16 %v1305, %v1299
        %v1420 = vpack.c.b16 %v1306, %v1300
        %v1421 = vpack.c.b16 %v1307, %v1301
        %v1422 = vpack.c.b16 %v1308, %v1302
        %v1423 = vpack.c.b16 %v1309, %v1303
        %v1424 = vpack.c.b16 %v1316, %v1310
        %v1425 = vpack.c.b16 %v1317, %v1311
        %v1426 = vpack.c.b16 %v1318, %v1312
        %v1427 = vpack.c.b16 %v1319, %v1313
        %v1428 = vpack.c.b16 %v1320, %v1314
        %v1429 = vpack.c.b16 %v1321, %v1315
        %v1430 = vpack.c.b16 %v1328, %v1322
        %v1431 = vpack.c.b16 %v1329, %v1323
        %v1432 = vpack.c.b16 %v1330, %v1324
        %v1433 = vpack.c.b16 %v1331, %v1325
        %v1434 = vpack.c.b16 %v1332, %v1326
        %v1435 = vpack.c.b16 %v1333, %v1327
        %v1436 = vpack.c.b16 %v1340, %v1334
        %v1437 = vpack.c.b16 %v1341, %v1335
        %v1438 = vpack.c.b16 %v1342, %v1336
        %v1439 = vpack.c.b16 %v1343, %v1337
        %v1440 = vpack.c.b16 %v1344, %v1338
        %v1441 = vpack.c.b16 %v1345, %v1339
        %1538 = vmatprep.subr.bf16.mxu0 %v1347
        %1539 = vmatpush1.bf16.msra.mxu0 %v1346
        %1540 = vmatprep.subr.bf16.mxu0 %v1353
        %1541 = vmatpush1.bf16.msra.mxu0 %v1352
        %1542 = vmatprep.subr.bf16.mxu0 %v1359
        %1543 = vmatpush1.bf16.msra.mxu0 %v1358
        %1544 = vmatprep.subr.bf16.mxu0 %v1365
        %1545 = vmatpush1.bf16.msra.mxu0 %v1364
        %1546 = vmatprep.subr.bf16.mxu0 %v1371
        %1547 = vmatpush1.bf16.msra.mxu0 %v1370
        %1548 = vmatprep.subr.bf16.mxu0 %v1377
        %1549 = vmatpush1.bf16.msra.mxu0 %v1376
        %1550 = vmatprep.subr.bf16.mxu0 %v1383
        %1551 = vmatpush1.bf16.msra.mxu0 %v1382
        %1552 = vmatprep.subr.bf16.mxu0 %v1389
        %1553 = vmatpush1.bf16.msra.mxu0 %v1388
        %1554 = vmatprep.subr.bf16.mxu0 %v1395
        %1555 = vmatpush1.bf16.msra.mxu0 %v1394
        %1556 = vmatprep.subr.bf16.mxu0 %v1401
        %1557 = vmatpush1.bf16.msra.mxu0 %v1400
        %1558 = vmatprep.subr.bf16.mxu0 %v1407
        %1559 = vmatpush1.bf16.msra.mxu0 %v1406
        %1560 = vmatprep.subr.bf16.mxu0 %v1413
        %1561 = vmatpush1.bf16.msra.mxu0 %v1412
        %1562 = vmatprep.subr.bf16.mxu0 %v1419
        %1563 = vmatpush1.bf16.msra.mxu0 %v1418
        %1564 = vmatprep.subr.bf16.mxu0 %v1425
        %1565 = vmatpush1.bf16.msra.mxu0 %v1424
        %1566 = vmatprep.subr.bf16.mxu0 %v1431
        %1567 = vmatpush1.bf16.msra.mxu0 %v1430
        %1568 = vmatprep.subr.bf16.mxu0 %v1437
        %1569 = vmatpush1.bf16.msra.mxu0 %v1436
        %1570 = vmatprep.mubr.bf16.mxu0 %v959
        %1571 = vmatmul.mubr.bf16.gmra.mrb[0].mxu0 %v958
        %v1572 = vpop.f32.mrb[0].mxu0
        %v1573 = vadd.f32 0.0, %v1572
        %v1574 = vpop.f32.mrb[0].mxu0
        %v1575 = vadd.f32 0.0, %v1574
        %v1576 = vpop.f32.mrb[0].mxu0
        %v1577 = vadd.f32 0.0, %v1576
        %v1578 = vpop.f32.mrb[0].mxu0
        %v1579 = vadd.f32 0.0, %v1578
        %1580 = vmatprep.mubr.bf16.mxu0 %v961
        %1581 = vmatmul.mubr.bf16.gmra.mrb[0].mxu0 %v960
        %v1582 = vpop.f32.mrb[0].mxu0
        %v1583 = vadd.f32 0.0, %v1582
        %v1584 = vpop.f32.mrb[0].mxu0
        %v1585 = vadd.f32 0.0, %v1584
        %v1586 = vpop.f32.mrb[0].mxu0
        %v1587 = vadd.f32 0.0, %v1586
        %v1588 = vpop.f32.mrb[0].mxu0
        %v1589 = vadd.f32 0.0, %v1588
        %1590 = vdwg.mxu0
        %1591 = vmatprep.subr.bf16.mxu0 %v1349
        %1592 = vmatpush1.bf16.msra.mxu0 %v1348
        %1593 = vmatprep.subr.bf16.mxu0 %v1355
        %1594 = vmatpush1.bf16.msra.mxu0 %v1354
        %1595 = vmatprep.subr.bf16.mxu0 %v1361
        %1596 = vmatpush1.bf16.msra.mxu0 %v1360
        %1597 = vmatprep.subr.bf16.mxu0 %v1367
        %1598 = vmatpush1.bf16.msra.mxu0 %v1366
        %1599 = vmatprep.subr.bf16.mxu0 %v1373
        %1600 = vmatpush1.bf16.msra.mxu0 %v1372
        %1601 = vmatprep.subr.bf16.mxu0 %v1379
        %1602 = vmatpush1.bf16.msra.mxu0 %v1378
        %1603 = vmatprep.subr.bf16.mxu0 %v1385
        %1604 = vmatpush1.bf16.msra.mxu0 %v1384
        %1605 = vmatprep.subr.bf16.mxu0 %v1391
        %1606 = vmatpush1.bf16.msra.mxu0 %v1390
        %1607 = vmatprep.subr.bf16.mxu0 %v1397
        %1608 = vmatpush1.bf16.msra.mxu0 %v1396
        %1609 = vmatprep.subr.bf16.mxu0 %v1403
        %1610 = vmatpush1.bf16.msra.mxu0 %v1402
        %1611 = vmatprep.subr.bf16.mxu0 %v1409
        %1612 = vmatpush1.bf16.msra.mxu0 %v1408
        %1613 = vmatprep.subr.bf16.mxu0 %v1415
        %1614 = vmatpush1.bf16.msra.mxu0 %v1414
        %1615 = vmatprep.subr.bf16.mxu0 %v1421
        %1616 = vmatpush1.bf16.msra.mxu0 %v1420
        %1617 = vmatprep.subr.bf16.mxu0 %v1427
        %1618 = vmatpush1.bf16.msra.mxu0 %v1426
        %1619 = vmatprep.subr.bf16.mxu0 %v1433
        %1620 = vmatpush1.bf16.msra.mxu0 %v1432
        %1621 = vmatprep.subr.bf16.mxu0 %v1439
        %1622 = vmatpush1.bf16.msra.mxu0 %v1438
        %1623 = vmatprep.mubr.bf16.mxu0 %v959
        %1624 = vmatmul.mubr.bf16.gmra.mrb[0].mxu0 %v958
        %v1625 = vpop.f32.mrb[0].mxu0
        %v1626 = vadd.f32 0.0, %v1625
        %v1627 = vpop.f32.mrb[0].mxu0
        %v1628 = vadd.f32 0.0, %v1627
        %v1629 = vpop.f32.mrb[0].mxu0
        %v1630 = vadd.f32 0.0, %v1629
        %v1631 = vpop.f32.mrb[0].mxu0
        %v1632 = vadd.f32 0.0, %v1631
        %1633 = vmatprep.mubr.bf16.mxu0 %v961
        %1634 = vmatmul.mubr.bf16.gmra.mrb[0].mxu0 %v960
        %v1635 = vpop.f32.mrb[0].mxu0
        %v1636 = vadd.f32 0.0, %v1635
        %v1637 = vpop.f32.mrb[0].mxu0
        %v1638 = vadd.f32 0.0, %v1637
        %v1639 = vpop.f32.mrb[0].mxu0
        %v1640 = vadd.f32 0.0, %v1639
        %v1641 = vpop.f32.mrb[0].mxu0
        %v1642 = vadd.f32 0.0, %v1641
        %1643 = vdwg.mxu0
        %1644 = vmatprep.subr.bf16.mxu0 %v1351
        %1645 = vmatpush1.bf16.msra.mxu0 %v1350
        %1646 = vmatprep.subr.bf16.mxu0 %v1357
        %1647 = vmatpush1.bf16.msra.mxu0 %v1356
        %1648 = vmatprep.subr.bf16.mxu0 %v1363
        %1649 = vmatpush1.bf16.msra.mxu0 %v1362
        %1650 = vmatprep.subr.bf16.mxu0 %v1369
        %1651 = vmatpush1.bf16.msra.mxu0 %v1368
        %1652 = vmatprep.subr.bf16.mxu0 %v1375
        %1653 = vmatpush1.bf16.msra.mxu0 %v1374
        %1654 = vmatprep.subr.bf16.mxu0 %v1381
        %1655 = vmatpush1.bf16.msra.mxu0 %v1380
        %1656 = vmatprep.subr.bf16.mxu0 %v1387
        %1657 = vmatpush1.bf16.msra.mxu0 %v1386
        %1658 = vmatprep.subr.bf16.mxu0 %v1393
        %1659 = vmatpush1.bf16.msra.mxu0 %v1392
        %1660 = vmatprep.subr.bf16.mxu0 %v1399
        %1661 = vmatpush1.bf16.msra.mxu0 %v1398
        %1662 = vmatprep.subr.bf16.mxu0 %v1405
        %1663 = vmatpush1.bf16.msra.mxu0 %v1404
        %1664 = vmatprep.subr.bf16.mxu0 %v1411
        %1665 = vmatpush1.bf16.msra.mxu0 %v1410
        %1666 = vmatprep.subr.bf16.mxu0 %v1417
        %1667 = vmatpush1.bf16.msra.mxu0 %v1416
        %1668 = vmatprep.subr.bf16.mxu0 %v1423
        %1669 = vmatpush1.bf16.msra.mxu0 %v1422
        %1670 = vmatprep.subr.bf16.mxu0 %v1429
        %1671 = vmatpush1.bf16.msra.mxu0 %v1428
        %1672 = vmatprep.subr.bf16.mxu0 %v1435
        %1673 = vmatpush1.bf16.msra.mxu0 %v1434
        %1674 = vmatprep.subr.bf16.mxu0 %v1441
        %1675 = vmatpush1.bf16.msra.mxu0 %v1440
        %1676 = vmatprep.mubr.bf16.mxu0 %v959
        %1677 = vmatmul.mubr.bf16.gmra.mrb[0].mxu0 %v958
        %v1678 = vpop.f32.mrb[0].mxu0
        %v1679 = vadd.f32 0.0, %v1678
        %v1680 = vpop.f32.mrb[0].mxu0
        %v1681 = vadd.f32 0.0, %v1680
        %v1682 = vpop.f32.mrb[0].mxu0
        %v1683 = vadd.f32 0.0, %v1682
        %v1684 = vpop.f32.mrb[0].mxu0
        %v1685 = vadd.f32 0.0, %v1684
        %1686 = vmatprep.mubr.bf16.mxu0 %v961
        %1687 = vmatmul.mubr.bf16.gmra.mrb[0].mxu0 %v960
        %v1688 = vpop.f32.mrb[0].mxu0
        %v1689 = vadd.f32 0.0, %v1688
        %v1690 = vpop.f32.mrb[0].mxu0
        %v1691 = vadd.f32 0.0, %v1690
        %v1692 = vpop.f32.mrb[0].mxu0
        %v1693 = vadd.f32 0.0, %v1692
        %v1694 = vpop.f32.mrb[0].mxu0
        %v1695 = vadd.f32 0.0, %v1694
        %1696 = vdwg.mxu0
        %v1697 = vld [vmem:[%s746] sm:$0x77]
        %v1698 = vld [vmem:[%s746 + $0x8] sm:$0x7]
        %v1699 = vrot.slane %v1573, 7
        %v1700 = vrot.slane %v1575, 7
        %v1701 = vrot.slane %v1626, 7
        %v1702 = vrot.slane %v1577, 7
        %v1703 = vrot.slane %v1579, 7
        %v1704 = vrot.slane %v1630, 7
        %v1705 = vrot.slane %v1583, 7
        %v1706 = vrot.slane %v1585, 7
        %v1707 = vrot.slane %v1636, 7
        %v1708 = vrot.slane %v1587, 7
        %v1709 = vrot.slane %v1589, 7
        %v1710 = vrot.slane %v1640, 7
        %vm1711 = vcmp.lt.s32.totalorder %v777, 1
        %v1712 = vsel %vm1711, %v1705, %v1708
        %v1713 = vsel %vm1711, %v1706, %v1709
        %v1714 = vsel %vm1711, %v1707, %v1710
        %v1715 = vsel %vm1711, %v1702, %v1705
        %v1716 = vsel %vm1711, %v1703, %v1706
        %v1717 = vsel %vm1711, %v1704, %v1707
        %v1718 = vsel %vm1711, %v1699, %v1702
        %v1719 = vsel %vm1711, %v1700, %v1703
        %v1720 = vsel %vm1711, %v1701, %v1704
        %v1721 = vsel %vm1711, %v1708, %v1699
        %v1722 = vsel %vm1711, %v1709, %v1700
        %v1723 = vsel %vm1711, %v1710, %v1701
        %v1724 = vmul.f32 %v1721, %v833
        %v1725 = vmul.f32 %v1722, %v833
        %v1726 = vmul.f32 %v1723, %v833
        %v1727 = vmul.f32 %v1718, %v834
        %v1728 = vmul.f32 %v1719, %v834
        %v1729 = vmul.f32 %v1720, %v834
        %v1730 = vmul.f32 %v1715, %v835
        %v1731 = vmul.f32 %v1716, %v835
        %v1732 = vmul.f32 %v1717, %v835
        %v1733 = vmul.f32 %v1712, %v836
        %v1734 = vmul.f32 %v1713, %v836
        %v1735 = vmul.f32 %v1714, %v836
        %v1736 = vrot.slane %v1573, 1
        %v1737 = vrot.slane %v1575, 1
        %v1738 = vrot.slane %v1626, 1
        %v1739 = vrot.slane %v1577, 1
        %v1740 = vrot.slane %v1579, 1
        %v1741 = vrot.slane %v1630, 1
        %v1742 = vrot.slane %v1583, 1
        %v1743 = vrot.slane %v1585, 1
        %v1744 = vrot.slane %v1636, 1
        %v1745 = vrot.slane %v1587, 1
        %v1746 = vrot.slane %v1589, 1
        %v1747 = vrot.slane %v1640, 1
        %vm1748 = vcmp.lt.s32.totalorder %v777, 7
        %v1749 = vsel %vm1748, %v1742, %v1745
        %v1750 = vsel %vm1748, %v1743, %v1746
        %v1751 = vsel %vm1748, %v1744, %v1747
        %v1752 = vsel %vm1748, %v1739, %v1742
        %v1753 = vsel %vm1748, %v1740, %v1743
        %v1754 = vsel %vm1748, %v1741, %v1744
        %v1755 = vsel %vm1748, %v1736, %v1739
        %v1756 = vsel %vm1748, %v1737, %v1740
        %v1757 = vsel %vm1748, %v1738, %v1741
        %v1758 = vsel %vm1748, %v1745, %v1736
        %v1759 = vsel %vm1748, %v1746, %v1737
        %v1760 = vsel %vm1748, %v1747, %v1738
        %v1761 = vmul.f32 %v1755, %v841
        %v1762 = vmul.f32 %v1756, %v841
        %v1763 = vmul.f32 %v1757, %v841
        %v1764 = vmul.f32 %v1752, %v842
        %v1765 = vmul.f32 %v1753, %v842
        %v1766 = vmul.f32 %v1754, %v842
        %v1767 = vmul.f32 %v1749, %v843
        %v1768 = vmul.f32 %v1750, %v843
        %v1769 = vmul.f32 %v1751, %v843
        %v1770 = vmul.f32 %v1758, %v844
        %v1771 = vmul.f32 %v1759, %v844
        %v1772 = vmul.f32 %v1760, %v844
        %v1775 = vlaneseq
        %v1776 = vshrl.u32 %v1775, 7
        %v1777 = vsub.s32 0, %v1776
        %v1778 = vrot.slane %v1697, %v1777
        %v1779 = vlaneseq
        %v1780 = vshrl.u32 %v1779, 7
        %v1781 = vsub.s32 4, %v1780
        %v1782 = vrot.slane %v1697, %v1781
        %v1783 = vlaneseq
        %v1784 = vshrl.u32 %v1783, 7
        %v1785 = vsub.s32 0, %v1784
        %v1786 = vrot.slane %v1698, %v1785
        %v1790 = vlaneseq
        %v1791 = vshrl.u32 %v1790, 7
        %v1792 = vsub.s32 0, %v1791
        %v1793 = vrot.slane %v1778, %v1792
        %v1794 = vlaneseq
        %v1795 = vshrl.u32 %v1794, 7
        %v1796 = vsub.s32 0, %v1795
        %v1797 = vrot.slane %v1782, %v1796
        %v1798 = vlaneseq
        %v1799 = vshrl.u32 %v1798, 7
        %v1800 = vsub.s32 0, %v1799
        %v1801 = vrot.slane %v1786, %v1800
        %v1802 = vmul.f32 %v1724, %v1793
        %v1803 = vmul.f32 %v1725, %v1797
        %v1804 = vmul.f32 %v1726, %v1801
        %v1805 = vmul.f32 %v1727, %v1793
        %v1806 = vmul.f32 %v1728, %v1797
        %v1807 = vmul.f32 %v1729, %v1801
        %v1808 = vmul.f32 %v1730, %v1793
        %v1809 = vmul.f32 %v1731, %v1797
        %v1810 = vmul.f32 %v1732, %v1801
        %v1811 = vmul.f32 %v1733, %v1793
        %v1812 = vmul.f32 %v1734, %v1797
        %v1813 = vmul.f32 %v1735, %v1801
        %v1814 = vlaneseq
        %v1815 = vshrl.u32 %v1814, 7
        %v1816 = vsub.s32 1, %v1815
        %v1817 = vrot.slane %v1697, %v1816
        %v1818 = vlaneseq
        %v1819 = vshrl.u32 %v1818, 7
        %v1820 = vsub.s32 5, %v1819
        %v1821 = vrot.slane %v1697, %v1820
        %v1822 = vlaneseq
        %v1823 = vshrl.u32 %v1822, 7
        %v1824 = vsub.s32 1, %v1823
        %v1825 = vrot.slane %v1698, %v1824
        %v1829 = vlaneseq
        %v1830 = vshrl.u32 %v1829, 7
        %v1831 = vsub.s32 1, %v1830
        %v1832 = vrot.slane %v1817, %v1831
        %v1833 = vlaneseq
        %v1834 = vshrl.u32 %v1833, 7
        %v1835 = vsub.s32 1, %v1834
        %v1836 = vrot.slane %v1821, %v1835
        %v1837 = vlaneseq
        %v1838 = vshrl.u32 %v1837, 7
        %v1839 = vsub.s32 1, %v1838
        %v1840 = vrot.slane %v1825, %v1839
        %v1841 = vmul.f32 %v1573, %v1832
        %v1842 = vmul.f32 %v1575, %v1836
        %v1843 = vmul.f32 %v1626, %v1840
        %v1844 = vmul.f32 %v1577, %v1832
        %v1845 = vmul.f32 %v1579, %v1836
        %v1846 = vmul.f32 %v1630, %v1840
        %v1847 = vmul.f32 %v1583, %v1832
        %v1848 = vmul.f32 %v1585, %v1836
        %v1849 = vmul.f32 %v1636, %v1840
        %v1850 = vmul.f32 %v1587, %v1832
        %v1851 = vmul.f32 %v1589, %v1836
        %v1852 = vmul.f32 %v1640, %v1840
        %v1853 = vadd.f32 %v1802, %v1841
        %v1854 = vadd.f32 %v1803, %v1842
        %v1855 = vadd.f32 %v1804, %v1843
        %v1856 = vadd.f32 %v1805, %v1844
        %v1857 = vadd.f32 %v1806, %v1845
        %v1858 = vadd.f32 %v1807, %v1846
        %v1859 = vadd.f32 %v1808, %v1847
        %v1860 = vadd.f32 %v1809, %v1848
        %v1861 = vadd.f32 %v1810, %v1849
        %v1862 = vadd.f32 %v1811, %v1850
        %v1863 = vadd.f32 %v1812, %v1851
        %v1864 = vadd.f32 %v1813, %v1852
        %v1865 = vlaneseq
        %v1866 = vshrl.u32 %v1865, 7
        %v1867 = vsub.s32 2, %v1866
        %v1868 = vrot.slane %v1697, %v1867
        %v1869 = vlaneseq
        %v1870 = vshrl.u32 %v1869, 7
        %v1871 = vsub.s32 6, %v1870
        %v1872 = vrot.slane %v1697, %v1871
        %v1873 = vlaneseq
        %v1874 = vshrl.u32 %v1873, 7
        %v1875 = vsub.s32 2, %v1874
        %v1876 = vrot.slane %v1698, %v1875
        %v1880 = vlaneseq
        %v1881 = vshrl.u32 %v1880, 7
        %v1882 = vsub.s32 2, %v1881
        %v1883 = vrot.slane %v1868, %v1882
        %v1884 = vlaneseq
        %v1885 = vshrl.u32 %v1884, 7
        %v1886 = vsub.s32 2, %v1885
        %v1887 = vrot.slane %v1872, %v1886
        %v1888 = vlaneseq
        %v1889 = vshrl.u32 %v1888, 7
        %v1890 = vsub.s32 2, %v1889
        %v1891 = vrot.slane %v1876, %v1890
        %v1892 = vmul.f32 %v1761, %v1883
        %v1893 = vmul.f32 %v1762, %v1887
        %v1894 = vmul.f32 %v1763, %v1891
        %v1895 = vmul.f32 %v1764, %v1883
        %v1896 = vmul.f32 %v1765, %v1887
        %v1897 = vmul.f32 %v1766, %v1891
        %v1898 = vmul.f32 %v1767, %v1883
        %v1899 = vmul.f32 %v1768, %v1887
        %v1900 = vmul.f32 %v1769, %v1891
        %v1901 = vmul.f32 %v1770, %v1883
        %v1902 = vmul.f32 %v1771, %v1887
        %v1903 = vmul.f32 %v1772, %v1891
        %v1904 = vadd.f32 %v1853, %v1892
        %v1905 = vadd.f32 %v1854, %v1893
        %v1906 = vadd.f32 %v1855, %v1894
        %v1907 = vadd.f32 %v1856, %v1895
        %v1908 = vadd.f32 %v1857, %v1896
        %v1909 = vadd.f32 %v1858, %v1897
        %v1910 = vadd.f32 %v1859, %v1898
        %v1911 = vadd.f32 %v1860, %v1899
        %v1912 = vadd.f32 %v1861, %v1900
        %v1913 = vadd.f32 %v1862, %v1901
        %v1914 = vadd.f32 %v1863, %v1902
        %v1915 = vadd.f32 %v1864, %v1903
        %v1916 = vsub.f32 0.0, %v1904
        %v1917 = vsub.f32 0.0, %v1905
        %v1918 = vsub.f32 0.0, %v1906
        %v1919 = vsub.f32 0.0, %v1907
        %v1920 = vsub.f32 0.0, %v1908
        %v1921 = vsub.f32 0.0, %v1909
        %v1922 = vsub.f32 0.0, %v1910
        %v1923 = vsub.f32 0.0, %v1911
        %v1924 = vsub.f32 0.0, %v1912
        %v1925 = vsub.f32 0.0, %v1913
        %v1926 = vsub.f32 0.0, %v1914
        %v1927 = vsub.f32 0.0, %v1915
        %v1928 = vmul.f32 %v1916, 1.442695
        %v1929 = vpow.pop %v1928
        %v1930 = vmul.f32 %v1917, 1.442695
        %v1931 = vpow.pop %v1930
        %v1932 = vmul.f32 %v1918, 1.442695
        %v1933 = vpow.pop %v1932
        %v1934 = vmul.f32 %v1919, 1.442695
        %v1935 = vpow.pop %v1934
        %v1936 = vmul.f32 %v1920, 1.442695
        %v1937 = vpow.pop %v1936
        %v1938 = vmul.f32 %v1921, 1.442695
        %v1939 = vpow.pop %v1938
        %v1940 = vmul.f32 %v1922, 1.442695
        %v1941 = vpow.pop %v1940
        %v1942 = vmul.f32 %v1923, 1.442695
        %v1943 = vpow.pop %v1942
        %v1944 = vmul.f32 %v1924, 1.442695
        %v1945 = vpow.pop %v1944
        %v1946 = vmul.f32 %v1925, 1.442695
        %v1947 = vpow.pop %v1946
        %v1948 = vmul.f32 %v1926, 1.442695
        %v1949 = vpow.pop %v1948
        %v1950 = vmul.f32 %v1927, 1.442695
        %v1951 = vpow.pop %v1950
        %v1952 = vadd.f32 %v1929, 1.0
        %v1953 = vadd.f32 %v1931, 1.0
        %v1954 = vadd.f32 %v1933, 1.0
        %v1955 = vadd.f32 %v1935, 1.0
        %v1956 = vadd.f32 %v1937, 1.0
        %v1957 = vadd.f32 %v1939, 1.0
        %v1958 = vadd.f32 %v1941, 1.0
        %v1959 = vadd.f32 %v1943, 1.0
        %v1960 = vadd.f32 %v1945, 1.0
        %v1961 = vadd.f32 %v1947, 1.0
        %v1962 = vadd.f32 %v1949, 1.0
        %v1963 = vadd.f32 %v1951, 1.0
        %v1964 = vrcp.pop %v1952
        %v1965 = vrcp.pop %v1953
        %v1966 = vrcp.pop %v1954
        %v1967 = vrcp.pop %v1955
        %v1968 = vrcp.pop %v1956
        %v1969 = vrcp.pop %v1957
        %v1970 = vrcp.pop %v1958
        %v1971 = vrcp.pop %v1959
        %v1972 = vrcp.pop %v1960
        %v1973 = vrcp.pop %v1961
        %v1974 = vrcp.pop %v1962
        %v1975 = vrcp.pop %v1963
        %v1976 = vmul.f32 %v1904, %v1964
        %v1977 = vmul.f32 %v1905, %v1965
        %v1978 = vmul.f32 %v1906, %v1966
        %v1979 = vmul.f32 %v1907, %v1967
        %v1980 = vmul.f32 %v1908, %v1968
        %v1981 = vmul.f32 %v1909, %v1969
        %v1982 = vmul.f32 %v1910, %v1970
        %v1983 = vmul.f32 %v1911, %v1971
        %v1984 = vmul.f32 %v1912, %v1972
        %v1985 = vmul.f32 %v1913, %v1973
        %v1986 = vmul.f32 %v1914, %v1974
        %v1987 = vmul.f32 %v1915, %v1975
        %v1988 = vpack.c.bf16 %v1979, %v1976
        %v1989 = vpack.c.bf16 %v1980, %v1977
        %v1990 = vpack.c.bf16 %v1981, %v1978
        %v1991 = vpack.c.bf16 %v1985, %v1982
        %v1992 = vpack.c.bf16 %v1986, %v1983
        %v1993 = vpack.c.bf16 %v1987, %v1984
        %v1994 = vld [vmem:[%s639] sm:$0xff]
        %v1995 = vld [vmem:[%s639 + $0x8] sm:$0xf]
        %v1996 = vld [vmem:[%s639 + $0xc] sm:$0xff]
        %v1997 = vld [vmem:[%s639 + $0x14] sm:$0xf]
        %v1998 = vld [vmem:[%s639 + $0x18] sm:$0xff]
        %v1999 = vld [vmem:[%s639 + $0x20] sm:$0xf]
        %v2000 = vld [vmem:[%s639 + $0x24] sm:$0xff]
        %v2001 = vld [vmem:[%s639 + $0x2c] sm:$0xf]
        %v2002 = vld [vmem:[%s639 + $0x30] sm:$0xff]
        %v2003 = vld [vmem:[%s639 + $0x38] sm:$0xf]
        %v2004 = vld [vmem:[%s639 + $0x3c] sm:$0xff]
        %v2005 = vld [vmem:[%s639 + $0x44] sm:$0xf]
        %v2006 = vld [vmem:[%s639 + $0x48] sm:$0xff]
        %v2007 = vld [vmem:[%s639 + $0x50] sm:$0xf]
        %v2008 = vld [vmem:[%s639 + $0x54] sm:$0xff]
        %v2009 = vld [vmem:[%s639 + $0x5c] sm:$0xf]
        %v2010 = vld [vmem:[%s639 + $0x60] sm:$0xff]
        %v2011 = vld [vmem:[%s639 + $0x68] sm:$0xf]
        %v2012 = vld [vmem:[%s639 + $0x6c] sm:$0xff]
        %v2013 = vld [vmem:[%s639 + $0x74] sm:$0xf]
        %v2014 = vld [vmem:[%s639 + $0x78] sm:$0xff]
        %v2015 = vld [vmem:[%s639 + $0x80] sm:$0xf]
        %v2016 = vld [vmem:[%s639 + $0x84] sm:$0xff]
        %v2017 = vld [vmem:[%s639 + $0x8c] sm:$0xf]
        %v2018 = vld [vmem:[%s639 + $0x90] sm:$0xff]
        %v2019 = vld [vmem:[%s639 + $0x98] sm:$0xf]
        %v2020 = vld [vmem:[%s639 + $0x9c] sm:$0xff]
        %v2021 = vld [vmem:[%s639 + $0xa4] sm:$0xf]
        %v2022 = vld [vmem:[%s639 + $0xa8] sm:$0xff]
        %v2023 = vld [vmem:[%s639 + $0xb0] sm:$0xf]
        %v2024 = vld [vmem:[%s639 + $0xb4] sm:$0xff]
        %v2025 = vld [vmem:[%s639 + $0xbc] sm:$0xf]
        %v2026 = vld [vmem:[%s639 + $0xc0] sm:$0xff]
        %v2027 = vld [vmem:[%s639 + $0xc8] sm:$0xf]
        %v2028 = vld [vmem:[%s639 + $0xcc] sm:$0xff]
        %v2029 = vld [vmem:[%s639 + $0xd4] sm:$0xf]
        %v2030 = vld [vmem:[%s639 + $0xd8] sm:$0xff]
        %v2031 = vld [vmem:[%s639 + $0xe0] sm:$0xf]
        %v2032 = vld [vmem:[%s639 + $0xe4] sm:$0xff]
        %v2033 = vld [vmem:[%s639 + $0xec] sm:$0xf]
        %v2034 = vld [vmem:[%s639 + $0xf0] sm:$0xff]
        %v2035 = vld [vmem:[%s639 + $0xf8] sm:$0xf]
        %v2036 = vld [vmem:[%s639 + $0xfc] sm:$0xff]
        %v2037 = vld [vmem:[%s639 + $0x104] sm:$0xf]
        %v2038 = vld [vmem:[%s639 + $0x108] sm:$0xff]
        %v2039 = vld [vmem:[%s639 + $0x110] sm:$0xf]
        %v2040 = vld [vmem:[%s639 + $0x114] sm:$0xff]
        %v2041 = vld [vmem:[%s639 + $0x11c] sm:$0xf]
        %v2042 = vld [vmem:[%s639 + $0x120] sm:$0xff]
        %v2043 = vld [vmem:[%s639 + $0x128] sm:$0xf]
        %v2044 = vld [vmem:[%s639 + $0x12c] sm:$0xff]
        %v2045 = vld [vmem:[%s639 + $0x134] sm:$0xf]
        %v2046 = vld [vmem:[%s639 + $0x138] sm:$0xff]
        %v2047 = vld [vmem:[%s639 + $0x140] sm:$0xf]
        %v2048 = vld [vmem:[%s639 + $0x144] sm:$0xff]
        %v2049 = vld [vmem:[%s639 + $0x14c] sm:$0xf]
        %v2050 = vld [vmem:[%s639 + $0x150] sm:$0xff]
        %v2051 = vld [vmem:[%s639 + $0x158] sm:$0xf]
        %v2052 = vld [vmem:[%s639 + $0x15c] sm:$0xff]
        %v2053 = vld [vmem:[%s639 + $0x164] sm:$0xf]
        %v2054 = vld [vmem:[%s639 + $0x168] sm:$0xff]
        %v2055 = vld [vmem:[%s639 + $0x170] sm:$0xf]
        %v2056 = vld [vmem:[%s639 + $0x174] sm:$0xff]
        %v2057 = vld [vmem:[%s639 + $0x17c] sm:$0xf]
        %v2058 = vld [vmem:[%s639 + $0x180] sm:$0xff]
        %v2059 = vld [vmem:[%s639 + $0x188] sm:$0xf]
        %v2060 = vld [vmem:[%s639 + $0x18c] sm:$0xff]
        %v2061 = vld [vmem:[%s639 + $0x194] sm:$0xf]
        %v2062 = vld [vmem:[%s639 + $0x198] sm:$0xff]
        %v2063 = vld [vmem:[%s639 + $0x1a0] sm:$0xf]
        %v2064 = vld [vmem:[%s639 + $0x1a4] sm:$0xff]
        %v2065 = vld [vmem:[%s639 + $0x1ac] sm:$0xf]
        %v2066 = vld [vmem:[%s639 + $0x1b0] sm:$0xff]
        %v2067 = vld [vmem:[%s639 + $0x1b8] sm:$0xf]
        %v2068 = vld [vmem:[%s639 + $0x1bc] sm:$0xff]
        %v2069 = vld [vmem:[%s639 + $0x1c4] sm:$0xf]
        %v2070 = vld [vmem:[%s639 + $0x1c8] sm:$0xff]
        %v2071 = vld [vmem:[%s639 + $0x1d0] sm:$0xf]
        %v2072 = vld [vmem:[%s639 + $0x1d4] sm:$0xff]
        %v2073 = vld [vmem:[%s639 + $0x1dc] sm:$0xf]
        %v2074 = vld [vmem:[%s639 + $0x1e0] sm:$0xff]
        %v2075 = vld [vmem:[%s639 + $0x1e8] sm:$0xf]
        %v2076 = vld [vmem:[%s639 + $0x1ec] sm:$0xff]
        %v2077 = vld [vmem:[%s639 + $0x1f4] sm:$0xf]
        %v2078 = vld [vmem:[%s639 + $0x1f8] sm:$0xff]
        %v2079 = vld [vmem:[%s639 + $0x200] sm:$0xf]
        %v2080 = vld [vmem:[%s639 + $0x204] sm:$0xff]
        %v2081 = vld [vmem:[%s639 + $0x20c] sm:$0xf]
        %v2082 = vld [vmem:[%s639 + $0x210] sm:$0xff]
        %v2083 = vld [vmem:[%s639 + $0x218] sm:$0xf]
        %v2084 = vld [vmem:[%s639 + $0x21c] sm:$0xff]
        %v2085 = vld [vmem:[%s639 + $0x224] sm:$0xf]
        %v2086 = vld [vmem:[%s639 + $0x228] sm:$0xff]
        %v2087 = vld [vmem:[%s639 + $0x230] sm:$0xf]
        %v2088 = vld [vmem:[%s639 + $0x234] sm:$0xff]
        %v2089 = vld [vmem:[%s639 + $0x23c] sm:$0xf]
        %v2090 = vld [vmem:[%s750] sm:$0x7]
        %v2092 = vlaneseq
        %v2093 = vshrl.u32 %v2092, 7
        %v2094 = vsub.s32 0, %v2093
        %v2095 = vrot.slane %v2090, %v2094
        %v2096 = vlaneseq
        %v2097 = vshrl.u32 %v2096, 7
        %v2098 = vsub.s32 1, %v2097
        %v2099 = vrot.slane %v2090, %v2098
        %v2100 = vlaneseq
        %v2101 = vshrl.u32 %v2100, 7
        %v2102 = vsub.s32 2, %v2101
        %v2103 = vrot.slane %v2090, %v2102
        %v2203 = vunpack.c.l.b16 %v1994
        %v2204 = vunpack.c.h.b16 %v1994
        %v2205 = vunpack.c.l.b16 %v1995
        %v2206 = vunpack.c.l.b16 %v1996
        %v2207 = vunpack.c.h.b16 %v1996
        %v2208 = vunpack.c.l.b16 %v1997
        %v2209 = vunpack.c.l.b16 %v1998
        %v2210 = vunpack.c.h.b16 %v1998
        %v2211 = vunpack.c.l.b16 %v1999
        %v2212 = vunpack.c.l.b16 %v2000
        %v2213 = vunpack.c.h.b16 %v2000
        %v2214 = vunpack.c.l.b16 %v2001
        %v2215 = vunpack.c.l.b16 %v2002
        %v2216 = vunpack.c.h.b16 %v2002
        %v2217 = vunpack.c.l.b16 %v2003
        %v2218 = vunpack.c.l.b16 %v2004
        %v2219 = vunpack.c.h.b16 %v2004
        %v2220 = vunpack.c.l.b16 %v2005
        %v2221 = vunpack.c.l.b16 %v2006
        %v2222 = vunpack.c.h.b16 %v2006
        %v2223 = vunpack.c.l.b16 %v2007
        %v2224 = vunpack.c.l.b16 %v2008
        %v2225 = vunpack.c.h.b16 %v2008
        %v2226 = vunpack.c.l.b16 %v2009
        %v2227 = vunpack.c.l.b16 %v2010
        %v2228 = vunpack.c.h.b16 %v2010
        %v2229 = vunpack.c.l.b16 %v2011
        %v2230 = vunpack.c.l.b16 %v2012
        %v2231 = vunpack.c.h.b16 %v2012
        %v2232 = vunpack.c.l.b16 %v2013
        %v2233 = vunpack.c.l.b16 %v2014
        %v2234 = vunpack.c.h.b16 %v2014
        %v2235 = vunpack.c.l.b16 %v2015
        %v2236 = vunpack.c.l.b16 %v2016
        %v2237 = vunpack.c.h.b16 %v2016
        %v2238 = vunpack.c.l.b16 %v2017
        %v2239 = vunpack.c.l.b16 %v2018
        %v2240 = vunpack.c.h.b16 %v2018
        %v2241 = vunpack.c.l.b16 %v2019
        %v2242 = vunpack.c.l.b16 %v2020
        %v2243 = vunpack.c.h.b16 %v2020
        %v2244 = vunpack.c.l.b16 %v2021
        %v2245 = vunpack.c.l.b16 %v2022
        %v2246 = vunpack.c.h.b16 %v2022
        %v2247 = vunpack.c.l.b16 %v2023
        %v2248 = vunpack.c.l.b16 %v2024
        %v2249 = vunpack.c.h.b16 %v2024
        %v2250 = vunpack.c.l.b16 %v2025
        %v2251 = vunpack.c.l.b16 %v2026
        %v2252 = vunpack.c.h.b16 %v2026
        %v2253 = vunpack.c.l.b16 %v2027
        %v2254 = vunpack.c.l.b16 %v2028
        %v2255 = vunpack.c.h.b16 %v2028
        %v2256 = vunpack.c.l.b16 %v2029
        %v2257 = vunpack.c.l.b16 %v2030
        %v2258 = vunpack.c.h.b16 %v2030
        %v2259 = vunpack.c.l.b16 %v2031
        %v2260 = vunpack.c.l.b16 %v2032
        %v2261 = vunpack.c.h.b16 %v2032
        %v2262 = vunpack.c.l.b16 %v2033
        %v2263 = vunpack.c.l.b16 %v2034
        %v2264 = vunpack.c.h.b16 %v2034
        %v2265 = vunpack.c.l.b16 %v2035
        %v2266 = vunpack.c.l.b16 %v2036
        %v2267 = vunpack.c.h.b16 %v2036
        %v2268 = vunpack.c.l.b16 %v2037
        %v2269 = vunpack.c.l.b16 %v2038
        %v2270 = vunpack.c.h.b16 %v2038
        %v2271 = vunpack.c.l.b16 %v2039
        %v2272 = vunpack.c.l.b16 %v2040
        %v2273 = vunpack.c.h.b16 %v2040
        %v2274 = vunpack.c.l.b16 %v2041
        %v2275 = vunpack.c.l.b16 %v2042
        %v2276 = vunpack.c.h.b16 %v2042
        %v2277 = vunpack.c.l.b16 %v2043
        %v2278 = vunpack.c.l.b16 %v2044
        %v2279 = vunpack.c.h.b16 %v2044
        %v2280 = vunpack.c.l.b16 %v2045
        %v2281 = vunpack.c.l.b16 %v2046
        %v2282 = vunpack.c.h.b16 %v2046
        %v2283 = vunpack.c.l.b16 %v2047
        %v2284 = vunpack.c.l.b16 %v2048
        %v2285 = vunpack.c.h.b16 %v2048
        %v2286 = vunpack.c.l.b16 %v2049
        %v2287 = vunpack.c.l.b16 %v2050
        %v2288 = vunpack.c.h.b16 %v2050
        %v2289 = vunpack.c.l.b16 %v2051
        %v2290 = vunpack.c.l.b16 %v2052
        %v2291 = vunpack.c.h.b16 %v2052
        %v2292 = vunpack.c.l.b16 %v2053
        %v2293 = vunpack.c.l.b16 %v2054
        %v2294 = vunpack.c.h.b16 %v2054
        %v2295 = vunpack.c.l.b16 %v2055
        %v2296 = vunpack.c.l.b16 %v2056
        %v2297 = vunpack.c.h.b16 %v2056
        %v2298 = vunpack.c.l.b16 %v2057
        %v2299 = vunpack.c.l.b16 %v2058
        %v2300 = vunpack.c.h.b16 %v2058
        %v2301 = vunpack.c.l.b16 %v2059
        %v2302 = vunpack.c.l.b16 %v2060
        %v2303 = vunpack.c.h.b16 %v2060
        %v2304 = vunpack.c.l.b16 %v2061
        %v2305 = vunpack.c.l.b16 %v2062
        %v2306 = vunpack.c.h.b16 %v2062
        %v2307 = vunpack.c.l.b16 %v2063
        %v2308 = vunpack.c.l.b16 %v2064
        %v2309 = vunpack.c.h.b16 %v2064
        %v2310 = vunpack.c.l.b16 %v2065
        %v2311 = vunpack.c.l.b16 %v2066
        %v2312 = vunpack.c.h.b16 %v2066
        %v2313 = vunpack.c.l.b16 %v2067
        %v2314 = vunpack.c.l.b16 %v2068
        %v2315 = vunpack.c.h.b16 %v2068
        %v2316 = vunpack.c.l.b16 %v2069
        %v2317 = vunpack.c.l.b16 %v2070
        %v2318 = vunpack.c.h.b16 %v2070
        %v2319 = vunpack.c.l.b16 %v2071
        %v2320 = vunpack.c.l.b16 %v2072
        %v2321 = vunpack.c.h.b16 %v2072
        %v2322 = vunpack.c.l.b16 %v2073
        %v2323 = vunpack.c.l.b16 %v2074
        %v2324 = vunpack.c.h.b16 %v2074
        %v2325 = vunpack.c.l.b16 %v2075
        %v2326 = vunpack.c.l.b16 %v2076
        %v2327 = vunpack.c.h.b16 %v2076
        %v2328 = vunpack.c.l.b16 %v2077
        %v2329 = vunpack.c.l.b16 %v2078
        %v2330 = vunpack.c.h.b16 %v2078
        %v2331 = vunpack.c.l.b16 %v2079
        %v2332 = vunpack.c.l.b16 %v2080
        %v2333 = vunpack.c.h.b16 %v2080
        %v2334 = vunpack.c.l.b16 %v2081
        %v2335 = vunpack.c.l.b16 %v2082
        %v2336 = vunpack.c.h.b16 %v2082
        %v2337 = vunpack.c.l.b16 %v2083
        %v2338 = vunpack.c.l.b16 %v2084
        %v2339 = vunpack.c.h.b16 %v2084
        %v2340 = vunpack.c.l.b16 %v2085
        %v2341 = vunpack.c.l.b16 %v2086
        %v2342 = vunpack.c.h.b16 %v2086
        %v2343 = vunpack.c.l.b16 %v2087
        %v2344 = vunpack.c.l.b16 %v2088
        %v2345 = vunpack.c.h.b16 %v2088
        %v2346 = vunpack.c.l.b16 %v2089
        %v2347 = vpack.c.b16 %v2206, %v2203
        %v2348 = vpack.c.b16 %v2207, %v2204
        %v2349 = vpack.c.b16 %v2208, %v2205
        %v2350 = vpack.c.b16 %v2212, %v2209
        %v2351 = vpack.c.b16 %v2213, %v2210
        %v2352 = vpack.c.b16 %v2214, %v2211
        %v2353 = vpack.c.b16 %v2218, %v2215
        %v2354 = vpack.c.b16 %v2219, %v2216
        %v2355 = vpack.c.b16 %v2220, %v2217
        %v2356 = vpack.c.b16 %v2224, %v2221
        %v2357 = vpack.c.b16 %v2225, %v2222
        %v2358 = vpack.c.b16 %v2226, %v2223
        %v2359 = vpack.c.b16 %v2230, %v2227
        %v2360 = vpack.c.b16 %v2231, %v2228
        %v2361 = vpack.c.b16 %v2232, %v2229
        %v2362 = vpack.c.b16 %v2236, %v2233
        %v2363 = vpack.c.b16 %v2237, %v2234
        %v2364 = vpack.c.b16 %v2238, %v2235
        %v2365 = vpack.c.b16 %v2242, %v2239
        %v2366 = vpack.c.b16 %v2243, %v2240
        %v2367 = vpack.c.b16 %v2244, %v2241
        %v2368 = vpack.c.b16 %v2248, %v2245
        %v2369 = vpack.c.b16 %v2249, %v2246
        %v2370 = vpack.c.b16 %v2250, %v2247
        %v2371 = vpack.c.b16 %v2254, %v2251
        %v2372 = vpack.c.b16 %v2255, %v2252
        %v2373 = vpack.c.b16 %v2256, %v2253
        %v2374 = vpack.c.b16 %v2260, %v2257
        %v2375 = vpack.c.b16 %v2261, %v2258
        %v2376 = vpack.c.b16 %v2262, %v2259
        %v2377 = vpack.c.b16 %v2266, %v2263
        %v2378 = vpack.c.b16 %v2267, %v2264
        %v2379 = vpack.c.b16 %v2268, %v2265
        %v2380 = vpack.c.b16 %v2272, %v2269
        %v2381 = vpack.c.b16 %v2273, %v2270
        %v2382 = vpack.c.b16 %v2274, %v2271
        %v2383 = vpack.c.b16 %v2278, %v2275
        %v2384 = vpack.c.b16 %v2279, %v2276
        %v2385 = vpack.c.b16 %v2280, %v2277
        %v2386 = vpack.c.b16 %v2284, %v2281
        %v2387 = vpack.c.b16 %v2285, %v2282
        %v2388 = vpack.c.b16 %v2286, %v2283
        %v2389 = vpack.c.b16 %v2290, %v2287
        %v2390 = vpack.c.b16 %v2291, %v2288
        %v2391 = vpack.c.b16 %v2292, %v2289
        %v2392 = vpack.c.b16 %v2296, %v2293
        %v2393 = vpack.c.b16 %v2297, %v2294
        %v2394 = vpack.c.b16 %v2298, %v2295
        %v2395 = vpack.c.b16 %v2302, %v2299
        %v2396 = vpack.c.b16 %v2303, %v2300
        %v2397 = vpack.c.b16 %v2304, %v2301
        %v2398 = vpack.c.b16 %v2308, %v2305
        %v2399 = vpack.c.b16 %v2309, %v2306
        %v2400 = vpack.c.b16 %v2310, %v2307
        %v2401 = vpack.c.b16 %v2314, %v2311
        %v2402 = vpack.c.b16 %v2315, %v2312
        %v2403 = vpack.c.b16 %v2316, %v2313
        %v2404 = vpack.c.b16 %v2320, %v2317
        %v2405 = vpack.c.b16 %v2321, %v2318
        %v2406 = vpack.c.b16 %v2322, %v2319
        %v2407 = vpack.c.b16 %v2326, %v2323
        %v2408 = vpack.c.b16 %v2327, %v2324
        %v2409 = vpack.c.b16 %v2328, %v2325
        %v2410 = vpack.c.b16 %v2332, %v2329
        %v2411 = vpack.c.b16 %v2333, %v2330
        %v2412 = vpack.c.b16 %v2334, %v2331
        %v2413 = vpack.c.b16 %v2338, %v2335
        %v2414 = vpack.c.b16 %v2339, %v2336
        %v2415 = vpack.c.b16 %v2340, %v2337
        %v2416 = vpack.c.b16 %v2344, %v2341
        %v2417 = vpack.c.b16 %v2345, %v2342
        %v2418 = vpack.c.b16 %v2346, %v2343
        %2491 = vmatprep.subr.bf16.mxu0 %v2348
        %2492 = vmatpush1.bf16.msra.mxu0 %v2347
        %2493 = vmatprep.subr.bf16.mxu0 %v2351
        %2494 = vmatpush1.bf16.msra.mxu0 %v2350
        %2495 = vmatprep.subr.bf16.mxu0 %v2354
        %2496 = vmatpush1.bf16.msra.mxu0 %v2353
        %2497 = vmatprep.subr.bf16.mxu0 %v2357
        %2498 = vmatpush1.bf16.msra.mxu0 %v2356
        %2499 = vmatprep.subr.bf16.mxu0 %v2360
        %2500 = vmatpush1.bf16.msra.mxu0 %v2359
        %2501 = vmatprep.subr.bf16.mxu0 %v2363
        %2502 = vmatpush1.bf16.msra.mxu0 %v2362
        %2503 = vmatprep.subr.bf16.mxu0 %v2366
        %2504 = vmatpush1.bf16.msra.mxu0 %v2365
        %2505 = vmatprep.subr.bf16.mxu0 %v2369
        %2506 = vmatpush1.bf16.msra.mxu0 %v2368
        %2507 = vmatprep.subr.bf16.mxu0 %v2372
        %2508 = vmatpush1.bf16.msra.mxu0 %v2371
        %2509 = vmatprep.subr.bf16.mxu0 %v2375
        %2510 = vmatpush1.bf16.msra.mxu0 %v2374
        %2511 = vmatprep.subr.bf16.mxu0 %v2378
        %2512 = vmatpush1.bf16.msra.mxu0 %v2377
        %2513 = vmatprep.subr.bf16.mxu0 %v2381
        %2514 = vmatpush1.bf16.msra.mxu0 %v2380
        %2515 = vmatprep.subr.bf16.mxu0 %v2384
        %2516 = vmatpush1.bf16.msra.mxu0 %v2383
        %2517 = vmatprep.subr.bf16.mxu0 %v2387
        %2518 = vmatpush1.bf16.msra.mxu0 %v2386
        %2519 = vmatprep.subr.bf16.mxu0 %v2390
        %2520 = vmatpush1.bf16.msra.mxu0 %v2389
        %2521 = vmatprep.subr.bf16.mxu0 %v2393
        %2522 = vmatpush1.bf16.msra.mxu0 %v2392
        %2523 = vmatprep.mubr.bf16.mxu0 %v1989
        %2524 = vmatmul.mubr.bf16.gmra.mrb[0].mxu0 %v1988
        %v2525 = vpop.f32.mrb[0].mxu0
        %v2526 = vadd.f32 %v2095, %v2525
        %v2527 = vpop.f32.mrb[0].mxu0
        %v2528 = vadd.f32 %v2099, %v2527
        %v2529 = vpop.f32.mrb[0].mxu0
        %v2530 = vadd.f32 %v2095, %v2529
        %v2531 = vpop.f32.mrb[0].mxu0
        %v2532 = vadd.f32 %v2099, %v2531
        %2533 = vmatprep.mubr.bf16.mxu0 %v1992
        %2534 = vmatmul.mubr.bf16.gmra.mrb[0].mxu0 %v1991
        %v2535 = vpop.f32.mrb[0].mxu0
        %v2536 = vadd.f32 %v2095, %v2535
        %v2537 = vpop.f32.mrb[0].mxu0
        %v2538 = vadd.f32 %v2099, %v2537
        %v2539 = vpop.f32.mrb[0].mxu0
        %v2540 = vadd.f32 %v2095, %v2539
        %v2541 = vpop.f32.mrb[0].mxu0
        %v2542 = vadd.f32 %v2099, %v2541
        %2543 = vdwg.mxu0
        %2544 = vmatprep.subr.bf16.mxu0 %v2396
        %2545 = vmatpush1.bf16.msra.mxu0 %v2395
        %2546 = vmatprep.subr.bf16.mxu0 %v2399
        %2547 = vmatpush1.bf16.msra.mxu0 %v2398
        %2548 = vmatprep.subr.bf16.mxu0 %v2402
        %2549 = vmatpush1.bf16.msra.mxu0 %v2401
        %2550 = vmatprep.subr.bf16.mxu0 %v2405
        %2551 = vmatpush1.bf16.msra.mxu0 %v2404
        %2552 = vmatprep.subr.bf16.mxu0 %v2408
        %2553 = vmatpush1.bf16.msra.mxu0 %v2407
        %2554 = vmatprep.subr.bf16.mxu0 %v2411
        %2555 = vmatpush1.bf16.msra.mxu0 %v2410
        %2556 = vmatprep.subr.bf16.mxu0 %v2414
        %2557 = vmatpush1.bf16.msra.mxu0 %v2413
        %2558 = vmatprep.subr.bf16.mxu0 %v2417
        %2559 = vmatpush1.bf16.msra.mxu0 %v2416
        %2560 = vmatprep.subr.bf16.mxu0 0
        %2561 = vmatpush1.bf16.msra.mxu0 0
        %2562 = vmatprep.subr.bf16.mxu0 0
        %2563 = vmatpush1.bf16.msra.mxu0 0
        %2564 = vmatprep.subr.bf16.mxu0 0
        %2565 = vmatpush1.bf16.msra.mxu0 0
        %2566 = vmatprep.subr.bf16.mxu0 0
        %2567 = vmatpush1.bf16.msra.mxu0 0
        %2568 = vmatprep.subr.bf16.mxu0 0
        %2569 = vmatpush1.bf16.msra.mxu0 0
        %2570 = vmatprep.subr.bf16.mxu0 0
        %2571 = vmatpush1.bf16.msra.mxu0 0
        %2572 = vmatprep.subr.bf16.mxu0 0
        %2573 = vmatpush1.bf16.msra.mxu0 0
        %2574 = vmatprep.subr.bf16.mxu0 0
        %2575 = vmatpush1.bf16.msra.mxu0 0
        %2576 = vmatprep.mubr.bf16.mxu0 0
        %2577 = vmatmul.mubr.bf16.gmra.mrb[0].mxu0 %v1990
        %v2578 = vpop.f32.mrb[0].mxu0
        %v2579 = vadd.f32 %v2526, %v2578
        %v2580 = vpop.f32.mrb[0].mxu0
        %v2581 = vadd.f32 %v2528, %v2580
        %v2582 = vpop.f32.mrb[0].mxu0
        %v2583 = vadd.f32 %v2530, %v2582
        %v2584 = vpop.f32.mrb[0].mxu0
        %v2585 = vadd.f32 %v2532, %v2584
        %2586 = vmatprep.mubr.bf16.mxu0 0
        %2587 = vmatmul.mubr.bf16.gmra.mrb[0].mxu0 %v1993
        %v2588 = vpop.f32.mrb[0].mxu0
        %v2589 = vadd.f32 %v2536, %v2588
        %v2590 = vpop.f32.mrb[0].mxu0
        %v2591 = vadd.f32 %v2538, %v2590
        %v2592 = vpop.f32.mrb[0].mxu0
        %v2593 = vadd.f32 %v2540, %v2592
        %v2594 = vpop.f32.mrb[0].mxu0
        %v2595 = vadd.f32 %v2542, %v2594
        %2596 = vdwg.mxu0
        %2597 = vmatprep.subr.bf16.mxu0 0
        %2598 = vmatpush1.bf16.msra.mxu0 %v2349
        %2599 = vmatprep.subr.bf16.mxu0 0
        %2600 = vmatpush1.bf16.msra.mxu0 %v2352
        %2601 = vmatprep.subr.bf16.mxu0 0
        %2602 = vmatpush1.bf16.msra.mxu0 %v2355
        %2603 = vmatprep.subr.bf16.mxu0 0
        %2604 = vmatpush1.bf16.msra.mxu0 %v2358
        %2605 = vmatprep.subr.bf16.mxu0 0
        %2606 = vmatpush1.bf16.msra.mxu0 %v2361
        %2607 = vmatprep.subr.bf16.mxu0 0
        %2608 = vmatpush1.bf16.msra.mxu0 %v2364
        %2609 = vmatprep.subr.bf16.mxu0 0
        %2610 = vmatpush1.bf16.msra.mxu0 %v2367
        %2611 = vmatprep.subr.bf16.mxu0 0
        %2612 = vmatpush1.bf16.msra.mxu0 %v2370
        %2613 = vmatprep.subr.bf16.mxu0 0
        %2614 = vmatpush1.bf16.msra.mxu0 %v2373
        %2615 = vmatprep.subr.bf16.mxu0 0
        %2616 = vmatpush1.bf16.msra.mxu0 %v2376
        %2617 = vmatprep.subr.bf16.mxu0 0
        %2618 = vmatpush1.bf16.msra.mxu0 %v2379
        %2619 = vmatprep.subr.bf16.mxu0 0
        %2620 = vmatpush1.bf16.msra.mxu0 %v2382
        %2621 = vmatprep.subr.bf16.mxu0 0
        %2622 = vmatpush1.bf16.msra.mxu0 %v2385
        %2623 = vmatprep.subr.bf16.mxu0 0
        %2624 = vmatpush1.bf16.msra.mxu0 %v2388
        %2625 = vmatprep.subr.bf16.mxu0 0
        %2626 = vmatpush1.bf16.msra.mxu0 %v2391
        %2627 = vmatprep.subr.bf16.mxu0 0
        %2628 = vmatpush1.bf16.msra.mxu0 %v2394
        %2629 = vmatprep.mubr.bf16.mxu0 %v1989
        %2630 = vmatmul.mubr.bf16.gmra.mrb[0].mxu0 %v1988
        %v2631 = vpop.f32.mrb[0].mxu0
        %v2632 = vadd.f32 %v2103, %v2631
        %v2633 = vpop.f32.mrb[0].mxu0
        %v2634 = vpop.f32.mrb[0].mxu0
        %v2635 = vadd.f32 %v2103, %v2634
        %v2636 = vpop.f32.mrb[0].mxu0
        %2637 = vmatprep.mubr.bf16.mxu0 %v1992
        %2638 = vmatmul.mubr.bf16.gmra.mrb[0].mxu0 %v1991
        %v2639 = vpop.f32.mrb[0].mxu0
        %v2640 = vadd.f32 %v2103, %v2639
        %v2641 = vpop.f32.mrb[0].mxu0
        %v2642 = vpop.f32.mrb[0].mxu0
        %v2643 = vadd.f32 %v2103, %v2642
        %v2644 = vpop.f32.mrb[0].mxu0
        %2645 = vdwg.mxu0
        %2646 = vmatprep.subr.bf16.mxu0 0
        %2647 = vmatpush1.bf16.msra.mxu0 %v2397
        %2648 = vmatprep.subr.bf16.mxu0 0
        %2649 = vmatpush1.bf16.msra.mxu0 %v2400
        %2650 = vmatprep.subr.bf16.mxu0 0
        %2651 = vmatpush1.bf16.msra.mxu0 %v2403
        %2652 = vmatprep.subr.bf16.mxu0 0
        %2653 = vmatpush1.bf16.msra.mxu0 %v2406
        %2654 = vmatprep.subr.bf16.mxu0 0
        %2655 = vmatpush1.bf16.msra.mxu0 %v2409
        %2656 = vmatprep.subr.bf16.mxu0 0
        %2657 = vmatpush1.bf16.msra.mxu0 %v2412
        %2658 = vmatprep.subr.bf16.mxu0 0
        %2659 = vmatpush1.bf16.msra.mxu0 %v2415
        %2660 = vmatprep.subr.bf16.mxu0 0
        %2661 = vmatpush1.bf16.msra.mxu0 %v2418
        %2662 = vmatprep.subr.bf16.mxu0 0
        %2663 = vmatpush1.bf16.msra.mxu0 0
        %2664 = vmatprep.subr.bf16.mxu0 0
        %2665 = vmatpush1.bf16.msra.mxu0 0
        %2666 = vmatprep.subr.bf16.mxu0 0
        %2667 = vmatpush1.bf16.msra.mxu0 0
        %2668 = vmatprep.subr.bf16.mxu0 0
        %2669 = vmatpush1.bf16.msra.mxu0 0
        %2670 = vmatprep.subr.bf16.mxu0 0
        %2671 = vmatpush1.bf16.msra.mxu0 0
        %2672 = vmatprep.subr.bf16.mxu0 0
        %2673 = vmatpush1.bf16.msra.mxu0 0
        %2674 = vmatprep.subr.bf16.mxu0 0
        %2675 = vmatpush1.bf16.msra.mxu0 0
        %2676 = vmatprep.subr.bf16.mxu0 0
        %2677 = vmatpush1.bf16.msra.mxu0 0
        %2678 = vmatprep.mubr.bf16.mxu0 0
        %2679 = vmatmul.mubr.bf16.gmra.mrb[0].mxu0 %v1990
        %v2680 = vpop.f32.mrb[0].mxu0
        %v2681 = vadd.f32 %v2632, %v2680
        %v2682 = vpop.f32.mrb[0].mxu0
        %v2683 = vpop.f32.mrb[0].mxu0
        %v2684 = vadd.f32 %v2635, %v2683
        %v2685 = vpop.f32.mrb[0].mxu0
        %2686 = vmatprep.mubr.bf16.mxu0 0
        %2687 = vmatmul.mubr.bf16.gmra.mrb[0].mxu0 %v1993
        %v2688 = vpop.f32.mrb[0].mxu0
        %v2689 = vadd.f32 %v2640, %v2688
        %v2690 = vpop.f32.mrb[0].mxu0
        %v2691 = vpop.f32.mrb[0].mxu0
        %v2692 = vadd.f32 %v2643, %v2691
        %v2693 = vpop.f32.mrb[0].mxu0
        %2694 = vdwg.mxu0
        %vm2695 = vcmp.gt.f32.partialorder %v2579, 20.0
        %vm2696 = vcmp.gt.f32.partialorder %v2581, 20.0
        %vm2697 = vcmp.gt.f32.partialorder %v2681, 20.0
        %vm2698 = vcmp.gt.f32.partialorder %v2583, 20.0
        %vm2699 = vcmp.gt.f32.partialorder %v2585, 20.0
        %vm2700 = vcmp.gt.f32.partialorder %v2684, 20.0
        %vm2701 = vcmp.gt.f32.partialorder %v2589, 20.0
        %vm2702 = vcmp.gt.f32.partialorder %v2591, 20.0
        %vm2703 = vcmp.gt.f32.partialorder %v2689, 20.0
        %vm2704 = vcmp.gt.f32.partialorder %v2593, 20.0
        %vm2705 = vcmp.gt.f32.partialorder %v2595, 20.0
        %vm2706 = vcmp.gt.f32.partialorder %v2692, 20.0
        %v2707 = vmin.f32 %v2579, 20.0
        %v2708 = vmin.f32 %v2581, 20.0
        %v2709 = vmin.f32 %v2681, 20.0
        %v2710 = vmin.f32 %v2583, 20.0
        %v2711 = vmin.f32 %v2585, 20.0
        %v2712 = vmin.f32 %v2684, 20.0
        %v2713 = vmin.f32 %v2589, 20.0
        %v2714 = vmin.f32 %v2591, 20.0
        %v2715 = vmin.f32 %v2689, 20.0
        %v2716 = vmin.f32 %v2593, 20.0
        %v2717 = vmin.f32 %v2595, 20.0
        %v2718 = vmin.f32 %v2692, 20.0
        %v2719 = vmul.f32 %v2707, 1.442695
        %v2720 = vpow.pop %v2719
        %v2721 = vmul.f32 %v2708, 1.442695
        %v2722 = vpow.pop %v2721
        %v2723 = vmul.f32 %v2709, 1.442695
        %v2724 = vpow.pop %v2723
        %v2725 = vmul.f32 %v2710, 1.442695
        %v2726 = vpow.pop %v2725
        %v2727 = vmul.f32 %v2711, 1.442695
        %v2728 = vpow.pop %v2727
        %v2729 = vmul.f32 %v2712, 1.442695
        %v2730 = vpow.pop %v2729
        %v2731 = vmul.f32 %v2713, 1.442695
        %v2732 = vpow.pop %v2731
        %v2733 = vmul.f32 %v2714, 1.442695
        %v2734 = vpow.pop %v2733
        %v2735 = vmul.f32 %v2715, 1.442695
        %v2736 = vpow.pop %v2735
        %v2737 = vmul.f32 %v2716, 1.442695
        %v2738 = vpow.pop %v2737
        %v2739 = vmul.f32 %v2717, 1.442695
        %v2740 = vpow.pop %v2739
        %v2741 = vmul.f32 %v2718, 1.442695
        %v2742 = vpow.pop %v2741
        %v2743 = vadd.f32 %v2720, 1.0
        %v2744 = vadd.f32 %v2722, 1.0
        %v2745 = vadd.f32 %v2724, 1.0
        %v2746 = vadd.f32 %v2726, 1.0
        %v2747 = vadd.f32 %v2728, 1.0
        %v2748 = vadd.f32 %v2730, 1.0
        %v2749 = vadd.f32 %v2732, 1.0
        %v2750 = vadd.f32 %v2734, 1.0
        %v2751 = vadd.f32 %v2736, 1.0
        %v2752 = vadd.f32 %v2738, 1.0
        %v2753 = vadd.f32 %v2740, 1.0
        %v2754 = vadd.f32 %v2742, 1.0
        %v2755 = vlog2.pop %v2743
        %v2756 = vmul.f32 %v2755, 0.6931472
        %v2757 = vlog2.pop %v2744
        %v2758 = vmul.f32 %v2757, 0.6931472
        %v2759 = vlog2.pop %v2745
        %v2760 = vmul.f32 %v2759, 0.6931472
        %v2761 = vlog2.pop %v2746
        %v2762 = vmul.f32 %v2761, 0.6931472
        %v2763 = vlog2.pop %v2747
        %v2764 = vmul.f32 %v2763, 0.6931472
        %v2765 = vlog2.pop %v2748
        %v2766 = vmul.f32 %v2765, 0.6931472
        %v2767 = vlog2.pop %v2749
        %v2768 = vmul.f32 %v2767, 0.6931472
        %v2769 = vlog2.pop %v2750
        %v2770 = vmul.f32 %v2769, 0.6931472
        %v2771 = vlog2.pop %v2751
        %v2772 = vmul.f32 %v2771, 0.6931472
        %v2773 = vlog2.pop %v2752
        %v2774 = vmul.f32 %v2773, 0.6931472
        %v2775 = vlog2.pop %v2753
        %v2776 = vmul.f32 %v2775, 0.6931472
        %v2777 = vlog2.pop %v2754
        %v2778 = vmul.f32 %v2777, 0.6931472
        %v2779 = vsel %vm2695, %v2579, %v2756
        %v2780 = vsel %vm2696, %v2581, %v2758
        %v2781 = vsel %vm2697, %v2681, %v2760
        %v2782 = vsel %vm2698, %v2583, %v2762
        %v2783 = vsel %vm2699, %v2585, %v2764
        %v2784 = vsel %vm2700, %v2684, %v2766
        %v2785 = vsel %vm2701, %v2589, %v2768
        %v2786 = vsel %vm2702, %v2591, %v2770
        %v2787 = vsel %vm2703, %v2689, %v2772
        %v2788 = vsel %vm2704, %v2593, %v2774
        %v2789 = vsel %vm2705, %v2595, %v2776
        %v2790 = vsel %vm2706, %v2692, %v2778
        %v2791 = vsub.f32 0.0, %v2779
        %v2792 = vsub.f32 0.0, %v2780
        %v2793 = vsub.f32 0.0, %v2781
        %v2794 = vsub.f32 0.0, %v2782
        %v2795 = vsub.f32 0.0, %v2783
        %v2796 = vsub.f32 0.0, %v2784
        %v2797 = vsub.f32 0.0, %v2785
        %v2798 = vsub.f32 0.0, %v2786
        %v2799 = vsub.f32 0.0, %v2787
        %v2800 = vsub.f32 0.0, %v2788
        %v2801 = vsub.f32 0.0, %v2789
        %v2802 = vsub.f32 0.0, %v2790
        %v2803 = vmul.f32 %v2791, 1.442695
        %v2804 = vpow.pop %v2803
        %v2805 = vmul.f32 %v2792, 1.442695
        %v2806 = vpow.pop %v2805
        %v2807 = vmul.f32 %v2793, 1.442695
        %v2808 = vpow.pop %v2807
        %v2809 = vmul.f32 %v2794, 1.442695
        %v2810 = vpow.pop %v2809
        %v2811 = vmul.f32 %v2795, 1.442695
        %v2812 = vpow.pop %v2811
        %v2813 = vmul.f32 %v2796, 1.442695
        %v2814 = vpow.pop %v2813
        %v2815 = vmul.f32 %v2797, 1.442695
        %v2816 = vpow.pop %v2815
        %v2817 = vmul.f32 %v2798, 1.442695
        %v2818 = vpow.pop %v2817
        %v2819 = vmul.f32 %v2799, 1.442695
        %v2820 = vpow.pop %v2819
        %v2821 = vmul.f32 %v2800, 1.442695
        %v2822 = vpow.pop %v2821
        %v2823 = vmul.f32 %v2801, 1.442695
        %v2824 = vpow.pop %v2823
        %v2825 = vmul.f32 %v2802, 1.442695
        %v2826 = vpow.pop %v2825
        %v2827 = vadd.f32 %v2804, 1.0
        %v2828 = vadd.f32 %v2806, 1.0
        %v2829 = vadd.f32 %v2808, 1.0
        %v2830 = vadd.f32 %v2810, 1.0
        %v2831 = vadd.f32 %v2812, 1.0
        %v2832 = vadd.f32 %v2814, 1.0
        %v2833 = vadd.f32 %v2816, 1.0
        %v2834 = vadd.f32 %v2818, 1.0
        %v2835 = vadd.f32 %v2820, 1.0
        %v2836 = vadd.f32 %v2822, 1.0
        %v2837 = vadd.f32 %v2824, 1.0
        %v2838 = vadd.f32 %v2826, 1.0
        %v2839 = vrcp.pop %v2827
        %v2840 = vrcp.pop %v2828
        %v2841 = vrcp.pop %v2829
        %v2842 = vrcp.pop %v2830
        %v2843 = vrcp.pop %v2831
        %v2844 = vrcp.pop %v2832
        %v2845 = vrcp.pop %v2833
        %v2846 = vrcp.pop %v2834
        %v2847 = vrcp.pop %v2835
        %v2848 = vrcp.pop %v2836
        %v2849 = vrcp.pop %v2837
        %v2850 = vrcp.pop %v2838
        %v2851 = vmul.f32 %v1976, %v2839
        %v2852 = vmul.f32 %v1977, %v2840
        %v2853 = vmul.f32 %v1978, %v2841
        %v2854 = vmul.f32 %v1979, %v2842
        %v2855 = vmul.f32 %v1980, %v2843
        %v2856 = vmul.f32 %v1981, %v2844
        %v2857 = vmul.f32 %v1982, %v2845
        %v2858 = vmul.f32 %v1983, %v2846
        %v2859 = vmul.f32 %v1984, %v2847
        %v2860 = vmul.f32 %v1985, %v2848
        %v2861 = vmul.f32 %v1986, %v2849
        %v2862 = vmul.f32 %v1987, %v2850
        %v2863 = vsub.f32 0.0, %v1628
        %v2864 = vsub.f32 0.0, %v1679
        %v2865 = vsub.f32 0.0, %v1681
        %v2866 = vsub.f32 0.0, %v1632
        %v2867 = vsub.f32 0.0, %v1683
        %v2868 = vsub.f32 0.0, %v1685
        %v2869 = vsub.f32 0.0, %v1638
        %v2870 = vsub.f32 0.0, %v1689
        %v2871 = vsub.f32 0.0, %v1691
        %v2872 = vsub.f32 0.0, %v1642
        %v2873 = vsub.f32 0.0, %v1693
        %v2874 = vsub.f32 0.0, %v1695
        %v2875 = vmul.f32 %v2863, 1.442695
        %v2876 = vpow.pop %v2875
        %v2877 = vmul.f32 %v2864, 1.442695
        %v2878 = vpow.pop %v2877
        %v2879 = vmul.f32 %v2865, 1.442695
        %v2880 = vpow.pop %v2879
        %v2881 = vmul.f32 %v2866, 1.442695
        %v2882 = vpow.pop %v2881
        %v2883 = vmul.f32 %v2867, 1.442695
        %v2884 = vpow.pop %v2883
        %v2885 = vmul.f32 %v2868, 1.442695
        %v2886 = vpow.pop %v2885
        %v2887 = vmul.f32 %v2869, 1.442695
        %v2888 = vpow.pop %v2887
        %v2889 = vmul.f32 %v2870, 1.442695
        %v2890 = vpow.pop %v2889
        %v2891 = vmul.f32 %v2871, 1.442695
        %v2892 = vpow.pop %v2891
        %v2893 = vmul.f32 %v2872, 1.442695
        %v2894 = vpow.pop %v2893
        %v2895 = vmul.f32 %v2873, 1.442695
        %v2896 = vpow.pop %v2895
        %v2897 = vmul.f32 %v2874, 1.442695
        %v2898 = vpow.pop %v2897
        %v2899 = vadd.f32 %v2876, 1.0
        %v2900 = vadd.f32 %v2878, 1.0
        %v2901 = vadd.f32 %v2880, 1.0
        %v2902 = vadd.f32 %v2882, 1.0
        %v2903 = vadd.f32 %v2884, 1.0
        %v2904 = vadd.f32 %v2886, 1.0
        %v2905 = vadd.f32 %v2888, 1.0
        %v2906 = vadd.f32 %v2890, 1.0
        %v2907 = vadd.f32 %v2892, 1.0
        %v2908 = vadd.f32 %v2894, 1.0
        %v2909 = vadd.f32 %v2896, 1.0
        %v2910 = vadd.f32 %v2898, 1.0
        %v2911 = vrcp.pop %v2899
        %v2912 = vrcp.pop %v2900
        %v2913 = vrcp.pop %v2901
        %v2914 = vrcp.pop %v2902
        %v2915 = vrcp.pop %v2903
        %v2916 = vrcp.pop %v2904
        %v2917 = vrcp.pop %v2905
        %v2918 = vrcp.pop %v2906
        %v2919 = vrcp.pop %v2907
        %v2920 = vrcp.pop %v2908
        %v2921 = vrcp.pop %v2909
        %v2922 = vrcp.pop %v2910
        %v2923 = vmul.f32 %v2851, %v2911
        %v2924 = vmul.f32 %v2852, %v2912
        %v2925 = vmul.f32 %v2853, %v2913
        %v2926 = vmul.f32 %v2854, %v2914
        %v2927 = vmul.f32 %v2855, %v2915
        %v2928 = vmul.f32 %v2856, %v2916
        %v2929 = vmul.f32 %v2857, %v2917
        %v2930 = vmul.f32 %v2858, %v2918
        %v2931 = vmul.f32 %v2859, %v2919
        %v2932 = vmul.f32 %v2860, %v2920
        %v2933 = vmul.f32 %v2861, %v2921
        %v2934 = vmul.f32 %v2862, %v2922
        %v2935 = vpack.c.bf16 %v2926, %v2923
        %v2936 = vpack.c.bf16 %v2927, %v2924
        %v2937 = vpack.c.bf16 %v2928, %v2925
        %v2938 = vpack.c.bf16 %v2932, %v2929
        %v2939 = vpack.c.bf16 %v2933, %v2930
        %v2940 = vpack.c.bf16 %v2934, %v2931
        %v2941 = vld [vmem:[%s648] sm:$0xff]
        %v2942 = vld [vmem:[%s648 + $0x8] sm:$0xff]
        %v2943 = vld [vmem:[%s648 + $0x10] sm:$0xff]
        %v2944 = vld [vmem:[%s648 + $0x18] sm:$0xff]
        %v2945 = vld [vmem:[%s648 + $0x20] sm:$0xff]
        %v2946 = vld [vmem:[%s648 + $0x28] sm:$0xff]
        %v2947 = vld [vmem:[%s648 + $0x30] sm:$0xff]
        %v2948 = vld [vmem:[%s648 + $0x38] sm:$0xff]
        %v2949 = vld [vmem:[%s648 + $0x40] sm:$0xff]
        %v2950 = vld [vmem:[%s648 + $0x48] sm:$0xff]
        %v2951 = vld [vmem:[%s648 + $0x50] sm:$0xff]
        %v2952 = vld [vmem:[%s648 + $0x58] sm:$0xff]
        %v2953 = vld [vmem:[%s648 + $0x60] sm:$0xff]
        %v2954 = vld [vmem:[%s648 + $0x68] sm:$0xff]
        %v2955 = vld [vmem:[%s648 + $0x70] sm:$0xff]
        %v2956 = vld [vmem:[%s648 + $0x78] sm:$0xff]
        %v2957 = vld [vmem:[%s648 + $0x80] sm:$0xff]
        %v2958 = vld [vmem:[%s648 + $0x88] sm:$0xff]
        %v2959 = vld [vmem:[%s648 + $0x90] sm:$0xff]
        %v2960 = vld [vmem:[%s648 + $0x98] sm:$0xff]
        %v2961 = vld [vmem:[%s648 + $0xa0] sm:$0xff]
        %v2962 = vld [vmem:[%s648 + $0xa8] sm:$0xff]
        %v2963 = vld [vmem:[%s648 + $0xb0] sm:$0xff]
        %v2964 = vld [vmem:[%s648 + $0xb8] sm:$0xff]
        %v2965 = vld [vmem:[%s648 + $0xc0] sm:$0xff]
        %v2966 = vld [vmem:[%s648 + $0xc8] sm:$0xff]
        %v2967 = vld [vmem:[%s648 + $0xd0] sm:$0xff]
        %v2968 = vld [vmem:[%s648 + $0xd8] sm:$0xff]
        %v2969 = vld [vmem:[%s648 + $0xe0] sm:$0xff]
        %v2970 = vld [vmem:[%s648 + $0xe8] sm:$0xff]
        %v2971 = vld [vmem:[%s648 + $0xf0] sm:$0xff]
        %v2972 = vld [vmem:[%s648 + $0xf8] sm:$0xff]
        %v2973 = vld [vmem:[%s648 + $0x100] sm:$0xff]
        %v2974 = vld [vmem:[%s648 + $0x108] sm:$0xff]
        %v2975 = vld [vmem:[%s648 + $0x110] sm:$0xff]
        %v2976 = vld [vmem:[%s648 + $0x118] sm:$0xff]
        %v2977 = vld [vmem:[%s648 + $0x120] sm:$0xff]
        %v2978 = vld [vmem:[%s648 + $0x128] sm:$0xff]
        %v2979 = vld [vmem:[%s648 + $0x130] sm:$0xff]
        %v2980 = vld [vmem:[%s648 + $0x138] sm:$0xff]
        %v2981 = vld [vmem:[%s648 + $0x140] sm:$0xff]
        %v2982 = vld [vmem:[%s648 + $0x148] sm:$0xff]
        %v2983 = vld [vmem:[%s648 + $0x150] sm:$0xff]
        %v2984 = vld [vmem:[%s648 + $0x158] sm:$0xff]
        %v2985 = vld [vmem:[%s648 + $0x160] sm:$0xff]
        %v2986 = vld [vmem:[%s648 + $0x168] sm:$0xff]
        %v2987 = vld [vmem:[%s648 + $0x170] sm:$0xff]
        %v2988 = vld [vmem:[%s648 + $0x178] sm:$0xff]
        %v3037 = vunpack.c.l.b16 %v2941
        %v3038 = vunpack.c.h.b16 %v2941
        %v3039 = vunpack.c.l.b16 %v2942
        %v3040 = vunpack.c.h.b16 %v2942
        %v3041 = vunpack.c.l.b16 %v2943
        %v3042 = vunpack.c.h.b16 %v2943
        %v3043 = vunpack.c.l.b16 %v2944
        %v3044 = vunpack.c.h.b16 %v2944
        %v3045 = vunpack.c.l.b16 %v2945
        %v3046 = vunpack.c.h.b16 %v2945
        %v3047 = vunpack.c.l.b16 %v2946
        %v3048 = vunpack.c.h.b16 %v2946
        %v3049 = vunpack.c.l.b16 %v2947
        %v3050 = vunpack.c.h.b16 %v2947
        %v3051 = vunpack.c.l.b16 %v2948
        %v3052 = vunpack.c.h.b16 %v2948
        %v3053 = vunpack.c.l.b16 %v2949
        %v3054 = vunpack.c.h.b16 %v2949
        %v3055 = vunpack.c.l.b16 %v2950
        %v3056 = vunpack.c.h.b16 %v2950
        %v3057 = vunpack.c.l.b16 %v2951
        %v3058 = vunpack.c.h.b16 %v2951
        %v3059 = vunpack.c.l.b16 %v2952
        %v3060 = vunpack.c.h.b16 %v2952
        %v3061 = vunpack.c.l.b16 %v2953
        %v3062 = vunpack.c.h.b16 %v2953
        %v3063 = vunpack.c.l.b16 %v2954
        %v3064 = vunpack.c.h.b16 %v2954
        %v3065 = vunpack.c.l.b16 %v2955
        %v3066 = vunpack.c.h.b16 %v2955
        %v3067 = vunpack.c.l.b16 %v2956
        %v3068 = vunpack.c.h.b16 %v2956
        %v3069 = vunpack.c.l.b16 %v2957
        %v3070 = vunpack.c.h.b16 %v2957
        %v3071 = vunpack.c.l.b16 %v2958
        %v3072 = vunpack.c.h.b16 %v2958
        %v3073 = vunpack.c.l.b16 %v2959
        %v3074 = vunpack.c.h.b16 %v2959
        %v3075 = vunpack.c.l.b16 %v2960
        %v3076 = vunpack.c.h.b16 %v2960
        %v3077 = vunpack.c.l.b16 %v2961
        %v3078 = vunpack.c.h.b16 %v2961
        %v3079 = vunpack.c.l.b16 %v2962
        %v3080 = vunpack.c.h.b16 %v2962
        %v3081 = vunpack.c.l.b16 %v2963
        %v3082 = vunpack.c.h.b16 %v2963
        %v3083 = vunpack.c.l.b16 %v2964
        %v3084 = vunpack.c.h.b16 %v2964
        %v3085 = vunpack.c.l.b16 %v2965
        %v3086 = vunpack.c.h.b16 %v2965
        %v3087 = vunpack.c.l.b16 %v2966
        %v3088 = vunpack.c.h.b16 %v2966
        %v3089 = vunpack.c.l.b16 %v2967
        %v3090 = vunpack.c.h.b16 %v2967
        %v3091 = vunpack.c.l.b16 %v2968
        %v3092 = vunpack.c.h.b16 %v2968
        %v3093 = vunpack.c.l.b16 %v2969
        %v3094 = vunpack.c.h.b16 %v2969
        %v3095 = vunpack.c.l.b16 %v2970
        %v3096 = vunpack.c.h.b16 %v2970
        %v3097 = vunpack.c.l.b16 %v2971
        %v3098 = vunpack.c.h.b16 %v2971
        %v3099 = vunpack.c.l.b16 %v2972
        %v3100 = vunpack.c.h.b16 %v2972
        %v3101 = vunpack.c.l.b16 %v2973
        %v3102 = vunpack.c.h.b16 %v2973
        %v3103 = vunpack.c.l.b16 %v2974
        %v3104 = vunpack.c.h.b16 %v2974
        %v3105 = vunpack.c.l.b16 %v2975
        %v3106 = vunpack.c.h.b16 %v2975
        %v3107 = vunpack.c.l.b16 %v2976
        %v3108 = vunpack.c.h.b16 %v2976
        %v3109 = vunpack.c.l.b16 %v2977
        %v3110 = vunpack.c.h.b16 %v2977
        %v3111 = vunpack.c.l.b16 %v2978
        %v3112 = vunpack.c.h.b16 %v2978
        %v3113 = vunpack.c.l.b16 %v2979
        %v3114 = vunpack.c.h.b16 %v2979
        %v3115 = vunpack.c.l.b16 %v2980
        %v3116 = vunpack.c.h.b16 %v2980
        %v3117 = vunpack.c.l.b16 %v2981
        %v3118 = vunpack.c.h.b16 %v2981
        %v3119 = vunpack.c.l.b16 %v2982
        %v3120 = vunpack.c.h.b16 %v2982
        %v3121 = vunpack.c.l.b16 %v2983
        %v3122 = vunpack.c.h.b16 %v2983
        %v3123 = vunpack.c.l.b16 %v2984
        %v3124 = vunpack.c.h.b16 %v2984
        %v3125 = vunpack.c.l.b16 %v2985
        %v3126 = vunpack.c.h.b16 %v2985
        %v3127 = vunpack.c.l.b16 %v2986
        %v3128 = vunpack.c.h.b16 %v2986
        %v3129 = vunpack.c.l.b16 %v2987
        %v3130 = vunpack.c.h.b16 %v2987
        %v3131 = vunpack.c.l.b16 %v2988
        %v3132 = vunpack.c.h.b16 %v2988
        %v3133 = vpack.c.b16 %v3039, %v3037
        %v3134 = vpack.c.b16 %v3040, %v3038
        %v3135 = vpack.c.b16 %v3043, %v3041
        %v3136 = vpack.c.b16 %v3044, %v3042
        %v3137 = vpack.c.b16 %v3047, %v3045
        %v3138 = vpack.c.b16 %v3048, %v3046
        %v3139 = vpack.c.b16 %v3051, %v3049
        %v3140 = vpack.c.b16 %v3052, %v3050
        %v3141 = vpack.c.b16 %v3055, %v3053
        %v3142 = vpack.c.b16 %v3056, %v3054
        %v3143 = vpack.c.b16 %v3059, %v3057
        %v3144 = vpack.c.b16 %v3060, %v3058
        %v3145 = vpack.c.b16 %v3063, %v3061
        %v3146 = vpack.c.b16 %v3064, %v3062
        %v3147 = vpack.c.b16 %v3067, %v3065
        %v3148 = vpack.c.b16 %v3068, %v3066
        %v3149 = vpack.c.b16 %v3071, %v3069
        %v3150 = vpack.c.b16 %v3072, %v3070
        %v3151 = vpack.c.b16 %v3075, %v3073
        %v3152 = vpack.c.b16 %v3076, %v3074
        %v3153 = vpack.c.b16 %v3079, %v3077
        %v3154 = vpack.c.b16 %v3080, %v3078
        %v3155 = vpack.c.b16 %v3083, %v3081
        %v3156 = vpack.c.b16 %v3084, %v3082
        %v3157 = vpack.c.b16 %v3087, %v3085
        %v3158 = vpack.c.b16 %v3088, %v3086
        %v3159 = vpack.c.b16 %v3091, %v3089
        %v3160 = vpack.c.b16 %v3092, %v3090
        %v3161 = vpack.c.b16 %v3095, %v3093
        %v3162 = vpack.c.b16 %v3096, %v3094
        %v3163 = vpack.c.b16 %v3099, %v3097
        %v3164 = vpack.c.b16 %v3100, %v3098
        %v3165 = vpack.c.b16 %v3103, %v3101
        %v3166 = vpack.c.b16 %v3104, %v3102
        %v3167 = vpack.c.b16 %v3107, %v3105
        %v3168 = vpack.c.b16 %v3108, %v3106
        %v3169 = vpack.c.b16 %v3111, %v3109
        %v3170 = vpack.c.b16 %v3112, %v3110
        %v3171 = vpack.c.b16 %v3115, %v3113
        %v3172 = vpack.c.b16 %v3116, %v3114
        %v3173 = vpack.c.b16 %v3119, %v3117
        %v3174 = vpack.c.b16 %v3120, %v3118
        %v3175 = vpack.c.b16 %v3123, %v3121
        %v3176 = vpack.c.b16 %v3124, %v3122
        %v3177 = vpack.c.b16 %v3127, %v3125
        %v3178 = vpack.c.b16 %v3128, %v3126
        %v3179 = vpack.c.b16 %v3131, %v3129
        %v3180 = vpack.c.b16 %v3132, %v3130
        %3229 = vmatprep.subr.bf16.mxu0 %v3134
        %3230 = vmatpush1.bf16.msra.mxu0 %v3133
        %3231 = vmatprep.subr.bf16.mxu0 %v3136
        %3232 = vmatpush1.bf16.msra.mxu0 %v3135
        %3233 = vmatprep.subr.bf16.mxu0 %v3138
        %3234 = vmatpush1.bf16.msra.mxu0 %v3137
        %3235 = vmatprep.subr.bf16.mxu0 %v3140
        %3236 = vmatpush1.bf16.msra.mxu0 %v3139
        %3237 = vmatprep.subr.bf16.mxu0 %v3142
        %3238 = vmatpush1.bf16.msra.mxu0 %v3141
        %3239 = vmatprep.subr.bf16.mxu0 %v3144
        %3240 = vmatpush1.bf16.msra.mxu0 %v3143
        %3241 = vmatprep.subr.bf16.mxu0 %v3146
        %3242 = vmatpush1.bf16.msra.mxu0 %v3145
        %3243 = vmatprep.subr.bf16.mxu0 %v3148
        %3244 = vmatpush1.bf16.msra.mxu0 %v3147
        %3245 = vmatprep.subr.bf16.mxu0 %v3150
        %3246 = vmatpush1.bf16.msra.mxu0 %v3149
        %3247 = vmatprep.subr.bf16.mxu0 %v3152
        %3248 = vmatpush1.bf16.msra.mxu0 %v3151
        %3249 = vmatprep.subr.bf16.mxu0 %v3154
        %3250 = vmatpush1.bf16.msra.mxu0 %v3153
        %3251 = vmatprep.subr.bf16.mxu0 %v3156
        %3252 = vmatpush1.bf16.msra.mxu0 %v3155
        %3253 = vmatprep.subr.bf16.mxu0 %v3158
        %3254 = vmatpush1.bf16.msra.mxu0 %v3157
        %3255 = vmatprep.subr.bf16.mxu0 %v3160
        %3256 = vmatpush1.bf16.msra.mxu0 %v3159
        %3257 = vmatprep.subr.bf16.mxu0 %v3162
        %3258 = vmatpush1.bf16.msra.mxu0 %v3161
        %3259 = vmatprep.subr.bf16.mxu0 %v3164
        %3260 = vmatpush1.bf16.msra.mxu0 %v3163
        %3261 = vmatprep.mubr.bf16.mxu0 %v2936
        %3262 = vmatmul.mubr.bf16.gmra.mrb[0].mxu0 %v2935
        %v3263 = vpop.f32.mrb[0].mxu0
        %v3264 = vadd.f32 0.0, %v3263
        %v3265 = vpop.f32.mrb[0].mxu0
        %v3266 = vadd.f32 0.0, %v3265
        %v3267 = vpop.f32.mrb[0].mxu0
        %v3268 = vadd.f32 0.0, %v3267
        %v3269 = vpop.f32.mrb[0].mxu0
        %v3270 = vadd.f32 0.0, %v3269
        %3271 = vmatprep.mubr.bf16.mxu0 %v2939
        %3272 = vmatmul.mubr.bf16.gmra.mrb[0].mxu0 %v2938
        %v3273 = vpop.f32.mrb[0].mxu0
        %v3274 = vadd.f32 0.0, %v3273
        %v3275 = vpop.f32.mrb[0].mxu0
        %v3276 = vadd.f32 0.0, %v3275
        %v3277 = vpop.f32.mrb[0].mxu0
        %v3278 = vadd.f32 0.0, %v3277
        %v3279 = vpop.f32.mrb[0].mxu0
        %v3280 = vadd.f32 0.0, %v3279
        %3281 = vdwg.mxu0
        %3282 = vmatprep.subr.bf16.mxu0 %v3166
        %3283 = vmatpush1.bf16.msra.mxu0 %v3165
        %3284 = vmatprep.subr.bf16.mxu0 %v3168
        %3285 = vmatpush1.bf16.msra.mxu0 %v3167
        %3286 = vmatprep.subr.bf16.mxu0 %v3170
        %3287 = vmatpush1.bf16.msra.mxu0 %v3169
        %3288 = vmatprep.subr.bf16.mxu0 %v3172
        %3289 = vmatpush1.bf16.msra.mxu0 %v3171
        %3290 = vmatprep.subr.bf16.mxu0 %v3174
        %3291 = vmatpush1.bf16.msra.mxu0 %v3173
        %3292 = vmatprep.subr.bf16.mxu0 %v3176
        %3293 = vmatpush1.bf16.msra.mxu0 %v3175
        %3294 = vmatprep.subr.bf16.mxu0 %v3178
        %3295 = vmatpush1.bf16.msra.mxu0 %v3177
        %3296 = vmatprep.subr.bf16.mxu0 %v3180
        %3297 = vmatpush1.bf16.msra.mxu0 %v3179
        %3298 = vmatprep.subr.bf16.mxu0 0
        %3299 = vmatpush1.bf16.msra.mxu0 0
        %3300 = vmatprep.subr.bf16.mxu0 0
        %3301 = vmatpush1.bf16.msra.mxu0 0
        %3302 = vmatprep.subr.bf16.mxu0 0
        %3303 = vmatpush1.bf16.msra.mxu0 0
        %3304 = vmatprep.subr.bf16.mxu0 0
        %3305 = vmatpush1.bf16.msra.mxu0 0
        %3306 = vmatprep.subr.bf16.mxu0 0
        %3307 = vmatpush1.bf16.msra.mxu0 0
        %3308 = vmatprep.subr.bf16.mxu0 0
        %3309 = vmatpush1.bf16.msra.mxu0 0
        %3310 = vmatprep.subr.bf16.mxu0 0
        %3311 = vmatpush1.bf16.msra.mxu0 0
        %3312 = vmatprep.subr.bf16.mxu0 0
        %3313 = vmatpush1.bf16.msra.mxu0 0
        %3314 = vmatprep.mubr.bf16.mxu0 0
        %3315 = vmatmul.mubr.bf16.gmra.mrb[0].mxu0 %v2937
        %v3316 = vpop.f32.mrb[0].mxu0
        %v3317 = vadd.f32 %v3264, %v3316
        %v3318 = vpop.f32.mrb[0].mxu0
        %v3319 = vadd.f32 %v3266, %v3318
        %v3320 = vpop.f32.mrb[0].mxu0
        %v3321 = vadd.f32 %v3268, %v3320
        %v3322 = vpop.f32.mrb[0].mxu0
        %v3323 = vadd.f32 %v3270, %v3322
        %3324 = vmatprep.mubr.bf16.mxu0 0
        %3325 = vmatmul.mubr.bf16.gmra.mrb[0].mxu0 %v2940
        %v3326 = vpop.f32.mrb[0].mxu0
        %v3327 = vadd.f32 %v3274, %v3326
        %v3328 = vpop.f32.mrb[0].mxu0
        %v3329 = vadd.f32 %v3276, %v3328
        %v3330 = vpop.f32.mrb[0].mxu0
        %v3331 = vadd.f32 %v3278, %v3330
        %v3332 = vpop.f32.mrb[0].mxu0
        %v3333 = vadd.f32 %v3280, %v3332
        %3334 = vdwg.mxu0
        %v3335 = vld [vmem:[%s754] sm:$0x3]
        %v3337 = vlaneseq
        %v3338 = vshrl.u32 %v3337, 7
        %v3339 = vsub.s32 0, %v3338
        %v3340 = vrot.slane %v3335, %v3339
        %v3341 = vlaneseq
        %v3342 = vshrl.u32 %v3341, 7
        %v3343 = vsub.s32 1, %v3342
        %v3344 = vrot.slane %v3335, %v3343
        %v3347 = vmul.f32 %v3317, %v3340
        %v3348 = vmul.f32 %v3319, %v3344
        %v3349 = vmul.f32 %v3321, %v3340
        %v3350 = vmul.f32 %v3323, %v3344
        %v3351 = vmul.f32 %v3327, %v3340
        %v3352 = vmul.f32 %v3329, %v3344
        %v3353 = vmul.f32 %v3331, %v3340
        %v3354 = vmul.f32 %v3333, %v3344
        %v3355 = vadd.f32 %v3347, %v845
        %v3356 = vadd.f32 %v3348, %v846
        %v3357 = vadd.f32 %v3349, %v847
        %v3358 = vadd.f32 %v3350, %v848
        %v3359 = vadd.f32 %v3351, %v849
        %v3360 = vadd.f32 %v3352, %v850
        %v3361 = vadd.f32 %v3353, %v851
        %v3362 = vadd.f32 %v3354, %v852
        %3363 = vst [vmem:[#allocation2] sm:$0xff] %v3355
        %3364 = vst [vmem:[#allocation2 + $0x8] sm:$0xff] %v3356
        %3365 = vst [vmem:[#allocation2 + $0x10] sm:$0xff] %v3357
        %3366 = vst [vmem:[#allocation2 + $0x18] sm:$0xff] %v3358
        %3367 = vst [vmem:[#allocation2 + $0x20] sm:$0xff] %v3359
        %3368 = vst [vmem:[#allocation2 + $0x28] sm:$0xff] %v3360
        %3369 = vst [vmem:[#allocation2 + $0x30] sm:$0xff] %v3361
        %3370 = vst [vmem:[#allocation2 + $0x38] sm:$0xff] %v3362
        %p3371 = scmp.eq.s32.totalorder %s41, 1
        // Predicated region
        $region101: #{smart_refinement_forward.1} parent=87 // pred_check
          %p3372 = pneg %p3371
        $region102: #{smart_refinement_forward.1} parent=87 // pred_check_branch
          %3374 = sbr.rel (%p3372) target = $region104
        $region103: #{smart_refinement_forward.1} parent=87 // pred_region
          %v3375 = vld [vmem:[#allocation2] sm:$0xff]
          %v3376 = vld [vmem:[#allocation2 + $0x8] sm:$0xff]
          %v3377 = vld [vmem:[#allocation2 + $0x10] sm:$0xff]
          %v3378 = vld [vmem:[#allocation2 + $0x18] sm:$0xff]
          %v3379 = vld [vmem:[#allocation2 + $0x20] sm:$0xff]
          %v3380 = vld [vmem:[#allocation2 + $0x28] sm:$0xff]
          %v3381 = vld [vmem:[#allocation2 + $0x30] sm:$0xff]
          %v3382 = vld [vmem:[#allocation2 + $0x38] sm:$0xff]
          %v3383 = vld [vmem:[%s9] sm:$0x3]
          %v3384 = vld [vmem:[%s10] sm:$0x3]
          %v3385 = vadd.f32 %v3375, %v3376
          %3386 = vadd.xlane.f32.xlu0 %v3385
          %v3387 = vpop.xlane.xlu0 %3386
          %v3388 = vadd.f32 %v3377, %v3378
          %3389 = vadd.xlane.f32.xlu0 %v3388
          %v3390 = vpop.xlane.xlu0 %3389
          %v3391 = vadd.f32 %v3379, %v3380
          %3392 = vadd.xlane.f32.xlu0 %v3391
          %v3393 = vpop.xlane.xlu0 %3392
          %v3394 = vadd.f32 %v3381, %v3382
          %3395 = vadd.xlane.f32.xlu0 %v3394
          %v3396 = vpop.xlane.xlu0 %3395
          %v3397 = vmul.f32 %v3387, %v867
          %v3398 = vmul.f32 %v3390, %v867
          %v3399 = vmul.f32 %v3393, %v867
          %v3400 = vmul.f32 %v3396, %v867
          %v3401 = vsub.f32 %v3375, %v3397
          %v3402 = vsub.f32 %v3376, %v3397
          %v3403 = vsub.f32 %v3377, %v3398
          %v3404 = vsub.f32 %v3378, %v3398
          %v3405 = vsub.f32 %v3379, %v3399
          %v3406 = vsub.f32 %v3380, %v3399
          %v3407 = vsub.f32 %v3381, %v3400
          %v3408 = vsub.f32 %v3382, %v3400
          %v3409 = vmul.f32 %v3401, %v3401
          %v3410 = vmul.f32 %v3402, %v3402
          %v3411 = vmul.f32 %v3403, %v3403
          %v3412 = vmul.f32 %v3404, %v3404
          %v3413 = vmul.f32 %v3405, %v3405
          %v3414 = vmul.f32 %v3406, %v3406
          %v3415 = vmul.f32 %v3407, %v3407
          %v3416 = vmul.f32 %v3408, %v3408
          %v3417 = vadd.f32 %v3409, %v3410
          %3418 = vadd.xlane.f32.xlu0 %v3417
          %v3419 = vpop.xlane.xlu0 %3418
          %v3420 = vadd.f32 %v3411, %v3412
          %3421 = vadd.xlane.f32.xlu0 %v3420
          %v3422 = vpop.xlane.xlu0 %3421
          %v3423 = vadd.f32 %v3413, %v3414
          %3424 = vadd.xlane.f32.xlu0 %v3423
          %v3425 = vpop.xlane.xlu0 %3424
          %v3426 = vadd.f32 %v3415, %v3416
          %3427 = vadd.xlane.f32.xlu0 %v3426
          %v3428 = vpop.xlane.xlu0 %3427
          %v3429 = vmul.f32 %v3419, %v867
          %v3430 = vmul.f32 %v3422, %v867
          %v3431 = vmul.f32 %v3425, %v867
          %v3432 = vmul.f32 %v3428, %v867
          %v3433 = vadd.f32 %v3429, 1e-05
          %v3434 = vadd.f32 %v3430, 1e-05
          %v3435 = vadd.f32 %v3431, 1e-05
          %v3436 = vadd.f32 %v3432, 1e-05
          %v3437 = vrsqrt.pop %v3433
          %v3438 = vrsqrt.pop %v3434
          %v3439 = vrsqrt.pop %v3435
          %v3440 = vrsqrt.pop %v3436
          %v3441 = vmul.f32 %v3401, %v3437
          %v3442 = vmul.f32 %v3402, %v3437
          %v3443 = vmul.f32 %v3403, %v3438
          %v3444 = vmul.f32 %v3404, %v3438
          %v3445 = vmul.f32 %v3405, %v3439
          %v3446 = vmul.f32 %v3406, %v3439
          %v3447 = vmul.f32 %v3407, %v3440
          %v3448 = vmul.f32 %v3408, %v3440
          %v3450 = vlaneseq
          %v3451 = vshrl.u32 %v3450, 7
          %v3452 = vsub.s32 0, %v3451
          %v3453 = vrot.slane %v3383, %v3452
          %v3454 = vlaneseq
          %v3455 = vshrl.u32 %v3454, 7
          %v3456 = vsub.s32 1, %v3455
          %v3457 = vrot.slane %v3383, %v3456
          %v3460 = vmul.f32 %v3441, %v3453
          %v3461 = vmul.f32 %v3442, %v3457
          %v3462 = vmul.f32 %v3443, %v3453
          %v3463 = vmul.f32 %v3444, %v3457
          %v3464 = vmul.f32 %v3445, %v3453
          %v3465 = vmul.f32 %v3446, %v3457
          %v3466 = vmul.f32 %v3447, %v3453
          %v3467 = vmul.f32 %v3448, %v3457
          %v3469 = vlaneseq
          %v3470 = vshrl.u32 %v3469, 7
          %v3471 = vsub.s32 0, %v3470
          %v3472 = vrot.slane %v3384, %v3471
          %v3473 = vlaneseq
          %v3474 = vshrl.u32 %v3473, 7
          %v3475 = vsub.s32 1, %v3474
          %v3476 = vrot.slane %v3384, %v3475
          %v3479 = vadd.f32 %v3460, %v3472
          %v3480 = vadd.f32 %v3461, %v3476
          %v3481 = vadd.f32 %v3462, %v3472
          %v3482 = vadd.f32 %v3463, %v3476
          %v3483 = vadd.f32 %v3464, %v3472
          %v3484 = vadd.f32 %v3465, %v3476
          %v3485 = vadd.f32 %v3466, %v3472
          %v3486 = vadd.f32 %v3467, %v3476
          %3487 = vst [vmem:[#allocation9] sm:$0xff] %v3479
          %3488 = vst [vmem:[#allocation9 + $0x8] sm:$0xff] %v3480
          %3489 = vst [vmem:[#allocation9 + $0x10] sm:$0xff] %v3481
          %3490 = vst [vmem:[#allocation9 + $0x18] sm:$0xff] %v3482
          %3491 = vst [vmem:[#allocation9 + $0x20] sm:$0xff] %v3483
          %3492 = vst [vmem:[#allocation9 + $0x28] sm:$0xff] %v3484
          %3493 = vst [vmem:[#allocation9 + $0x30] sm:$0xff] %v3485
          %3494 = vst [vmem:[#allocation9 + $0x38] sm:$0xff] %v3486
          %v3495 = vadd.f32 %v3479, %v3481
          %v3496 = vrot.slane %v3495, 4
          %v3497 = vadd.f32 %v3495, %v3496
          %v3498 = vrot.slane %v3497, 2
          %v3499 = vadd.f32 %v3497, %v3498
          %v3500 = vrot.slane %v3499, 1
          %v3501 = vadd.f32 %v3499, %v3500
          %v3502 = vadd.f32 %v3480, %v3482
          %v3503 = vrot.slane %v3502, 4
          %v3504 = vadd.f32 %v3502, %v3503
          %v3505 = vrot.slane %v3504, 2
          %v3506 = vadd.f32 %v3504, %v3505
          %v3507 = vrot.slane %v3506, 1
          %v3508 = vadd.f32 %v3506, %v3507
          %v3509 = vadd.f32 %v3483, %v3485
          %v3510 = vrot.slane %v3509, 4
          %v3511 = vadd.f32 %v3509, %v3510
          %v3512 = vrot.slane %v3511, 2
          %v3513 = vadd.f32 %v3511, %v3512
          %v3514 = vrot.slane %v3513, 1
          %v3515 = vadd.f32 %v3513, %v3514
          %v3516 = vadd.f32 %v3484, %v3486
          %v3517 = vrot.slane %v3516, 4
          %v3518 = vadd.f32 %v3516, %v3517
          %v3519 = vrot.slane %v3518, 2
          %v3520 = vadd.f32 %v3518, %v3519
          %v3521 = vrot.slane %v3520, 1
          %v3522 = vadd.f32 %v3520, %v3521
          %v3523 = vrcp.pop 16.0
          %v3524 = vmul.f32 %v3501, %v3523
          %v3525 = vmul.f32 %v3508, %v3523
          %v3526 = vmul.f32 %v3515, %v3523
          %v3527 = vmul.f32 %v3522, %v3523
          %v3528 = vpack.c.bf16 %v3524, %v3524
          %v3529 = vpack.c.bf16 %v3525, %v3525
          %v3530 = vpack.c.bf16 %v3526, %v3526
          %v3531 = vpack.c.bf16 %v3527, %v3527
          %v3532 = vld [vmem:[%s11] sm:$0xff]
          %v3533 = vld [vmem:[%s11 + $0x8] sm:$0xf]
          %v3534 = vld [vmem:[%s11 + $0xc] sm:$0xff]
          %v3535 = vld [vmem:[%s11 + $0x14] sm:$0xf]
          %v3536 = vld [vmem:[%s11 + $0x18] sm:$0xff]
          %v3537 = vld [vmem:[%s11 + $0x20] sm:$0xf]
          %v3538 = vld [vmem:[%s11 + $0x24] sm:$0xff]
          %v3539 = vld [vmem:[%s11 + $0x2c] sm:$0xf]
          %v3540 = vld [vmem:[%s11 + $0x30] sm:$0xff]
          %v3541 = vld [vmem:[%s11 + $0x38] sm:$0xf]
          %v3542 = vld [vmem:[%s11 + $0x3c] sm:$0xff]
          %v3543 = vld [vmem:[%s11 + $0x44] sm:$0xf]
          %v3544 = vld [vmem:[%s11 + $0x48] sm:$0xff]
          %v3545 = vld [vmem:[%s11 + $0x50] sm:$0xf]
          %v3546 = vld [vmem:[%s11 + $0x54] sm:$0xff]
          %v3547 = vld [vmem:[%s11 + $0x5c] sm:$0xf]
          %v3548 = vld [vmem:[%s11 + $0x60] sm:$0xff]
          %v3549 = vld [vmem:[%s11 + $0x68] sm:$0xf]
          %v3550 = vld [vmem:[%s11 + $0x6c] sm:$0xff]
          %v3551 = vld [vmem:[%s11 + $0x74] sm:$0xf]
          %v3552 = vld [vmem:[%s11 + $0x78] sm:$0xff]
          %v3553 = vld [vmem:[%s11 + $0x80] sm:$0xf]
          %v3554 = vld [vmem:[%s11 + $0x84] sm:$0xff]
          %v3555 = vld [vmem:[%s11 + $0x8c] sm:$0xf]
          %v3556 = vld [vmem:[%s11 + $0x90] sm:$0xff]
          %v3557 = vld [vmem:[%s11 + $0x98] sm:$0xf]
          %v3558 = vld [vmem:[%s11 + $0x9c] sm:$0xff]
          %v3559 = vld [vmem:[%s11 + $0xa4] sm:$0xf]
          %v3560 = vld [vmem:[%s11 + $0xa8] sm:$0xff]
          %v3561 = vld [vmem:[%s11 + $0xb0] sm:$0xf]
          %v3562 = vld [vmem:[%s11 + $0xb4] sm:$0xff]
          %v3563 = vld [vmem:[%s11 + $0xbc] sm:$0xf]
          %v3564 = vld [vmem:[%s11 + $0xc0] sm:$0xff]
          %v3565 = vld [vmem:[%s11 + $0xc8] sm:$0xf]
          %v3566 = vld [vmem:[%s11 + $0xcc] sm:$0xff]
          %v3567 = vld [vmem:[%s11 + $0xd4] sm:$0xf]
          %v3568 = vld [vmem:[%s11 + $0xd8] sm:$0xff]
          %v3569 = vld [vmem:[%s11 + $0xe0] sm:$0xf]
          %v3570 = vld [vmem:[%s11 + $0xe4] sm:$0xff]
          %v3571 = vld [vmem:[%s11 + $0xec] sm:$0xf]
          %v3572 = vld [vmem:[%s11 + $0xf0] sm:$0xff]
          %v3573 = vld [vmem:[%s11 + $0xf8] sm:$0xf]
          %v3574 = vld [vmem:[%s11 + $0xfc] sm:$0xff]
          %v3575 = vld [vmem:[%s11 + $0x104] sm:$0xf]
          %v3576 = vld [vmem:[%s11 + $0x108] sm:$0xff]
          %v3577 = vld [vmem:[%s11 + $0x110] sm:$0xf]
          %v3578 = vld [vmem:[%s11 + $0x114] sm:$0xff]
          %v3579 = vld [vmem:[%s11 + $0x11c] sm:$0xf]
          %v3580 = vld [vmem:[%s11 + $0x120] sm:$0xff]
          %v3581 = vld [vmem:[%s11 + $0x128] sm:$0xf]
          %v3582 = vld [vmem:[%s11 + $0x12c] sm:$0xff]
          %v3583 = vld [vmem:[%s11 + $0x134] sm:$0xf]
          %v3584 = vld [vmem:[%s11 + $0x138] sm:$0xff]
          %v3585 = vld [vmem:[%s11 + $0x140] sm:$0xf]
          %v3586 = vld [vmem:[%s11 + $0x144] sm:$0xff]
          %v3587 = vld [vmem:[%s11 + $0x14c] sm:$0xf]
          %v3588 = vld [vmem:[%s11 + $0x150] sm:$0xff]
          %v3589 = vld [vmem:[%s11 + $0x158] sm:$0xf]
          %v3590 = vld [vmem:[%s11 + $0x15c] sm:$0xff]
          %v3591 = vld [vmem:[%s11 + $0x164] sm:$0xf]
          %v3592 = vld [vmem:[%s11 + $0x168] sm:$0xff]
          %v3593 = vld [vmem:[%s11 + $0x170] sm:$0xf]
          %v3594 = vld [vmem:[%s11 + $0x174] sm:$0xff]
          %v3595 = vld [vmem:[%s11 + $0x17c] sm:$0xf]
          %v3596 = vld [vmem:[%s12] sm:$0x7]
          %v3598 = vlaneseq
          %v3599 = vshrl.u32 %v3598, 7
          %v3600 = vsub.s32 0, %v3599
          %v3601 = vrot.slane %v3596, %v3600
          %v3602 = vlaneseq
          %v3603 = vshrl.u32 %v3602, 7
          %v3604 = vsub.s32 1, %v3603
          %v3605 = vrot.slane %v3596, %v3604
          %v3606 = vlaneseq
          %v3607 = vshrl.u32 %v3606, 7
          %v3608 = vsub.s32 2, %v3607
          %v3609 = vrot.slane %v3596, %v3608
          %v3617 = vunpack.c.l.b16 %v3528
          %v3618 = vunpack.c.l.b16 %v3529
          %v3619 = vunpack.c.l.b16 %v3530
          %v3620 = vunpack.c.l.b16 %v3531
          %vm3621 = vcmask 1041409
          %v3622 = vsel %vm3621, %v3619, %v3617
          %v3623 = vsel %vm3621, %v3620, %v3618
          %v3624 = vpack.c.b16 %v3622, %v3622
          %v3625 = vpack.c.b16 %v3623, %v3623
          %v3692 = vunpack.c.l.b16 %v3532
          %v3693 = vunpack.c.h.b16 %v3532
          %v3694 = vunpack.c.l.b16 %v3533
          %v3695 = vunpack.c.l.b16 %v3534
          %v3696 = vunpack.c.h.b16 %v3534
          %v3697 = vunpack.c.l.b16 %v3535
          %v3698 = vunpack.c.l.b16 %v3536
          %v3699 = vunpack.c.h.b16 %v3536
          %v3700 = vunpack.c.l.b16 %v3537
          %v3701 = vunpack.c.l.b16 %v3538
          %v3702 = vunpack.c.h.b16 %v3538
          %v3703 = vunpack.c.l.b16 %v3539
          %v3704 = vunpack.c.l.b16 %v3540
          %v3705 = vunpack.c.h.b16 %v3540
          %v3706 = vunpack.c.l.b16 %v3541
          %v3707 = vunpack.c.l.b16 %v3542
          %v3708 = vunpack.c.h.b16 %v3542
          %v3709 = vunpack.c.l.b16 %v3543
          %v3710 = vunpack.c.l.b16 %v3544
          %v3711 = vunpack.c.h.b16 %v3544
          %v3712 = vunpack.c.l.b16 %v3545
          %v3713 = vunpack.c.l.b16 %v3546
          %v3714 = vunpack.c.h.b16 %v3546
          %v3715 = vunpack.c.l.b16 %v3547
          %v3716 = vunpack.c.l.b16 %v3548
          %v3717 = vunpack.c.h.b16 %v3548
          %v3718 = vunpack.c.l.b16 %v3549
          %v3719 = vunpack.c.l.b16 %v3550
          %v3720 = vunpack.c.h.b16 %v3550
          %v3721 = vunpack.c.l.b16 %v3551
          %v3722 = vunpack.c.l.b16 %v3552
          %v3723 = vunpack.c.h.b16 %v3552
          %v3724 = vunpack.c.l.b16 %v3553
          %v3725 = vunpack.c.l.b16 %v3554
          %v3726 = vunpack.c.h.b16 %v3554
          %v3727 = vunpack.c.l.b16 %v3555
          %v3728 = vunpack.c.l.b16 %v3556
          %v3729 = vunpack.c.h.b16 %v3556
          %v3730 = vunpack.c.l.b16 %v3557
          %v3731 = vunpack.c.l.b16 %v3558
          %v3732 = vunpack.c.h.b16 %v3558
          %v3733 = vunpack.c.l.b16 %v3559
          %v3734 = vunpack.c.l.b16 %v3560
          %v3735 = vunpack.c.h.b16 %v3560
          %v3736 = vunpack.c.l.b16 %v3561
          %v3737 = vunpack.c.l.b16 %v3562
          %v3738 = vunpack.c.h.b16 %v3562
          %v3739 = vunpack.c.l.b16 %v3563
          %v3740 = vunpack.c.l.b16 %v3564
          %v3741 = vunpack.c.h.b16 %v3564
          %v3742 = vunpack.c.l.b16 %v3565
          %v3743 = vunpack.c.l.b16 %v3566
          %v3744 = vunpack.c.h.b16 %v3566
          %v3745 = vunpack.c.l.b16 %v3567
          %v3746 = vunpack.c.l.b16 %v3568
          %v3747 = vunpack.c.h.b16 %v3568
          %v3748 = vunpack.c.l.b16 %v3569
          %v3749 = vunpack.c.l.b16 %v3570
          %v3750 = vunpack.c.h.b16 %v3570
          %v3751 = vunpack.c.l.b16 %v3571
          %v3752 = vunpack.c.l.b16 %v3572
          %v3753 = vunpack.c.h.b16 %v3572
          %v3754 = vunpack.c.l.b16 %v3573
          %v3755 = vunpack.c.l.b16 %v3574
          %v3756 = vunpack.c.h.b16 %v3574
          %v3757 = vunpack.c.l.b16 %v3575
          %v3758 = vunpack.c.l.b16 %v3576
          %v3759 = vunpack.c.h.b16 %v3576
          %v3760 = vunpack.c.l.b16 %v3577
          %v3761 = vunpack.c.l.b16 %v3578
          %v3762 = vunpack.c.h.b16 %v3578
          %v3763 = vunpack.c.l.b16 %v3579
          %v3764 = vunpack.c.l.b16 %v3580
          %v3765 = vunpack.c.h.b16 %v3580
          %v3766 = vunpack.c.l.b16 %v3581
          %v3767 = vunpack.c.l.b16 %v3582
          %v3768 = vunpack.c.h.b16 %v3582
          %v3769 = vunpack.c.l.b16 %v3583
          %v3770 = vunpack.c.l.b16 %v3584
          %v3771 = vunpack.c.h.b16 %v3584
          %v3772 = vunpack.c.l.b16 %v3585
          %v3773 = vunpack.c.l.b16 %v3586
          %v3774 = vunpack.c.h.b16 %v3586
          %v3775 = vunpack.c.l.b16 %v3587
          %v3776 = vunpack.c.l.b16 %v3588
          %v3777 = vunpack.c.h.b16 %v3588
          %v3778 = vunpack.c.l.b16 %v3589
          %v3779 = vunpack.c.l.b16 %v3590
          %v3780 = vunpack.c.h.b16 %v3590
          %v3781 = vunpack.c.l.b16 %v3591
          %v3782 = vunpack.c.l.b16 %v3592
          %v3783 = vunpack.c.h.b16 %v3592
          %v3784 = vunpack.c.l.b16 %v3593
          %v3785 = vunpack.c.l.b16 %v3594
          %v3786 = vunpack.c.h.b16 %v3594
          %v3787 = vunpack.c.l.b16 %v3595
          %v3788 = vpack.c.b16 %v3695, %v3692
          %v3789 = vpack.c.b16 %v3696, %v3693
          %v3790 = vpack.c.b16 %v3697, %v3694
          %v3791 = vpack.c.b16 %v3701, %v3698
          %v3792 = vpack.c.b16 %v3702, %v3699
          %v3793 = vpack.c.b16 %v3703, %v3700
          %v3794 = vpack.c.b16 %v3707, %v3704
          %v3795 = vpack.c.b16 %v3708, %v3705
          %v3796 = vpack.c.b16 %v3709, %v3706
          %v3797 = vpack.c.b16 %v3713, %v3710
          %v3798 = vpack.c.b16 %v3714, %v3711
          %v3799 = vpack.c.b16 %v3715, %v3712
          %v3800 = vpack.c.b16 %v3719, %v3716
          %v3801 = vpack.c.b16 %v3720, %v3717
          %v3802 = vpack.c.b16 %v3721, %v3718
          %v3803 = vpack.c.b16 %v3725, %v3722
          %v3804 = vpack.c.b16 %v3726, %v3723
          %v3805 = vpack.c.b16 %v3727, %v3724
          %v3806 = vpack.c.b16 %v3731, %v3728
          %v3807 = vpack.c.b16 %v3732, %v3729
          %v3808 = vpack.c.b16 %v3733, %v3730
          %v3809 = vpack.c.b16 %v3737, %v3734
          %v3810 = vpack.c.b16 %v3738, %v3735
          %v3811 = vpack.c.b16 %v3739, %v3736
          %v3812 = vpack.c.b16 %v3743, %v3740
          %v3813 = vpack.c.b16 %v3744, %v3741
          %v3814 = vpack.c.b16 %v3745, %v3742
          %v3815 = vpack.c.b16 %v3749, %v3746
          %v3816 = vpack.c.b16 %v3750, %v3747
          %v3817 = vpack.c.b16 %v3751, %v3748
          %v3818 = vpack.c.b16 %v3755, %v3752
          %v3819 = vpack.c.b16 %v3756, %v3753
          %v3820 = vpack.c.b16 %v3757, %v3754
          %v3821 = vpack.c.b16 %v3761, %v3758
          %v3822 = vpack.c.b16 %v3762, %v3759
          %v3823 = vpack.c.b16 %v3763, %v3760
          %v3824 = vpack.c.b16 %v3767, %v3764
          %v3825 = vpack.c.b16 %v3768, %v3765
          %v3826 = vpack.c.b16 %v3769, %v3766
          %v3827 = vpack.c.b16 %v3773, %v3770
          %v3828 = vpack.c.b16 %v3774, %v3771
          %v3829 = vpack.c.b16 %v3775, %v3772
          %v3830 = vpack.c.b16 %v3779, %v3776
          %v3831 = vpack.c.b16 %v3780, %v3777
          %v3832 = vpack.c.b16 %v3781, %v3778
          %v3833 = vpack.c.b16 %v3785, %v3782
          %v3834 = vpack.c.b16 %v3786, %v3783
          %v3835 = vpack.c.b16 %v3787, %v3784
          %3884 = vmatprep.subr.bf16.mxu0 %v3789
          %3885 = vmatpush1.bf16.msra.mxu0 %v3788
          %3886 = vmatprep.subr.bf16.mxu0 %v3792
          %3887 = vmatpush1.bf16.msra.mxu0 %v3791
          %3888 = vmatprep.subr.bf16.mxu0 %v3795
          %3889 = vmatpush1.bf16.msra.mxu0 %v3794
          %3890 = vmatprep.subr.bf16.mxu0 %v3798
          %3891 = vmatpush1.bf16.msra.mxu0 %v3797
          %3892 = vmatprep.subr.bf16.mxu0 %v3801
          %3893 = vmatpush1.bf16.msra.mxu0 %v3800
          %3894 = vmatprep.subr.bf16.mxu0 %v3804
          %3895 = vmatpush1.bf16.msra.mxu0 %v3803
          %3896 = vmatprep.subr.bf16.mxu0 %v3807
          %3897 = vmatpush1.bf16.msra.mxu0 %v3806
          %3898 = vmatprep.subr.bf16.mxu0 %v3810
          %3899 = vmatpush1.bf16.msra.mxu0 %v3809
          %3900 = vmatprep.subr.bf16.mxu0 %v3813
          %3901 = vmatpush1.bf16.msra.mxu0 %v3812
          %3902 = vmatprep.subr.bf16.mxu0 %v3816
          %3903 = vmatpush1.bf16.msra.mxu0 %v3815
          %3904 = vmatprep.subr.bf16.mxu0 %v3819
          %3905 = vmatpush1.bf16.msra.mxu0 %v3818
          %3906 = vmatprep.subr.bf16.mxu0 %v3822
          %3907 = vmatpush1.bf16.msra.mxu0 %v3821
          %3908 = vmatprep.subr.bf16.mxu0 %v3825
          %3909 = vmatpush1.bf16.msra.mxu0 %v3824
          %3910 = vmatprep.subr.bf16.mxu0 %v3828
          %3911 = vmatpush1.bf16.msra.mxu0 %v3827
          %3912 = vmatprep.subr.bf16.mxu0 %v3831
          %3913 = vmatpush1.bf16.msra.mxu0 %v3830
          %3914 = vmatprep.subr.bf16.mxu0 %v3834
          %3915 = vmatpush1.bf16.msra.mxu0 %v3833
          %3916 = vmatprep.mubr.bf16.mxu0 %v3625
          %3917 = vmatmul.mubr.bf16.gmra.mrb[0].mxu0 %v3624
          %v3918 = vpop.f32.mrb[0].mxu0
          %v3919 = vadd.f32 %v3601, %v3918
          %v3920 = vpop.f32.mrb[0].mxu0
          %v3921 = vadd.f32 %v3605, %v3920
          %v3922 = vpop.f32.mrb[0].mxu0
          %v3923 = vpop.f32.mrb[0].mxu0
          %3924 = vdwg.mxu0
          %3925 = vmatprep.subr.bf16.mxu0 0
          %3926 = vmatpush1.bf16.msra.mxu0 %v3790
          %3927 = vmatprep.subr.bf16.mxu0 0
          %3928 = vmatpush1.bf16.msra.mxu0 %v3793
          %3929 = vmatprep.subr.bf16.mxu0 0
          %3930 = vmatpush1.bf16.msra.mxu0 %v3796
          %3931 = vmatprep.subr.bf16.mxu0 0
          %3932 = vmatpush1.bf16.msra.mxu0 %v3799
          %3933 = vmatprep.subr.bf16.mxu0 0
          %3934 = vmatpush1.bf16.msra.mxu0 %v3802
          %3935 = vmatprep.subr.bf16.mxu0 0
          %3936 = vmatpush1.bf16.msra.mxu0 %v3805
          %3937 = vmatprep.subr.bf16.mxu0 0
          %3938 = vmatpush1.bf16.msra.mxu0 %v3808
          %3939 = vmatprep.subr.bf16.mxu0 0
          %3940 = vmatpush1.bf16.msra.mxu0 %v3811
          %3941 = vmatprep.subr.bf16.mxu0 0
          %3942 = vmatpush1.bf16.msra.mxu0 %v3814
          %3943 = vmatprep.subr.bf16.mxu0 0
          %3944 = vmatpush1.bf16.msra.mxu0 %v3817
          %3945 = vmatprep.subr.bf16.mxu0 0
          %3946 = vmatpush1.bf16.msra.mxu0 %v3820
          %3947 = vmatprep.subr.bf16.mxu0 0
          %3948 = vmatpush1.bf16.msra.mxu0 %v3823
          %3949 = vmatprep.subr.bf16.mxu0 0
          %3950 = vmatpush1.bf16.msra.mxu0 %v3826
          %3951 = vmatprep.subr.bf16.mxu0 0
          %3952 = vmatpush1.bf16.msra.mxu0 %v3829
          %3953 = vmatprep.subr.bf16.mxu0 0
          %3954 = vmatpush1.bf16.msra.mxu0 %v3832
          %3955 = vmatprep.subr.bf16.mxu0 0
          %3956 = vmatpush1.bf16.msra.mxu0 %v3835
          %3957 = vmatprep.mubr.bf16.mxu0 %v3625
          %3958 = vmatmul.mubr.bf16.gmra.mrb[0].mxu0 %v3624
          %v3959 = vpop.f32.mrb[0].mxu0
          %v3960 = vadd.f32 %v3609, %v3959
          %v3961 = vpop.f32.mrb[0].mxu0
          %v3962 = vpop.f32.mrb[0].mxu0
          %v3963 = vpop.f32.mrb[0].mxu0
          %3964 = vdwg.mxu0
          %v3965 = vmul.f32 %v3960, 0.5
          %v3966 = vmul.f32 %v3960, 0.70710677
          %v3967 = vand.u32 2147483647, %v3966
          %v3968 = vmul.f32 %v3967, 0.3275911
          %v3969 = vadd.f32 %v3968, 1.0
          %v3970 = vrcp.pop %v3969
          %v3971 = vmul.f32 %v3970, 1.0614054
          %v3972 = vadd.f32 %v3971, -1.4531521
          %v3973 = vmul.f32 %v3972, %v3970
          %v3974 = vadd.f32 %v3973, 1.4214138
          %v3975 = vmul.f32 %v3974, %v3970
          %v3976 = vadd.f32 %v3975, -0.28449672
          %v3977 = vmul.f32 %v3976, %v3970
          %v3978 = vadd.f32 %v3977, 0.2548296
          %v3979 = vmul.f32 %v3978, %v3970
          %v3980 = vsub.f32 0.0, %v3967
          %v3981 = vmul.f32 %v3980, %v3967
          %v3982 = vmul.f32 %v3981, 1.442695
          %v3983 = vpow.pop %v3982
          %v3984 = vmul.f32 %v3979, %v3983
          %v3985 = vsub.f32 1.0, %v3984
          %vm3986 = vcmp.ge.f32.partialorder %v3966, 0.0
          %v3987 = vsub.f32 0.0, %v3985
          %v3988 = vsel %vm3986, %v3985, %v3987
          %v3989 = vadd.f32 %v3988, 1.0
          %v3990 = vmul.f32 %v3965, %v3989
          %v3991 = vld [vmem:[%s13] sm:$0x1]
          %v3993 = vlaneseq
          %v3994 = vshrl.u32 %v3993, 7
          %v3995 = vsub.s32 0, %v3994
          %v3996 = vrot.slane %v3991, %v3995
          %v3998 = vmul.f32 %v3990, %v3996
          %vm3999 = vcmask 1041408
          %v4000 = vsel %vm3999, %v3998, 0.0
          %4001 = vadd.xlane.f32.xlu0 %v4000
          %v4002 = vpop.xlane.xlu0 %4001
          %v4003 = vld [vmem:[#allocation3] sm:$0x1]
          %v4005 = vlaneseq
          %v4006 = vshrl.u32 %v4005, 7
          %v4007 = vsub.s32 0, %v4006
          %v4008 = vrot.slane %v4003, %v4007
          %v4010 = vadd.f32 %v4002, %v4008
          %vm4011 = vcmp.gt.f32.partialorder %v4010, 20.0
          %v4012 = vmin.f32 %v4010, 20.0
          %v4013 = vmul.f32 %v4012, 1.442695
          %v4014 = vpow.pop %v4013
          %v4015 = vadd.f32 %v4014, 1.0
          %v4016 = vlog2.pop %v4015
          %v4017 = vmul.f32 %v4016, 0.6931472
          %v4018 = vsel %vm4011, %v4010, %v4017
          %4020 = vset.pattern.permute.xlu0 0
          %4021 = vperm.xlu0 %4020, %v4018
          %v4022 = vpop.permute.xlu0 %4021
          %4024 = vst [vmem:[%s18] sm:$0x3] %v4022
          %v4025 = vld [vmem:[%s15] sm:$0x3]
          %v4026 = vld [vmem:[%s16] sm:$0x3]
          %v4027 = vsel %vm3999, %v3919, 0.0
          %v4028 = vsel %vm3999, %v3921, 0.0
          %v4029 = vadd.f32 %v4027, %v4028
          %4030 = vadd.xlane.f32.xlu0 %v4029
          %v4031 = vpop.xlane.xlu0 %4030
          %v4032 = vmul.f32 %v4031, %v867
          %v4033 = vsub.f32 %v3919, %v4032
          %v4034 = vsub.f32 %v3921, %v4032
          %v4035 = vmul.f32 %v4033, %v4033
          %v4036 = vmul.f32 %v4034, %v4034
          %v4037 = vsel %vm3999, %v4035, 0.0
          %v4038 = vsel %vm3999, %v4036, 0.0
          %v4039 = vadd.f32 %v4037, %v4038
          %4040 = vadd.xlane.f32.xlu0 %v4039
          %v4041 = vpop.xlane.xlu0 %4040
          %v4042 = vmul.f32 %v4041, %v867
          %v4043 = vadd.f32 %v4042, 1e-05
          %v4044 = vrsqrt.pop %v4043
          %v4045 = vmul.f32 %v4033, %v4044
          %v4046 = vmul.f32 %v4034, %v4044
          %v4048 = vlaneseq
          %v4049 = vshrl.u32 %v4048, 7
          %v4050 = vsub.s32 0, %v4049
          %v4051 = vrot.slane %v4025, %v4050
          %v4052 = vlaneseq
          %v4053 = vshrl.u32 %v4052, 7
          %v4054 = vsub.s32 1, %v4053
          %v4055 = vrot.slane %v4025, %v4054
          %v4058 = vmul.f32 %v4045, %v4051
          %v4059 = vmul.f32 %v4046, %v4055
          %v4061 = vlaneseq
          %v4062 = vshrl.u32 %v4061, 7
          %v4063 = vsub.s32 0, %v4062
          %v4064 = vrot.slane %v4026, %v4063
          %v4065 = vlaneseq
          %v4066 = vshrl.u32 %v4065, 7
          %v4067 = vsub.s32 1, %v4066
          %v4068 = vrot.slane %v4026, %v4067
          %v4071 = vadd.f32 %v4058, %v4064
          %v4072 = vadd.f32 %v4059, %v4068
          %v4073 = vmul.f32 %v4071, 0.5
          %v4074 = vmul.f32 %v4072, 0.5
          %v4075 = vmul.f32 %v4071, 0.70710677
          %v4076 = vmul.f32 %v4072, 0.70710677
          %v4077 = vand.u32 2147483647, %v4075
          %v4078 = vand.u32 2147483647, %v4076
          %v4079 = vmul.f32 %v4077, 0.3275911
          %v4080 = vmul.f32 %v4078, 0.3275911
          %v4081 = vadd.f32 %v4079, 1.0
          %v4082 = vadd.f32 %v4080, 1.0
          %v4083 = vrcp.pop %v4081
          %v4084 = vrcp.pop %v4082
          %v4085 = vmul.f32 %v4083, 1.0614054
          %v4086 = vmul.f32 %v4084, 1.0614054
          %v4087 = vadd.f32 %v4085, -1.4531521
          %v4088 = vadd.f32 %v4086, -1.4531521
          %v4089 = vmul.f32 %v4087, %v4083
          %v4090 = vmul.f32 %v4088, %v4084
          %v4091 = vadd.f32 %v4089, 1.4214138
          %v4092 = vadd.f32 %v4090, 1.4214138
          %v4093 = vmul.f32 %v4091, %v4083
          %v4094 = vmul.f32 %v4092, %v4084
          %v4095 = vadd.f32 %v4093, -0.28449672
          %v4096 = vadd.f32 %v4094, -0.28449672
          %v4097 = vmul.f32 %v4095, %v4083
          %v4098 = vmul.f32 %v4096, %v4084
          %v4099 = vadd.f32 %v4097, 0.2548296
          %v4100 = vadd.f32 %v4098, 0.2548296
          %v4101 = vmul.f32 %v4099, %v4083
          %v4102 = vmul.f32 %v4100, %v4084
          %v4103 = vsub.f32 0.0, %v4077
          %v4104 = vsub.f32 0.0, %v4078
          %v4105 = vmul.f32 %v4103, %v4077
          %v4106 = vmul.f32 %v4104, %v4078
          %v4107 = vmul.f32 %v4105, 1.442695
          %v4108 = vpow.pop %v4107
          %v4109 = vmul.f32 %v4106, 1.442695
          %v4110 = vpow.pop %v4109
          %v4111 = vmul.f32 %v4101, %v4108
          %v4112 = vmul.f32 %v4102, %v4110
          %v4113 = vsub.f32 1.0, %v4111
          %v4114 = vsub.f32 1.0, %v4112
          %vm4115 = vcmp.ge.f32.partialorder %v4075, 0.0
          %vm4116 = vcmp.ge.f32.partialorder %v4076, 0.0
          %v4117 = vsub.f32 0.0, %v4113
          %v4118 = vsub.f32 0.0, %v4114
          %v4119 = vsel %vm4115, %v4113, %v4117
          %v4120 = vsel %vm4116, %v4114, %v4118
          %v4121 = vadd.f32 %v4119, 1.0
          %v4122 = vadd.f32 %v4120, 1.0
          %v4123 = vmul.f32 %v4073, %v4121
          %v4124 = vmul.f32 %v4074, %v4122
          %v4127 = vcombine.low %v4123, %v4124
          %v4129 = vunpack.c.l.s4 1983009808
          %v4130 = vunpack.c.0.s8 %v4129
          %v4131 = vlaneseq
          %v4132 = vshrl.u32 %v4131, 7
          %v4133 = vsub.s32 %v4130, %v4132
          %v4134 = vrot.slane %v4127, %v4133
          %4136 = vst [vmem:[#allocation10] sm:$0xf] %v4134
        $region104: #{smart_refinement_forward.1} parent=87 // pred_fallthru
          _
        // Predicated region
        $region105: #{smart_refinement_forward.1} parent=87 // pred_check
          %p4137 = pneg %p451
        $region106: #{smart_refinement_forward.1} parent=87 // pred_check_branch
          %4139 = sbr.rel (%p4137) target = $region108
        $region107: #{smart_refinement_forward.1} parent=87 // pred_region
          %s4141 = ssub.s32 1024, 1024
          %4142 = vsyncadd [#allocation6], %s4141
          %s4143 = sshll.u32 [#allocation9], 4
          %s4144 = int_to_ptr.vmem [resolvable:$true] %s4143
          %4149 = dma.vmem_to_hbm [thread:$0]  %s4144, 1024, %s17, [#allocation6], 256, 256, 16
        $region108: #{smart_refinement_forward.1} parent=87 // pred_fallthru
          _
        // Predicated region
        $region109: #{smart_refinement_forward.1} parent=87 // pred_check
          %p4150 = pneg %p472
        $region110: #{smart_refinement_forward.1} parent=87 // pred_check_branch
          %4152 = sbr.rel (%p4150) target = $region112
        $region111: #{smart_refinement_forward.1} parent=87 // pred_region
          _
        $region112: #{smart_refinement_forward.1} parent=87 // pred_fallthru
          _
        // Predicated region
        $region113: #{smart_refinement_forward.1} parent=87 // pred_check
          %p4153 = pneg %p493
        $region114: #{smart_refinement_forward.1} parent=87 // pred_check_branch
          %4155 = sbr.rel (%p4153) target = $region116
        $region115: #{smart_refinement_forward.1} parent=87 // pred_region
          %s4157 = ssub.s32 64, 64
          %4158 = vsyncadd [#allocation11], %s4157
          %s4160 = sshll.u32 [#allocation10], 4
          %s4161 = int_to_ptr.vmem [resolvable:$true] %s4160
          %4163 = dma.vmem_to_hbm [thread:$0]  %s4161, 64, %s19, [#allocation11]
        $region116: #{smart_refinement_forward.1} parent=87 // pred_fallthru
          _
        // Predicated region
        $region117: #{smart_refinement_forward.1} parent=87 // pred_check
          %p4164 = pneg %p451
        $region118: #{smart_refinement_forward.1} parent=87 // pred_check_branch
          %4166 = sbr.rel (%p4164) target = $region120
        $region119: #{smart_refinement_forward.1} parent=87 // pred_region
          %4167 = dma.done [#allocation6], 1024
        $region120: #{smart_refinement_forward.1} parent=87 // pred_fallthru
          _
        // Predicated region
        $region121: #{smart_refinement_forward.1} parent=87 // pred_check
          %p4168 = pneg %p472
        $region122: #{smart_refinement_forward.1} parent=87 // pred_check_branch
          %4170 = sbr.rel (%p4168) target = $region124
        $region123: #{smart_refinement_forward.1} parent=87 // pred_region
          _
        $region124: #{smart_refinement_forward.1} parent=87 // pred_fallthru
          _
        // Predicated region
        $region125: #{smart_refinement_forward.1} parent=87 // pred_check
          %p4171 = pneg %p493
        $region126: #{smart_refinement_forward.1} parent=87 // pred_check_branch
          %4173 = sbr.rel (%p4171) target = $region128
        $region127: #{smart_refinement_forward.1} parent=87 // pred_region
          %4174 = dma.done [#allocation11], 64
        $region128: #{smart_refinement_forward.1} parent=87 // pred_fallthru
          _
      $region88: #{smart_refinement_forward.1} parent=5 // pred_fallthru
        _
      %p4175 = scmp.le.s32.totalorder 2, %s36
      // Predicated region
      $region129: #{smart_refinement_forward.1} parent=5 // pred_check
        %p4176 = pneg %p4175
      $region130: #{smart_refinement_forward.1} parent=5 // pred_check_branch
        %4178 = sbr.rel (%p4176) target = $region132
      $region131: #{smart_refinement_forward.1} parent=5 // pred_region
        %s4179 = ssub.s32 %s36, 2
      $region132: #{smart_refinement_forward.1} parent=5 // pred_fallthru
        _
    $region6: #{smart_refinement_forward.1} parent=1 // loop_footer
      %s40 = sadd.s32 1, %s36
    $region7: #{smart_refinement_forward.1} parent=1 // loop_footer_branch
      %35 = sbr.rel target = $region3
    $region8: #{smart_refinement_forward.1} parent=1 // loop_exit
      _
    %4180 = vsyncpa [#allocation5], 1
    %s4181 = scalar_lea.sflag [#allocation5], 1
    %4182 = vsyncpa %s4181, 1
    %4183 = vsyncpa [#allocation8], 1
    %s4184 = scalar_lea.sflag [#allocation8], 1
    %4185 = vsyncpa %s4184, 1
    %4186 = vsyncpa [#allocation6], 1
    %s4187 = scalar_lea.sflag [#allocation6], 1
    %4188 = vsyncpa %s4187, 1
    %4189 = vsyncpa [#allocation11], 1

</llo_original>
